<compile_context>
chip_gen: v7x
topology: tpu7x:2x2x1
jax: 0.10.0
libtpu: 0.0.40
codegen_flags: <defaults>
</compile_context>

<pallas_src>
import functools
import math

import jax
import jax.numpy as jnp
from jax import lax
from jax.experimental import pallas as pl
from jax.experimental.pallas import tpu as pltpu

F32 = jnp.float32
# bf16 operands / f32 accumulation for the large matmuls; jnp.float32 -> exact reference.
MXU_DTYPE = jnp.bfloat16


def _default_vmem_limit():
    # generation-aware: half the physical per-core VMEM, never more than 64 MiB
    # (v5e/v6e: 128 MiB physical -> 64 MiB; v7x: 64 MiB physical -> 32 MiB).
    try:
        cap = int(pltpu.get_tpu_info().vmem_capacity_bytes)
        return int(min(cap // 2, 64 * 1024 * 1024))
    except Exception:
        return 32 * 1024 * 1024


VMEM_LIMIT = _default_vmem_limit()


# ---------------------------------------------------------------------------
# helpers
# ---------------------------------------------------------------------------
def _round_up(x, m):
    return (x + m - 1) // m * m


def _row_tile(m, max_tile=512):
    """Row tile + padded row count; tile is a multiple of 16 and divides the padded size."""
    if m <= max_tile:
        t = _round_up(max(m, 1), 16)
        return t, t
    return max_tile, _round_up(m, max_tile)


def _pad_rows(x, m_pad):
    m = x.shape[0]
    return x if m == m_pad else jnp.pad(x, ((0, m_pad - m), (0, 0)))


def _softplus(x):
    # matches torch.nn.functional.softplus (beta=1, threshold=20);
    # for x < -15 use exp(x) directly (avoids 1+exp(x) rounding to 1 in f32).
    ex = jnp.exp(jnp.minimum(x, 20.0))
    return jnp.where(x > 20.0, x, jnp.where(x < -15.0, ex, jnp.log(1.0 + ex)))


def _layernorm(y, g, b):
    mu = jnp.mean(y, axis=-1, keepdims=True)
    var = jnp.mean((y - mu) ** 2, axis=-1, keepdims=True)
    return (y - mu) * jax.lax.rsqrt(var + 1e-5) * g + b


def _mxu_dot(a, b):
    """bf16-operand MXU matmul with f32 accumulation (exact if MXU_DTYPE == float32)."""
    return jnp.dot(a.astype(MXU_DTYPE), b.astype(MXU_DTYPE),
                   preferred_element_type=jnp.float32)


# ---------------------------------------------------------------------------
# Kernel 1: fused act(x @ W + b), row-tiled ("parallel" grid axis)
# ---------------------------------------------------------------------------
def _linear_act_kernel(x_ref, w_ref, b_ref, o_ref, *, act):
    y = jnp.dot(x_ref[...], w_ref[...], preferred_element_type=jnp.float32) + b_ref[...]
    if act == "relu":
        y = jnp.maximum(y, 0.0)
    elif act == "leaky_relu":
        y = jnp.where(y > 0, y, 0.2 * y)
    elif act == "softplus":
        y = _softplus(y)
    o_ref[...] = y.astype(o_ref.dtype)


def linear_act(x, w, b, act="none"):
    M, K = x.shape
    N = w.shape[1]
    TM, M_pad = _row_tile(M)
    xp = _pad_rows(x, M_pad)
    out = pl.pallas_call(
        functools.partial(_linear_act_kernel, act=act),
        grid=(M_pad // TM,),
        in_specs=[
            pl.BlockSpec((TM, K), lambda i: (i, 0)),
            pl.BlockSpec((K, N), lambda i: (0, 0)),
            pl.BlockSpec((1, N), lambda i: (0, 0)),
        ],
        out_specs=pl.BlockSpec((TM, N), lambda i: (i, 0)),
        out_shape=jax.ShapeDtypeStruct((M_pad, N), F32),
        compiler_params=pltpu.CompilerParams(dimension_semantics=("parallel",)),
    )(xp, w, b.reshape(1, N))
    return out if M_pad == M else out[:M]


# ---------------------------------------------------------------------------
# Kernel 2: GAT_Crystal message computation (edge-tiled)
#   ew = e @ W_e (once, shared);  hi = softplus(x_i @ W_x + ew);  hj = softplus(x_j @ W_x + ew)
#   per-head logit z[:,h] = sum over head-h lanes of (hi*a1 + hj*a2)   (one [HF,H] matmul)
#   alpha = softplus(BN_eval(softplus(z)))        -> [E, H] (per-head, NOT lane-broadcast)
# ---------------------------------------------------------------------------
def _gat_edge_kernel(xi_ref, xj_ref, e_ref, wx_ref, we_ref, a1_ref, a2_ref,
                     rt_ref, bnsc_ref, bnsh_ref, hj_ref, alpha_ref):
    ew = _mxu_dot(e_ref[...], we_ref[...])                       # [TE, HF], shared
    hi = _softplus(_mxu_dot(xi_ref[...], wx_ref[...]) + ew)
    hj = _softplus(_mxu_dot(xj_ref[...], wx_ref[...]) + ew)
    g = hi * a1_ref[...] + hj * a2_ref[...]                      # VPU lane multiplies
    z = jnp.dot(g, rt_ref[...], preferred_element_type=jnp.float32)   # [TE, H] head sums
    alpha = _softplus(_softplus(z) * bnsc_ref[...] + bnsh_ref[...])    # BN1d(heads), eval
    hj_ref[...] = hj
    alpha_ref[...] = alpha


def gat_edge(xi, xj, e, wx, we, a1, a2, rt, bnsc, bnsh, heads):
    E, Fd = xi.shape
    HF = wx.shape[1]
    TE, E_pad = _row_tile(E, 512)
    xi = _pad_rows(xi, E_pad)
    xj = _pad_rows(xj, E_pad)
    e = _pad_rows(e, E_pad)
    row_spec = pl.BlockSpec((TE, Fd), lambda i: (i, 0))

    def const(a):
        return pl.BlockSpec(a.shape, lambda i: (0, 0))

    hj, alpha = pl.pallas_call(
        _gat_edge_kernel,
        grid=(E_pad // TE,),
        in_specs=[row_spec, row_spec, row_spec,
                  const(wx), const(we), const(a1), const(a2), const(rt),
                  const(bnsc), const(bnsh)],
        out_specs=[pl.BlockSpec((TE, HF), lambda i: (i, 0)),
                   pl.BlockSpec((TE, heads), lambda i: (i, 0))],
        out_shape=(jax.ShapeDtypeStruct((E_pad, HF), F32),
                   jax.ShapeDtypeStruct((E_pad, heads), F32)),
        compiler_params=pltpu.CompilerParams(
            dimension_semantics=("parallel",),
            vmem_limit_bytes=VMEM_LIMIT),
    )(xi, xj, e, wx, we, a1, a2, rt, bnsc, bnsh)
    if E_pad != E:
        hj, alpha = hj[:E], alpha[:E]
    return hj, alpha


# ---------------------------------------------------------------------------
# Kernel 3: GAT update fused with the GATGNN-level BatchNorm1d + softplus
#   acc = agg @ SumMat  (stacked identity [H*F, F]; head reduction on the otherwise-idle MXU)
#   x   = softplus(acc * scale + shift)
# where scale = bn_scale / heads and shift = (bias*bn_scale + bn_shift) are folded at init.
# ---------------------------------------------------------------------------
def _gat_update_kernel(agg_ref, sum_ref, sc_ref, sh_ref, o_ref):
    acc = jnp.dot(agg_ref[...], sum_ref[...], preferred_element_type=jnp.float32)
    o_ref[...] = _softplus(acc * sc_ref[...] + sh_ref[...])


def gat_update(agg, sum_mat, scale, shift):
    N, HF = agg.shape
    Fd = sum_mat.shape[1]
    TN, N_pad = _row_tile(N, 512)
    aggp = _pad_rows(agg, N_pad)
    out = pl.pallas_call(
        _gat_update_kernel,
        grid=(N_pad // TN,),
        in_specs=[pl.BlockSpec((TN, HF), lambda i: (i, 0)),
                  pl.BlockSpec(sum_mat.shape, lambda i: (0, 0)),
                  pl.BlockSpec((1, Fd), lambda i: (0, 0)),
                  pl.BlockSpec((1, Fd), lambda i: (0, 0))],
        out_specs=pl.BlockSpec((TN, Fd), lambda i: (i, 0)),
        out_shape=jax.ShapeDtypeStruct((N_pad, Fd), F32),
        compiler_params=pltpu.CompilerParams(dimension_semantics=("parallel",)),
    )(aggp, sum_mat, scale, shift)
    return out if N_pad == N else out[:N]


# ---------------------------------------------------------------------------
# Kernel 4: TransformerBlock attention + FFN, tiled over query rows.
#   q/k/v come from a packed QKV projection (linear_act, lane-dense 3D output);
#   per-head attention uses masked full-width contractions (lax.dot_general, no k.T);
#   y = LN1(x + attn @ Wo + bo);   z = LN2(y + FFN(y))
# ---------------------------------------------------------------------------
def _attn_ffn_kernel(x_ref, q_ref, kv_ref, wo_ref, bo_ref, ln1g_ref, ln1b_ref,
                     w1_ref, b1_ref, w2_ref, b2_ref, ln2g_ref, ln2b_ref, o_ref,
                     *, num_heads, seq_len):
    x = x_ref[...]
    TQ, D = x.shape
    hd = D // num_heads
    scale = 1.0 / math.sqrt(hd)

    kv = kv_ref[...]
    Lp = kv.shape[0]
    q = q_ref[...][:, 0:D] * scale
    k = kv[:, D:2 * D].astype(MXU_DTYPE)
    v = kv[:, 2 * D:3 * D]

    col = lax.broadcasted_iota(jnp.int32, (1, D), 1)
    key_ok = lax.broadcasted_iota(jnp.int32, (1, Lp), 1) < seq_len   # mask padded keys
    dn = (((1,), (1,)), ((), ()))                                    # q @ k^T, no transpose
    attn = jnp.zeros((TQ, D), jnp.float32)
    for h in range(num_heads):
        m = jnp.logical_and(col >= h * hd, col < (h + 1) * hd)       # [1, D]
        qh = jnp.where(m, q, 0.0).astype(MXU_DTYPE)   # zero outside head h -> exact Q_h K_h^T
        vh = jnp.where(m, v, 0.0).astype(MXU_DTYPE)   # output lands directly in head-h cols
        s = lax.dot_general(qh, k, dn, preferred_element_type=jnp.float32)   # [TQ, Lp]
        s = jnp.where(key_ok, s, -1e30)
        s = s - jnp.max(s, axis=-1, keepdims=True)
        p = jnp.exp(s)
        p = p / jnp.sum(p, axis=-1, keepdims=True)
        attn = attn + jnp.dot(p.astype(MXU_DTYPE), vh, preferred_element_type=jnp.float32)

    y = x + _mxu_dot(attn, wo_ref[...]) + bo_ref[...]
    y = _layernorm(y, ln1g_ref[...], ln1b_ref[...])
    h1 = jnp.maximum(_mxu_dot(y, w1_ref[...]) + b1_ref[...], 0.0)
    z = y + _mxu_dot(h1, w2_ref[...]) + b2_ref[...]
    o_ref[...] = _layernorm(z, ln2g_ref[...], ln2b_ref[...])


def transformer_block(x, p, num_heads=8):
    L, D = x.shape
    qkv = linear_act(x, p["wqkv"], p["bqkv"])              # [L, 3D], lane-dense output
    TQ, L_pad = _row_tile(L, 256)
    xp = _pad_rows(x, L_pad)
    qkvp = _pad_rows(qkv, L_pad)

    def const(a):
        return pl.BlockSpec(a.shape, lambda i: (0, 0))

    out = pl.pallas_call(
        functools.partial(_attn_ffn_kernel, num_heads=num_heads, seq_len=L),
        grid=(L_pad // TQ,),
        in_specs=[pl.BlockSpec((TQ, D), lambda i: (i, 0)),          # x tile (residual)
                  pl.BlockSpec((TQ, 3 * D), lambda i: (i, 0)),      # qkv tile (queries)
                  pl.BlockSpec((L_pad, 3 * D), lambda i: (0, 0)),   # full qkv (keys/values)
                  const(p["wo"]), const(p["bo"]),
                  const(p["ln1_g"]), const(p["ln1_b"]),
                  const(p["w1"]), const(p["b1"]),
                  const(p["w2"]), const(p["b2"]),
                  const(p["ln2_g"]), const(p["ln2_b"])],
        out_specs=pl.BlockSpec((TQ, D), lambda i: (i, 0)),
        out_shape=jax.ShapeDtypeStruct((L_pad, D), F32),
        compiler_params=pltpu.CompilerParams(
            dimension_semantics=("parallel",),
            vmem_limit_bytes=VMEM_LIMIT),
    )(xp, qkvp, qkvp, p["wo"], p["bo"], p["ln1_g"], p["ln1_b"],
      p["w1"], p["b1"], p["w2"], p["b2"], p["ln2_g"], p["ln2_b"])
    return out if L_pad == L else out[:L]


# ---------------------------------------------------------------------------
# Kernel 5: fused attention scores  ((x1 @ w + b) + (xt @ w + b)) / 2 == ((x1+xt)/2) @ w + b
# ---------------------------------------------------------------------------
def _scores_kernel(x1_ref, xt_ref, w_ref, b_ref, o_ref):
    m = (x1_ref[...] + xt_ref[...]) * 0.5
    o_ref[...] = jnp.dot(m, w_ref[...], preferred_element_type=jnp.float32) + b_ref[...]


def fused_scores(x1, xt, w, b):
    M, D = x1.shape
    TM, M_pad = _row_tile(M)
    x1 = _pad_rows(x1, M_pad)
    xt = _pad_rows(xt, M_pad)
    out = pl.pallas_call(
        _scores_kernel,
        grid=(M_pad // TM,),
        in_specs=[pl.BlockSpec((TM, D), lambda i: (i, 0)),
                  pl.BlockSpec((TM, D), lambda i: (i, 0)),
                  pl.BlockSpec((D, 1), lambda i: (0, 0)),
                  pl.BlockSpec((1, 1), lambda i: (0, 0))],
        out_specs=pl.BlockSpec((TM, 1), lambda i: (i, 0)),
        out_shape=jax.ShapeDtypeStruct((M_pad, 1), F32),
        compiler_params=pltpu.CompilerParams(dimension_semantics=("parallel",)),
    )(x1, xt, w, b.reshape(1, 1))
    return out if M_pad == M else out[:M]


# ---------------------------------------------------------------------------
# plain-JAX glue: data-dependent gather / scatter (segment ops)
# ---------------------------------------------------------------------------
def segment_softmax(logits, segment_ids, num_segments):
    seg_max = jax.ops.segment_max(logits, segment_ids, num_segments=num_segments)
    shifted = logits - seg_max[segment_ids]
    ex = jnp.exp(shifted)
    denom = jax.ops.segment_sum(ex, segment_ids, num_segments=num_segments)
    return ex / (denom[segment_ids] + 1e-16)


# ---------------------------------------------------------------------------
# model pieces
# ---------------------------------------------------------------------------
def gat_layer(x, row, col, e, lp, head_reduce, head_sum, num_nodes, heads, fdim):
    # flow='target_to_source': i = edge_index[0], j = edge_index[1]; aggregate onto i
    xi = x[row]      # [E, F] XLA gathers (64-wide; no concat materialisation)
    xj = x[col]
    hj, alpha = gat_edge(xi, xj, e, lp["wx"], lp["we"], lp["a1"], lp["a2"],
                         head_reduce, lp["bnsc"], lp["bnsh"], heads)
    # per-head PyG softmax over edges sharing the same destination i
    alpha = segment_softmax(alpha, row, num_nodes)                  # [E, H]
    # dropout(p=0.1) is a no-op in eval mode
    E = hj.shape[0]
    msg = (hj.reshape(E, heads, fdim) * alpha[:, :, None]).reshape(E, heads * fdim)
    agg = jax.ops.segment_sum(msg, row, num_segments=num_nodes)     # scatter-add
    return gat_update(agg, head_sum, lp["upd_scale"], lp["upd_shift"])


def global_attention_weights(x, batch, global_feat, gi, num_graphs):
    # repeat_interleave(global_feat, counts) == global_feat[batch] for sorted batch
    graph_embed = global_feat[batch]
    chunk = jnp.concatenate([x, graph_embed], axis=-1)
    x1 = linear_act(chunk, gi["in_w"], gi["in_b"], act="relu")
    xt = x1
    for blk in gi["blocks"]:
        xt = transformer_block(xt, blk)
    scores = fused_scores(x1, xt, gi["att_w"], gi["att_b"])   # (s1 + s2) / 2
    return segment_softmax(scores, batch, num_graphs)          # [N, 1]


def gatgnn_forward(params, x_in, edge_index, edge_attr_in, batch, global_feat,
                   *, num_graphs, neurons, gat_heads):
    x = linear_act(x_in, params["embed_n_w"], params["embed_n_b"])
    e = linear_act(edge_attr_in, params["embed_e_w"], params["embed_e_b"], act="leaky_relu")
    row, col = edge_index[0], edge_index[1]
    N = x.shape[0]

    layer_embeddings = []
    for lp in params["gat_layers"]:
        x = gat_layer(x, row, col, e, lp, params["head_reduce"], params["head_sum"],
                      N, gat_heads, neurons)                  # GAT + BN + softplus fused
        layer_embeddings.append(x)

    w = global_attention_weights(x, batch, global_feat, params["gi"], num_graphs)
    x = x * w
    y = jax.ops.segment_sum(x, batch, num_segments=num_graphs)    # global_add_pool
    y = linear_act(y, params["lin1_w"], params["lin1_b"], act="softplus")
    y = linear_act(y, params["lin2_w"], params["lin2_b"], act="softplus")
    y = linear_act(y, params["out_w"], params["out_b"]).squeeze()
    return y, layer_embeddings


# ---------------------------------------------------------------------------
# deterministic parameter init (synthetic; shapes follow the module __init__)
# ---------------------------------------------------------------------------
def init_params(key, neurons=64, gat_heads=4, nl=3, t_layers=4):
    keys = iter(jax.random.split(key, 256))

    def nrm(shape, scale=None):
        k = next(keys)
        if scale is None:
            scale = 1.0 / math.sqrt(shape[0])
        return jax.random.normal(k, shape, dtype=F32) * scale

    Fd = neurons
    H = gat_heads
    p = {
        "embed_n_w": nrm((92, Fd)), "embed_n_b": nrm((Fd,), 0.01),
        "embed_e_w": nrm((41, Fd)), "embed_e_b": nrm((Fd,), 0.01),
    }

    # shared constant matrices for the GAT kernels
    p["head_reduce"] = jnp.repeat(jnp.eye(H, dtype=F32), Fd, axis=0)   # [H*Fd, H] head sums
    p["head_sum"] = jnp.tile(jnp.eye(Fd, dtype=F32), (H, 1))           # [H*Fd, Fd] head mean*H

    gat_layers = []
    for _ in range(nl):
        W = nrm((2 * Fd, H * Fd), math.sqrt(2.0 / (2 * Fd + H * Fd)))
        att = nrm((H, 2 * Fd), math.sqrt(2.0 / (1 + 2 * Fd)))
        # BatchNorm1d(heads), eval with default running stats; real checkpoint:
        #   scale = gamma/sqrt(running_var+eps), shift = beta - running_mean*scale
        bn_a_scale = jnp.full((H,), 1.0 / math.sqrt(1.0 + 1e-5), F32)
        bn_a_shift = jnp.zeros((H,), F32)
        # GATGNN-level BatchNorm1d(neurons) + GAT bias, folded (mean-over-heads absorbed too)
        bias = jnp.zeros((Fd,), F32)                                   # zeros(self.bias)
        bn_x_scale = jnp.full((Fd,), 1.0 / math.sqrt(1.0 + 1e-5), F32)
        bn_x_shift = jnp.zeros((Fd,), F32)
        gat_layers.append(dict(
            wx=W[:Fd, :], we=W[Fd:, :],                                # node / edge halves
            a1=att[:, :Fd].reshape(1, H * Fd),                         # lane vectors
            a2=att[:, Fd:].reshape(1, H * Fd),
            bnsc=bn_a_scale[None, :], bnsh=bn_a_shift[None, :],        # [1, H]
            upd_scale=(bn_x_scale / H)[None, :],                       # [1, Fd]
            upd_shift=(bias * bn_x_scale + bn_x_shift)[None, :],
        ))
    p["gat_layers"] = gat_layers

    gi = {"in_w": nrm((Fd + 103, Fd)), "in_b": nrm((Fd,), 0.01)}
    blocks = []
    for _ in range(t_layers):
        blocks.append(dict(
            wqkv=nrm((Fd, 3 * Fd)), bqkv=nrm((3 * Fd,), 0.01),
            wo=nrm((Fd, Fd)), bo=nrm((Fd,), 0.01).reshape(1, Fd),
            ln1_g=jnp.ones((1, Fd), F32), ln1_b=jnp.zeros((1, Fd), F32),
            w1=nrm((Fd, 2 * Fd)), b1=nrm((2 * Fd,), 0.01).reshape(1, 2 * Fd),
            w2=nrm((2 * Fd, Fd)), b2=nrm((Fd,), 0.01).reshape(1, Fd),
            ln2_g=jnp.ones((1, Fd), F32), ln2_b=jnp.zeros((1, Fd), F32),
        ))
    gi["blocks"] = blocks
    gi["att_w"] = nrm((Fd, 1))
    gi["att_b"] = nrm((1,), 0.01)
    p["gi"] = gi

    p["lin1_w"] = nrm((Fd, Fd)); p["lin1_b"] = nrm((Fd,), 0.01)
    p["lin2_w"] = nrm((Fd, Fd)); p["lin2_b"] = nrm((Fd,), 0.01)
    p["out_w"] = nrm((Fd, 1));   p["out_b"] = nrm((1,), 0.01)
    return p


# ---------------------------------------------------------------------------
if __name__ == "__main__":
    NEURONS = 64
    GAT_HEADS = 4
    N_NODES = 16       # 2 graphs x 8 nodes
    N_EDGES = 64       # 32 edges per graph
    N_GRAPHS = 2

    key = jax.random.PRNGKey(0)
    kp, kx, ke, kg, k1, k2, k3, k4 = jax.random.split(key, 8)

    params = init_params(kp, neurons=NEURONS, gat_heads=GAT_HEADS, nl=3, t_layers=4)

    x = jax.random.normal(kx, (N_NODES, 92), dtype=F32)
    edge_attr = jax.random.normal(ke, (N_EDGES, 41), dtype=F32)
    global_feat = jax.random.normal(kg, (N_GRAPHS, 103), dtype=F32)
    batch = jnp.concatenate([jnp.zeros((8,), jnp.int32), jnp.ones((8,), jnp.int32)])
    row = jnp.concatenate([jax.random.randint(k1, (32,), 0, 8),
                           jax.random.randint(k2, (32,), 8, 16)]).astype(jnp.int32)
    col = jnp.concatenate([jax.random.randint(k3, (32,), 0, 8),
                           jax.random.randint(k4, (32,), 8, 16)]).astype(jnp.int32)
    edge_index = jnp.stack([row, col])

    fwd = jax.jit(functools.partial(gatgnn_forward, num_graphs=N_GRAPHS,
                                    neurons=NEURONS, gat_heads=GAT_HEADS))
    y, layer_embeddings = fwd(params, x, edge_index, edge_attr, batch, global_feat)

    jax.block_until_ready(y)
    for emb in layer_embeddings:
        jax.block_until_ready(emb)

    assert y.shape == (N_GRAPHS,)
    assert len(layer_embeddings) == 3 and layer_embeddings[0].shape == (N_NODES, NEURONS)
    print("KERNEL_OK")
</pallas_src>

<mosaic_0001>
module attributes {stable_mosaic.version = 11 : i64} {
  func.func private @main(%arg0: i32) attributes {dimension_semantics = [#tpu.dimension_semantics<core_parallel>], iteration_bounds = array<i64: 2>, tpu.core_type = #tpu.core_type<sc_scalar_subcore>, window_params = []} {
    return
  }
}

module attributes {stable_mosaic.version = 11 : i64} {
  func.func private @main(%arg0: i32) attributes {dimension_semantics = [#tpu.dimension_semantics<core_parallel>], iteration_bounds = array<i64: 2>, tpu.core_type = #tpu.core_type<sc_scalar_subcore>, window_params = []} {
    return
  }
}

module attributes {stable_mosaic.version = 11 : i64} {
  func.func @_linear_act_kernel(%arg0: i32, %arg1: memref<16x92xf32, #tpu.memory_space<vmem>>, %arg2: memref<92x64xf32, #tpu.memory_space<vmem>>, %arg3: memref<1x64xf32, #tpu.memory_space<vmem>>, %arg4: memref<16x64xf32, #tpu.memory_space<vmem>>) attributes {dimension_semantics = [#tpu.dimension_semantics<parallel>], iteration_bounds = array<i64: 1>, scalar_prefetch = 0 : i64, scratch_operands = 0 : i64, tpu.core_type = #tpu.core_type<tc>, window_params = [{transform_indices = @transform_0, window_bounds = array<i64: 16, 92>}, {pipeline_mode = #tpu.pipeline_mode<synchronous>, transform_indices = @transform_1, window_bounds = array<i64: 92, 64>}, {pipeline_mode = #tpu.pipeline_mode<synchronous>, transform_indices = @transform_2, window_bounds = array<i64: 1, 64>}, {transform_indices = @transform_3, window_bounds = array<i64: 16, 64>}]} {
    %c0 = arith.constant 0 : index
    %c0_0 = arith.constant 0 : index
    %0 = vector.load %arg1[%c0, %c0_0] : memref<16x92xf32, #tpu.memory_space<vmem>>, vector<16x92xf32>
    %c0_1 = arith.constant 0 : index
    %c0_2 = arith.constant 0 : index
    %1 = vector.load %arg2[%c0_1, %c0_2] : memref<92x64xf32, #tpu.memory_space<vmem>>, vector<92x64xf32>
    %cst = arith.constant dense<0.000000e+00> : vector<16x64xf32>
    %2 = tpu.matmul %0, %1, %cst {dimension_numbers = #tpu.dot_dimension_numbers<[1], [0], [0], [1], [0, 0, 1, 1], [], []>} : vector<16x92xf32>, vector<92x64xf32>, vector<16x64xf32> -> vector<16x64xf32>
    %c0_3 = arith.constant 0 : index
    %c0_4 = arith.constant 0 : index
    %3 = vector.load %arg3[%c0_3, %c0_4] : memref<1x64xf32, #tpu.memory_space<vmem>>, vector<1x64xf32>
    %4 = vector.broadcast %3 : vector<1x64xf32> to vector<16x64xf32>
    %5 = arith.addf %2, %4 : vector<16x64xf32>
    %c0_5 = arith.constant 0 : index
    %c0_6 = arith.constant 0 : index
    %6 = vector.load %arg4[%c0_5, %c0_6] : memref<16x64xf32, #tpu.memory_space<vmem>>, vector<16x64xf32>
    tpu.vector_store %arg4[%c0_5, %c0_6], %5 {strides = array<i32>} : memref<16x64xf32, #tpu.memory_space<vmem>>, vector<16x64xf32>,
    return
  }
  func.func @transform_0(%arg0: i32) -> (i32, i32) {
    %c0_i32 = arith.constant 0 : i32
    %c0_i32_0 = arith.constant 0 : i32
    return %arg0, %c0_i32 : i32, i32
  }
  func.func @transform_1(%arg0: i32) -> (i32, i32) {
    %c0_i32 = arith.constant 0 : i32
    %c0_i32_0 = arith.constant 0 : i32
    %c0_i32_1 = arith.constant 0 : i32
    return %c0_i32, %c0_i32_0 : i32, i32
  }
  func.func @transform_2(%arg0: i32) -> (i32, i32) {
    %c0_i32 = arith.constant 0 : i32
    %c0_i32_0 = arith.constant 0 : i32
    %c0_i32_1 = arith.constant 0 : i32
    return %c0_i32, %c0_i32_0 : i32, i32
  }
  func.func @transform_3(%arg0: i32) -> (i32, i32) {
    %c0_i32 = arith.constant 0 : i32
    %c0_i32_0 = arith.constant 0 : i32
    return %arg0, %c0_i32 : i32, i32
  }
}

module attributes {stable_mosaic.version = 11 : i64} {
  func.func @_linear_act_kernel(%arg0: i32, %arg1: memref<64x41xf32, #tpu.memory_space<vmem>>, %arg2: memref<41x64xf32, #tpu.memory_space<vmem>>, %arg3: memref<1x64xf32, #tpu.memory_space<vmem>>, %arg4: memref<64x64xf32, #tpu.memory_space<vmem>>) attributes {dimension_semantics = [#tpu.dimension_semantics<parallel>], iteration_bounds = array<i64: 1>, scalar_prefetch = 0 : i64, scratch_operands = 0 : i64, tpu.core_type = #tpu.core_type<tc>, window_params = [{transform_indices = @transform_0, window_bounds = array<i64: 64, 41>}, {pipeline_mode = #tpu.pipeline_mode<synchronous>, transform_indices = @transform_1, window_bounds = array<i64: 41, 64>}, {pipeline_mode = #tpu.pipeline_mode<synchronous>, transform_indices = @transform_2, window_bounds = array<i64: 1, 64>}, {transform_indices = @transform_3, window_bounds = array<i64: 64, 64>}]} {
    %c0 = arith.constant 0 : index
    %c0_0 = arith.constant 0 : index
    %0 = vector.load %arg1[%c0, %c0_0] : memref<64x41xf32, #tpu.memory_space<vmem>>, vector<64x41xf32>
    %c0_1 = arith.constant 0 : index
    %c0_2 = arith.constant 0 : index
    %1 = vector.load %arg2[%c0_1, %c0_2] : memref<41x64xf32, #tpu.memory_space<vmem>>, vector<41x64xf32>
    %cst = arith.constant dense<0.000000e+00> : vector<64x64xf32>
    %2 = tpu.matmul %0, %1, %cst {dimension_numbers = #tpu.dot_dimension_numbers<[1], [0], [0], [1], [0, 0, 1, 1], [], []>} : vector<64x41xf32>, vector<41x64xf32>, vector<64x64xf32> -> vector<64x64xf32>
    %c0_3 = arith.constant 0 : index
    %c0_4 = arith.constant 0 : index
    %3 = vector.load %arg3[%c0_3, %c0_4] : memref<1x64xf32, #tpu.memory_space<vmem>>, vector<1x64xf32>
    %4 = vector.broadcast %3 : vector<1x64xf32> to vector<64x64xf32>
    %5 = arith.addf %2, %4 : vector<64x64xf32>
    %cst_5 = arith.constant 0.000000e+00 : f32
    %6 = vector.broadcast %cst_5 : f32 to vector<64x64xf32>
    %7 = arith.cmpf ogt, %5, %6 : vector<64x64xf32>
    %cst_6 = arith.constant 2.000000e-01 : f32
    %8 = vector.broadcast %cst_6 : f32 to vector<64x64xf32>
    %9 = arith.mulf %8, %5 : vector<64x64xf32>
    %10 = arith.select %7, %5, %9 : vector<64x64xi1>, vector<64x64xf32>
    %c0_7 = arith.constant 0 : index
    %c0_8 = arith.constant 0 : index
    %11 = vector.load %arg4[%c0_7, %c0_8] : memref<64x64xf32, #tpu.memory_space<vmem>>, vector<64x64xf32>
    tpu.vector_store %arg4[%c0_7, %c0_8], %10 {strides = array<i32>} : memref<64x64xf32, #tpu.memory_space<vmem>>, vector<64x64xf32>,
    return
  }
  func.func @transform_0(%arg0: i32) -> (i32, i32) {
    %c0_i32 = arith.constant 0 : i32
    %c0_i32_0 = arith.constant 0 : i32
    return %arg0, %c0_i32 : i32, i32
  }
  func.func @transform_1(%arg0: i32) -> (i32, i32) {
    %c0_i32 = arith.constant 0 : i32
    %c0_i32_0 = arith.constant 0 : i32
    %c0_i32_1 = arith.constant 0 : i32
    return %c0_i32, %c0_i32_0 : i32, i32
  }
  func.func @transform_2(%arg0: i32) -> (i32, i32) {
    %c0_i32 = arith.constant 0 : i32
    %c0_i32_0 = arith.constant 0 : i32
    %c0_i32_1 = arith.constant 0 : i32
    return %c0_i32, %c0_i32_0 : i32, i32
  }
  func.func @transform_3(%arg0: i32) -> (i32, i32) {
    %c0_i32 = arith.constant 0 : i32
    %c0_i32_0 = arith.constant 0 : i32
    return %arg0, %c0_i32 : i32, i32
  }
}

module attributes {stable_mosaic.version = 11 : i64} {
  func.func @_gat_edge_kernel(%arg0: i32, %arg1: memref<64x64xf32, #tpu.memory_space<vmem>>, %arg2: memref<64x64xf32, #tpu.memory_space<vmem>>, %arg3: memref<64x64xf32, #tpu.memory_space<vmem>>, %arg4: memref<64x256xf32, #tpu.memory_space<vmem>>, %arg5: memref<64x256xf32, #tpu.memory_space<vmem>>, %arg6: memref<1x256xf32, #tpu.memory_space<vmem>>, %arg7: memref<1x256xf32, #tpu.memory_space<vmem>>, %arg8: memref<256x4xf32, #tpu.memory_space<vmem>>, %arg9: memref<1x4xf32, #tpu.memory_space<vmem>>, %arg10: memref<1x4xf32, #tpu.memory_space<vmem>>, %arg11: memref<64x256xf32, #tpu.memory_space<vmem>>, %arg12: memref<64x4xf32, #tpu.memory_space<vmem>>) attributes {dimension_semantics = [#tpu.dimension_semantics<parallel>], iteration_bounds = array<i64: 1>, scalar_prefetch = 0 : i64, scratch_operands = 0 : i64, tpu.core_type = #tpu.core_type<tc>, window_params = [{transform_indices = @transform_0, window_bounds = array<i64: 64, 64>}, {transform_indices = @transform_1, window_bounds = array<i64: 64, 64>}, {transform_indices = @transform_2, window_bounds = array<i64: 64, 64>}, {pipeline_mode = #tpu.pipeline_mode<synchronous>, transform_indices = @transform_3, window_bounds = array<i64: 64, 256>}, {pipeline_mode = #tpu.pipeline_mode<synchronous>, transform_indices = @transform_4, window_bounds = array<i64: 64, 256>}, {pipeline_mode = #tpu.pipeline_mode<synchronous>, transform_indices = @transform_5, window_bounds = array<i64: 1, 256>}, {pipeline_mode = #tpu.pipeline_mode<synchronous>, transform_indices = @transform_6, window_bounds = array<i64: 1, 256>}, {pipeline_mode = #tpu.pipeline_mode<synchronous>, transform_indices = @transform_7, window_bounds = array<i64: 256, 4>}, {pipeline_mode = #tpu.pipeline_mode<synchronous>, transform_indices = @transform_8, window_bounds = array<i64: 1, 4>}, {pipeline_mode = #tpu.pipeline_mode<synchronous>, transform_indices = @transform_9, window_bounds = array<i64: 1, 4>}, {transform_indices = @transform_10, window_bounds = array<i64: 64, 256>}, {transform_indices = @transform_11, window_bounds = array<i64: 64, 4>}]} {
    %c0 = arith.constant 0 : index
    %c0_0 = arith.constant 0 : index
    %0 = vector.load %arg3[%c0, %c0_0] : memref<64x64xf32, #tpu.memory_space<vmem>>, vector<64x64xf32>
    %c0_1 = arith.constant 0 : index
    %c0_2 = arith.constant 0 : index
    %1 = vector.load %arg5[%c0_1, %c0_2] : memref<64x256xf32, #tpu.memory_space<vmem>>, vector<64x256xf32>
    %2 = arith.truncf %0 : vector<64x64xf32> to vector<64x64xbf16>
    %3 = arith.truncf %1 : vector<64x256xf32> to vector<64x256xbf16>
    %cst = arith.constant dense<0.000000e+00> : vector<64x256xf32>
    %4 = tpu.matmul %2, %3, %cst {dimension_numbers = #tpu.dot_dimension_numbers<[1], [0], [0], [1], [0, 0, 1, 1], [], []>} : vector<64x64xbf16>, vector<64x256xbf16>, vector<64x256xf32> -> vector<64x256xf32>
    %c0_3 = arith.constant 0 : index
    %c0_4 = arith.constant 0 : index
    %5 = vector.load %arg1[%c0_3, %c0_4] : memref<64x64xf32, #tpu.memory_space<vmem>>, vector<64x64xf32>
    %c0_5 = arith.constant 0 : index
    %c0_6 = arith.constant 0 : index
    %6 = vector.load %arg4[%c0_5, %c0_6] : memref<64x256xf32, #tpu.memory_space<vmem>>, vector<64x256xf32>
    %7 = arith.truncf %5 : vector<64x64xf32> to vector<64x64xbf16>
    %8 = arith.truncf %6 : vector<64x256xf32> to vector<64x256xbf16>
    %cst_7 = arith.constant dense<0.000000e+00> : vector<64x256xf32>
    %9 = tpu.matmul %7, %8, %cst_7 {dimension_numbers = #tpu.dot_dimension_numbers<[1], [0], [0], [1], [0, 0, 1, 1], [], []>} : vector<64x64xbf16>, vector<64x256xbf16>, vector<64x256xf32> -> vector<64x256xf32>
    %10 = arith.addf %9, %4 : vector<64x256xf32>
    %cst_8 = arith.constant 2.000000e+01 : f32
    %11 = vector.broadcast %cst_8 : f32 to vector<64x256xf32>
    %12 = arith.minimumf %10, %11 : vector<64x256xf32>
    %13 = math.exp %12 : vector<64x256xf32>
    %cst_9 = arith.constant 2.000000e+01 : f32
    %14 = vector.broadcast %cst_9 : f32 to vector<64x256xf32>
    %15 = arith.cmpf ogt, %10, %14 : vector<64x256xf32>
    %cst_10 = arith.constant -1.500000e+01 : f32
    %16 = vector.broadcast %cst_10 : f32 to vector<64x256xf32>
    %17 = arith.cmpf olt, %10, %16 : vector<64x256xf32>
    %cst_11 = arith.constant 1.000000e+00 : f32
    %18 = vector.broadcast %cst_11 : f32 to vector<64x256xf32>
    %19 = arith.addf %18, %13 : vector<64x256xf32>
    %20 = math.log %19 : vector<64x256xf32>
    %21 = arith.select %17, %13, %20 : vector<64x256xi1>, vector<64x256xf32>
    %22 = arith.select %15, %10, %21 : vector<64x256xi1>, vector<64x256xf32>
    %c0_12 = arith.constant 0 : index
    %c0_13 = arith.constant 0 : index
    %23 = vector.load %arg2[%c0_12, %c0_13] : memref<64x64xf32, #tpu.memory_space<vmem>>, vector<64x64xf32>
    %c0_14 = arith.constant 0 : index
    %c0_15 = arith.constant 0 : index
    %24 = vector.load %arg4[%c0_14, %c0_15] : memref<64x256xf32, #tpu.memory_space<vmem>>, vector<64x256xf32>
    %25 = arith.truncf %23 : vector<64x64xf32> to vector<64x64xbf16>
    %26 = arith.truncf %24 : vector<64x256xf32> to vector<64x256xbf16>
    %cst_16 = arith.constant dense<0.000000e+00> : vector<64x256xf32>
    %27 = tpu.matmul %25, %26, %cst_16 {dimension_numbers = #tpu.dot_dimension_numbers<[1], [0], [0], [1], [0, 0, 1, 1], [], []>} : vector<64x64xbf16>, vector<64x256xbf16>, vector<64x256xf32> -> vector<64x256xf32>
    %28 = arith.addf %27, %4 : vector<64x256xf32>
    %cst_17 = arith.constant 2.000000e+01 : f32
    %29 = vector.broadcast %cst_17 : f32 to vector<64x256xf32>
    %30 = arith.minimumf %28, %29 : vector<64x256xf32>
    %31 = math.exp %30 : vector<64x256xf32>
    %cst_18 = arith.constant 2.000000e+01 : f32
    %32 = vector.broadcast %cst_18 : f32 to vector<64x256xf32>
    %33 = arith.cmpf ogt, %28, %32 : vector<64x256xf32>
    %cst_19 = arith.constant -1.500000e+01 : f32
    %34 = vector.broadcast %cst_19 : f32 to vector<64x256xf32>
    %35 = arith.cmpf olt, %28, %34 : vector<64x256xf32>
    %cst_20 = arith.constant 1.000000e+00 : f32
    %36 = vector.broadcast %cst_20 : f32 to vector<64x256xf32>
    %37 = arith.addf %36, %31 : vector<64x256xf32>
    %38 = math.log %37 : vector<64x256xf32>
    %39 = arith.select %35, %31, %38 : vector<64x256xi1>, vector<64x256xf32>
    %40 = arith.select %33, %28, %39 : vector<64x256xi1>, vector<64x256xf32>
    %c0_21 = arith.constant 0 : index
    %c0_22 = arith.constant 0 : index
    %41 = vector.load %arg6[%c0_21, %c0_22] : memref<1x256xf32, #tpu.memory_space<vmem>>, vector<1x256xf32>
    %42 = vector.broadcast %41 : vector<1x256xf32> to vector<64x256xf32>
    %43 = arith.mulf %22, %42 : vector<64x256xf32>
    %c0_23 = arith.constant 0 : index
    %c0_24 = arith.constant 0 : index
    %44 = vector.load %arg7[%c0_23, %c0_24] : memref<1x256xf32, #tpu.memory_space<vmem>>, vector<1x256xf32>
    %45 = vector.broadcast %44 : vector<1x256xf32> to vector<64x256xf32>
    %46 = arith.mulf %40, %45 : vector<64x256xf32>
    %47 = arith.addf %43, %46 : vector<64x256xf32>
    %c0_25 = arith.constant 0 : index
    %c0_26 = arith.constant 0 : index
    %48 = vector.load %arg8[%c0_25, %c0_26] : memref<256x4xf32, #tpu.memory_space<vmem>>, vector<256x4xf32>
    %cst_27 = arith.constant dense<0.000000e+00> : vector<64x4xf32>
    %49 = tpu.matmul %47, %48, %cst_27 {dimension_numbers = #tpu.dot_dimension_numbers<[1], [0], [0], [1], [0, 0, 1, 1], [], []>} : vector<64x256xf32>, vector<256x4xf32>, vector<64x4xf32> -> vector<64x4xf32>
    %cst_28 = arith.constant 2.000000e+01 : f32
    %50 = vector.broadcast %cst_28 : f32 to vector<64x4xf32>
    %51 = arith.minimumf %49, %50 : vector<64x4xf32>
    %52 = math.exp %51 : vector<64x4xf32>
    %cst_29 = arith.constant 2.000000e+01 : f32
    %53 = vector.broadcast %cst_29 : f32 to vector<64x4xf32>
    %54 = arith.cmpf ogt, %49, %53 : vector<64x4xf32>
    %cst_30 = arith.constant -1.500000e+01 : f32
    %55 = vector.broadcast %cst_30 : f32 to vector<64x4xf32>
    %56 = arith.cmpf olt, %49, %55 : vector<64x4xf32>
    %cst_31 = arith.constant 1.000000e+00 : f32
    %57 = vector.broadcast %cst_31 : f32 to vector<64x4xf32>
    %58 = arith.addf %57, %52 : vector<64x4xf32>
    %59 = math.log %58 : vector<64x4xf32>
    %60 = arith.select %56, %52, %59 : vector<64x4xi1>, vector<64x4xf32>
    %61 = arith.select %54, %49, %60 : vector<64x4xi1>, vector<64x4xf32>
    %c0_32 = arith.constant 0 : index
    %c0_33 = arith.constant 0 : index
    %62 = vector.load %arg9[%c0_32, %c0_33] : memref<1x4xf32, #tpu.memory_space<vmem>>, vector<1x4xf32>
    %63 = vector.broadcast %62 : vector<1x4xf32> to vector<64x4xf32>
    %64 = arith.mulf %61, %63 : vector<64x4xf32>
    %c0_34 = arith.constant 0 : index
    %c0_35 = arith.constant 0 : index
    %65 = vector.load %arg10[%c0_34, %c0_35] : memref<1x4xf32, #tpu.memory_space<vmem>>, vector<1x4xf32>
    %66 = vector.broadcast %65 : vector<1x4xf32> to vector<64x4xf32>
    %67 = arith.addf %64, %66 : vector<64x4xf32>
    %cst_36 = arith.constant 2.000000e+01 : f32
    %68 = vector.broadcast %cst_36 : f32 to vector<64x4xf32>
    %69 = arith.minimumf %67, %68 : vector<64x4xf32>
    %70 = math.exp %69 : vector<64x4xf32>
    %cst_37 = arith.constant 2.000000e+01 : f32
    %71 = vector.broadcast %cst_37 : f32 to vector<64x4xf32>
    %72 = arith.cmpf ogt, %67, %71 : vector<64x4xf32>
    %cst_38 = arith.constant -1.500000e+01 : f32
    %73 = vector.broadcast %cst_38 : f32 to vector<64x4xf32>
    %74 = arith.cmpf olt, %67, %73 : vector<64x4xf32>
    %cst_39 = arith.constant 1.000000e+00 : f32
    %75 = vector.broadcast %cst_39 : f32 to vector<64x4xf32>
    %76 = arith.addf %75, %70 : vector<64x4xf32>
    %77 = math.log %76 : vector<64x4xf32>
    %78 = arith.select %74, %70, %77 : vector<64x4xi1>, vector<64x4xf32>
    %79 = arith.select %72, %67, %78 : vector<64x4xi1>, vector<64x4xf32>
    %c0_40 = arith.constant 0 : index
    %c0_41 = arith.constant 0 : index
    %80 = vector.load %arg11[%c0_40, %c0_41] : memref<64x256xf32, #tpu.memory_space<vmem>>, vector<64x256xf32>
    tpu.vector_store %arg11[%c0_40, %c0_41], %40 {strides = array<i32>} : memref<64x256xf32, #tpu.memory_space<vmem>>, vector<64x256xf32>,
    %c0_42 = arith.constant 0 : index
    %c0_43 = arith.constant 0 : index
    %81 = vector.load %arg12[%c0_42, %c0_43] : memref<64x4xf32, #tpu.memory_space<vmem>>, vector<64x4xf32>
    tpu.vector_store %arg12[%c0_42, %c0_43], %79 {strides = array<i32>} : memref<64x4xf32, #tpu.memory_space<vmem>>, vector<64x4xf32>,
    return
  }
  func.func @transform_0(%arg0: i32) -> (i32, i32) {
    %c0_i32 = arith.constant 0 : i32
    %c0_i32_0 = arith.constant 0 : i32
    return %arg0, %c0_i32 : i32, i32
  }
  func.func @transform_1(%arg0: i32) -> (i32, i32) {
    %c0_i32 = arith.constant 0 : i32
    %c0_i32_0 = arith.constant 0 : i32
    return %arg0, %c0_i32 : i32, i32
  }
  func.func @transform_2(%arg0: i32) -> (i32, i32) {
    %c0_i32 = arith.constant 0 : i32
    %c0_i32_0 = arith.constant 0 : i32
    return %arg0, %c0_i32 : i32, i32
  }
  func.func @transform_3(%arg0: i32) -> (i32, i32) {
    %c0_i32 = arith.constant 0 : i32
    %c0_i32_0 = arith.constant 0 : i32
    %c0_i32_1 = arith.constant 0 : i32
    return %c0_i32, %c0_i32_0 : i32, i32
  }
  func.func @transform_4(%arg0: i32) -> (i32, i32) {
    %c0_i32 = arith.constant 0 : i32
    %c0_i32_0 = arith.constant 0 : i32
    %c0_i32_1 = arith.constant 0 : i32
    return %c0_i32, %c0_i32_0 : i32, i32
  }
  func.func @transform_5(%arg0: i32) -> (i32, i32) {
    %c0_i32 = arith.constant 0 : i32
    %c0_i32_0 = arith.constant 0 : i32
    %c0_i32_1 = arith.constant 0 : i32
    return %c0_i32, %c0_i32_0 : i32, i32
  }
  func.func @transform_6(%arg0: i32) -> (i32, i32) {
    %c0_i32 = arith.constant 0 : i32
    %c0_i32_0 = arith.constant 0 : i32
    %c0_i32_1 = arith.constant 0 : i32
    return %c0_i32, %c0_i32_0 : i32, i32
  }
  func.func @transform_7(%arg0: i32) -> (i32, i32) {
    %c0_i32 = arith.constant 0 : i32
    %c0_i32_0 = arith.constant 0 : i32
    %c0_i32_1 = arith.constant 0 : i32
    return %c0_i32, %c0_i32_0 : i32, i32
  }
  func.func @transform_8(%arg0: i32) -> (i32, i32) {
    %c0_i32 = arith.constant 0 : i32
    %c0_i32_0 = arith.constant 0 : i32
    %c0_i32_1 = arith.constant 0 : i32
    return %c0_i32, %c0_i32_0 : i32, i32
  }
  func.func @transform_9(%arg0: i32) -> (i32, i32) {
    %c0_i32 = arith.constant 0 : i32
    %c0_i32_0 = arith.constant 0 : i32
    %c0_i32_1 = arith.constant 0 : i32
    return %c0_i32, %c0_i32_0 : i32, i32
  }
  func.func @transform_10(%arg0: i32) -> (i32, i32) {
    %c0_i32 = arith.constant 0 : i32
    %c0_i32_0 = arith.constant 0 : i32
    return %arg0, %c0_i32 : i32, i32
  }
  func.func @transform_11(%arg0: i32) -> (i32, i32) {
    %c0_i32 = arith.constant 0 : i32
    %c0_i32_0 = arith.constant 0 : i32
    return %arg0, %c0_i32 : i32, i32
  }
}

module attributes {stable_mosaic.version = 11 : i64} {
  func.func @_gat_update_kernel(%arg0: i32, %arg1: memref<16x256xf32, #tpu.memory_space<vmem>>, %arg2: memref<256x64xf32, #tpu.memory_space<vmem>>, %arg3: memref<1x64xf32, #tpu.memory_space<vmem>>, %arg4: memref<1x64xf32, #tpu.memory_space<vmem>>, %arg5: memref<16x64xf32, #tpu.memory_space<vmem>>) attributes {dimension_semantics = [#tpu.dimension_semantics<parallel>], iteration_bounds = array<i64: 1>, scalar_prefetch = 0 : i64, scratch_operands = 0 : i64, tpu.core_type = #tpu.core_type<tc>, window_params = [{transform_indices = @transform_0, window_bounds = array<i64: 16, 256>}, {pipeline_mode = #tpu.pipeline_mode<synchronous>, transform_indices = @transform_1, window_bounds = array<i64: 256, 64>}, {pipeline_mode = #tpu.pipeline_mode<synchronous>, transform_indices = @transform_2, window_bounds = array<i64: 1, 64>}, {pipeline_mode = #tpu.pipeline_mode<synchronous>, transform_indices = @transform_3, window_bounds = array<i64: 1, 64>}, {transform_indices = @transform_4, window_bounds = array<i64: 16, 64>}]} {
    %c0 = arith.constant 0 : index
    %c0_0 = arith.constant 0 : index
    %0 = vector.load %arg1[%c0, %c0_0] : memref<16x256xf32, #tpu.memory_space<vmem>>, vector<16x256xf32>
    %c0_1 = arith.constant 0 : index
    %c0_2 = arith.constant 0 : index
    %1 = vector.load %arg2[%c0_1, %c0_2] : memref<256x64xf32, #tpu.memory_space<vmem>>, vector<256x64xf32>
    %cst = arith.constant dense<0.000000e+00> : vector<16x64xf32>
    %2 = tpu.matmul %0, %1, %cst {dimension_numbers = #tpu.dot_dimension_numbers<[1], [0], [0], [1], [0, 0, 1, 1], [], []>} : vector<16x256xf32>, vector<256x64xf32>, vector<16x64xf32> -> vector<16x64xf32>
    %c0_3 = arith.constant 0 : index
    %c0_4 = arith.constant 0 : index
    %3 = vector.load %arg3[%c0_3, %c0_4] : memref<1x64xf32, #tpu.memory_space<vmem>>, vector<1x64xf32>
    %4 = vector.broadcast %3 : vector<1x64xf32> to vector<16x64xf32>
    %5 = arith.mulf %2, %4 : vector<16x64xf32>
    %c0_5 = arith.constant 0 : index
    %c0_6 = arith.constant 0 : index
    %6 = vector.load %arg4[%c0_5, %c0_6] : memref<1x64xf32, #tpu.memory_space<vmem>>, vector<1x64xf32>
    %7 = vector.broadcast %6 : vector<1x64xf32> to vector<16x64xf32>
    %8 = arith.addf %5, %7 : vector<16x64xf32>
    %cst_7 = arith.constant 2.000000e+01 : f32
    %9 = vector.broadcast %cst_7 : f32 to vector<16x64xf32>
    %10 = arith.minimumf %8, %9 : vector<16x64xf32>
    %11 = math.exp %10 : vector<16x64xf32>
    %cst_8 = arith.constant 2.000000e+01 : f32
    %12 = vector.broadcast %cst_8 : f32 to vector<16x64xf32>
    %13 = arith.cmpf ogt, %8, %12 : vector<16x64xf32>
    %cst_9 = arith.constant -1.500000e+01 : f32
    %14 = vector.broadcast %cst_9 : f32 to vector<16x64xf32>
    %15 = arith.cmpf olt, %8, %14 : vector<16x64xf32>
    %cst_10 = arith.constant 1.000000e+00 : f32
    %16 = vector.broadcast %cst_10 : f32 to vector<16x64xf32>
    %17 = arith.addf %16, %11 : vector<16x64xf32>
    %18 = math.log %17 : vector<16x64xf32>
    %19 = arith.select %15, %11, %18 : vector<16x64xi1>, vector<16x64xf32>
    %20 = arith.select %13, %8, %19 : vector<16x64xi1>, vector<16x64xf32>
    %c0_11 = arith.constant 0 : index
    %c0_12 = arith.constant 0 : index
    %21 = vector.load %arg5[%c0_11, %c0_12] : memref<16x64xf32, #tpu.memory_space<vmem>>, vector<16x64xf32>
    tpu.vector_store %arg5[%c0_11, %c0_12], %20 {strides = array<i32>} : memref<16x64xf32, #tpu.memory_space<vmem>>, vector<16x64xf32>,
    return
  }
  func.func @transform_0(%arg0: i32) -> (i32, i32) {
    %c0_i32 = arith.constant 0 : i32
    %c0_i32_0 = arith.constant 0 : i32
    return %arg0, %c0_i32 : i32, i32
  }
  func.func @transform_1(%arg0: i32) -> (i32, i32) {
    %c0_i32 = arith.constant 0 : i32
    %c0_i32_0 = arith.constant 0 : i32
    %c0_i32_1 = arith.constant 0 : i32
    return %c0_i32, %c0_i32_0 : i32, i32
  }
  func.func @transform_2(%arg0: i32) -> (i32, i32) {
    %c0_i32 = arith.constant 0 : i32
    %c0_i32_0 = arith.constant 0 : i32
    %c0_i32_1 = arith.constant 0 : i32
    return %c0_i32, %c0_i32_0 : i32, i32
  }
  func.func @transform_3(%arg0: i32) -> (i32, i32) {
    %c0_i32 = arith.constant 0 : i32
    %c0_i32_0 = arith.constant 0 : i32
    %c0_i32_1 = arith.constant 0 : i32
    return %c0_i32, %c0_i32_0 : i32, i32
  }
  func.func @transform_4(%arg0: i32) -> (i32, i32) {
    %c0_i32 = arith.constant 0 : i32
    %c0_i32_0 = arith.constant 0 : i32
    return %arg0, %c0_i32 : i32, i32
  }
}

module attributes {stable_mosaic.version = 11 : i64} {
  func.func @_linear_act_kernel(%arg0: i32, %arg1: memref<16x167xf32, #tpu.memory_space<vmem>>, %arg2: memref<167x64xf32, #tpu.memory_space<vmem>>, %arg3: memref<1x64xf32, #tpu.memory_space<vmem>>, %arg4: memref<16x64xf32, #tpu.memory_space<vmem>>) attributes {dimension_semantics = [#tpu.dimension_semantics<parallel>], iteration_bounds = array<i64: 1>, scalar_prefetch = 0 : i64, scratch_operands = 0 : i64, tpu.core_type = #tpu.core_type<tc>, window_params = [{transform_indices = @transform_0, window_bounds = array<i64: 16, 167>}, {pipeline_mode = #tpu.pipeline_mode<synchronous>, transform_indices = @transform_1, window_bounds = array<i64: 167, 64>}, {pipeline_mode = #tpu.pipeline_mode<synchronous>, transform_indices = @transform_2, window_bounds = array<i64: 1, 64>}, {transform_indices = @transform_3, window_bounds = array<i64: 16, 64>}]} {
    %c0 = arith.constant 0 : index
    %c0_0 = arith.constant 0 : index
    %0 = vector.load %arg1[%c0, %c0_0] : memref<16x167xf32, #tpu.memory_space<vmem>>, vector<16x167xf32>
    %c0_1 = arith.constant 0 : index
    %c0_2 = arith.constant 0 : index
    %1 = vector.load %arg2[%c0_1, %c0_2] : memref<167x64xf32, #tpu.memory_space<vmem>>, vector<167x64xf32>
    %cst = arith.constant dense<0.000000e+00> : vector<16x64xf32>
    %2 = tpu.matmul %0, %1, %cst {dimension_numbers = #tpu.dot_dimension_numbers<[1], [0], [0], [1], [0, 0, 1, 1], [], []>} : vector<16x167xf32>, vector<167x64xf32>, vector<16x64xf32> -> vector<16x64xf32>
    %c0_3 = arith.constant 0 : index
    %c0_4 = arith.constant 0 : index
    %3 = vector.load %arg3[%c0_3, %c0_4] : memref<1x64xf32, #tpu.memory_space<vmem>>, vector<1x64xf32>
    %4 = vector.broadcast %3 : vector<1x64xf32> to vector<16x64xf32>
    %5 = arith.addf %2, %4 : vector<16x64xf32>
    %cst_5 = arith.constant 0.000000e+00 : f32
    %6 = vector.broadcast %cst_5 : f32 to vector<16x64xf32>
    %7 = arith.maximumf %5, %6 : vector<16x64xf32>
    %c0_6 = arith.constant 0 : index
    %c0_7 = arith.constant 0 : index
    %8 = vector.load %arg4[%c0_6, %c0_7] : memref<16x64xf32, #tpu.memory_space<vmem>>, vector<16x64xf32>
    tpu.vector_store %arg4[%c0_6, %c0_7], %7 {strides = array<i32>} : memref<16x64xf32, #tpu.memory_space<vmem>>, vector<16x64xf32>,
    return
  }
  func.func @transform_0(%arg0: i32) -> (i32, i32) {
    %c0_i32 = arith.constant 0 : i32
    %c0_i32_0 = arith.constant 0 : i32
    return %arg0, %c0_i32 : i32, i32
  }
  func.func @transform_1(%arg0: i32) -> (i32, i32) {
    %c0_i32 = arith.constant 0 : i32
    %c0_i32_0 = arith.constant 0 : i32
    %c0_i32_1 = arith.constant 0 : i32
    return %c0_i32, %c0_i32_0 : i32, i32
  }
  func.func @transform_2(%arg0: i32) -> (i32, i32) {
    %c0_i32 = arith.constant 0 : i32
    %c0_i32_0 = arith.constant 0 : i32
    %c0_i32_1 = arith.constant 0 : i32
    return %c0_i32, %c0_i32_0 : i32, i32
  }
  func.func @transform_3(%arg0: i32) -> (i32, i32) {
    %c0_i32 = arith.constant 0 : i32
    %c0_i32_0 = arith.constant 0 : i32
    return %arg0, %c0_i32 : i32, i32
  }
}

module attributes {stable_mosaic.version = 11 : i64} {
  func.func @_linear_act_kernel(%arg0: i32, %arg1: memref<16x64xf32, #tpu.memory_space<vmem>>, %arg2: memref<64x192xf32, #tpu.memory_space<vmem>>, %arg3: memref<1x192xf32, #tpu.memory_space<vmem>>, %arg4: memref<16x192xf32, #tpu.memory_space<vmem>>) attributes {dimension_semantics = [#tpu.dimension_semantics<parallel>], iteration_bounds = array<i64: 1>, scalar_prefetch = 0 : i64, scratch_operands = 0 : i64, tpu.core_type = #tpu.core_type<tc>, window_params = [{transform_indices = @transform_0, window_bounds = array<i64: 16, 64>}, {pipeline_mode = #tpu.pipeline_mode<synchronous>, transform_indices = @transform_1, window_bounds = array<i64: 64, 192>}, {pipeline_mode = #tpu.pipeline_mode<synchronous>, transform_indices = @transform_2, window_bounds = array<i64: 1, 192>}, {transform_indices = @transform_3, window_bounds = array<i64: 16, 192>}]} {
    %c0 = arith.constant 0 : index
    %c0_0 = arith.constant 0 : index
    %0 = vector.load %arg1[%c0, %c0_0] : memref<16x64xf32, #tpu.memory_space<vmem>>, vector<16x64xf32>
    %c0_1 = arith.constant 0 : index
    %c0_2 = arith.constant 0 : index
    %1 = vector.load %arg2[%c0_1, %c0_2] : memref<64x192xf32, #tpu.memory_space<vmem>>, vector<64x192xf32>
    %cst = arith.constant dense<0.000000e+00> : vector<16x192xf32>
    %2 = tpu.matmul %0, %1, %cst {dimension_numbers = #tpu.dot_dimension_numbers<[1], [0], [0], [1], [0, 0, 1, 1], [], []>} : vector<16x64xf32>, vector<64x192xf32>, vector<16x192xf32> -> vector<16x192xf32>
    %c0_3 = arith.constant 0 : index
    %c0_4 = arith.constant 0 : index
    %3 = vector.load %arg3[%c0_3, %c0_4] : memref<1x192xf32, #tpu.memory_space<vmem>>, vector<1x192xf32>
    %4 = vector.broadcast %3 : vector<1x192xf32> to vector<16x192xf32>
    %5 = arith.addf %2, %4 : vector<16x192xf32>
    %c0_5 = arith.constant 0 : index
    %c0_6 = arith.constant 0 : index
    %6 = vector.load %arg4[%c0_5, %c0_6] : memref<16x192xf32, #tpu.memory_space<vmem>>, vector<16x192xf32>
    tpu.vector_store %arg4[%c0_5, %c0_6], %5 {strides = array<i32>} : memref<16x192xf32, #tpu.memory_space<vmem>>, vector<16x192xf32>,
    return
  }
  func.func @transform_0(%arg0: i32) -> (i32, i32) {
    %c0_i32 = arith.constant 0 : i32
    %c0_i32_0 = arith.constant 0 : i32
    return %arg0, %c0_i32 : i32, i32
  }
  func.func @transform_1(%arg0: i32) -> (i32, i32) {
    %c0_i32 = arith.constant 0 : i32
    %c0_i32_0 = arith.constant 0 : i32
    %c0_i32_1 = arith.constant 0 : i32
    return %c0_i32, %c0_i32_0 : i32, i32
  }
  func.func @transform_2(%arg0: i32) -> (i32, i32) {
    %c0_i32 = arith.constant 0 : i32
    %c0_i32_0 = arith.constant 0 : i32
    %c0_i32_1 = arith.constant 0 : i32
    return %c0_i32, %c0_i32_0 : i32, i32
  }
  func.func @transform_3(%arg0: i32) -> (i32, i32) {
    %c0_i32 = arith.constant 0 : i32
    %c0_i32_0 = arith.constant 0 : i32
    return %arg0, %c0_i32 : i32, i32
  }
}

module attributes {stable_mosaic.version = 11 : i64} {
  func.func @_attn_ffn_kernel(%arg0: i32, %arg1: memref<16x64xf32, #tpu.memory_space<vmem>>, %arg2: memref<16x192xf32, #tpu.memory_space<vmem>>, %arg3: memref<16x192xf32, #tpu.memory_space<vmem>>, %arg4: memref<64x64xf32, #tpu.memory_space<vmem>>, %arg5: memref<1x64xf32, #tpu.memory_space<vmem>>, %arg6: memref<1x64xf32, #tpu.memory_space<vmem>>, %arg7: memref<1x64xf32, #tpu.memory_space<vmem>>, %arg8: memref<64x128xf32, #tpu.memory_space<vmem>>, %arg9: memref<1x128xf32, #tpu.memory_space<vmem>>, %arg10: memref<128x64xf32, #tpu.memory_space<vmem>>, %arg11: memref<1x64xf32, #tpu.memory_space<vmem>>, %arg12: memref<1x64xf32, #tpu.memory_space<vmem>>, %arg13: memref<1x64xf32, #tpu.memory_space<vmem>>, %arg14: memref<16x64xf32, #tpu.memory_space<vmem>>) attributes {dimension_semantics = [#tpu.dimension_semantics<parallel>], iteration_bounds = array<i64: 1>, scalar_prefetch = 0 : i64, scratch_operands = 0 : i64, tpu.core_type = #tpu.core_type<tc>, window_params = [{transform_indices = @transform_0, window_bounds = array<i64: 16, 64>}, {transform_indices = @transform_1, window_bounds = array<i64: 16, 192>}, {pipeline_mode = #tpu.pipeline_mode<synchronous>, transform_indices = @transform_2, window_bounds = array<i64: 16, 192>}, {pipeline_mode = #tpu.pipeline_mode<synchronous>, transform_indices = @transform_3, window_bounds = array<i64: 64, 64>}, {pipeline_mode = #tpu.pipeline_mode<synchronous>, transform_indices = @transform_4, window_bounds = array<i64: 1, 64>}, {pipeline_mode = #tpu.pipeline_mode<synchronous>, transform_indices = @transform_5, window_bounds = array<i64: 1, 64>}, {pipeline_mode = #tpu.pipeline_mode<synchronous>, transform_indices = @transform_6, window_bounds = array<i64: 1, 64>}, {pipeline_mode = #tpu.pipeline_mode<synchronous>, transform_indices = @transform_7, window_bounds = array<i64: 64, 128>}, {pipeline_mode = #tpu.pipeline_mode<synchronous>, transform_indices = @transform_8, window_bounds = array<i64: 1, 128>}, {pipeline_mode = #tpu.pipeline_mode<synchronous>, transform_indices = @transform_9, window_bounds = array<i64: 128, 64>}, {pipeline_mode = #tpu.pipeline_mode<synchronous>, transform_indices = @transform_10, window_bounds = array<i64: 1, 64>}, {pipeline_mode = #tpu.pipeline_mode<synchronous>, transform_indices = @transform_11, window_bounds = array<i64: 1, 64>}, {pipeline_mode = #tpu.pipeline_mode<synchronous>, transform_indices = @transform_12, window_bounds = array<i64: 1, 64>}, {transform_indices = @transform_13, window_bounds = array<i64: 16, 64>}]} {
    %c0 = arith.constant 0 : index
    %c0_0 = arith.constant 0 : index
    %0 = vector.load %arg1[%c0, %c0_0] : memref<16x64xf32, #tpu.memory_space<vmem>>, vector<16x64xf32>
    %c0_1 = arith.constant 0 : index
    %c0_2 = arith.constant 0 : index
    %1 = vector.load %arg3[%c0_1, %c0_2] : memref<16x192xf32, #tpu.memory_space<vmem>>, vector<16x192xf32>
    %c0_3 = arith.constant 0 : index
    %c0_4 = arith.constant 0 : index
    %2 = vector.load %arg2[%c0_3, %c0_4] : memref<16x192xf32, #tpu.memory_space<vmem>>, vector<16x192xf32>
    %3 = vector.extract_strided_slice %2 {offsets = [0, 0], sizes = [16, 64], strides = [1, 1]} : vector<16x192xf32> to vector<16x64xf32>
    %cst = arith.constant 0.353553385 : f32
    %4 = vector.broadcast %cst : f32 to vector<16x64xf32>
    %5 = arith.mulf %3, %4 : vector<16x64xf32>
    %6 = vector.extract_strided_slice %1 {offsets = [0, 64], sizes = [16, 64], strides = [1, 1]} : vector<16x192xf32> to vector<16x64xf32>
    %7 = arith.truncf %6 : vector<16x64xf32> to vector<16x64xbf16>
    %8 = vector.extract_strided_slice %1 {offsets = [0, 128], sizes = [16, 64], strides = [1, 1]} : vector<16x192xf32> to vector<16x64xf32>
    %9 = tpu.iota {dimensions = array<i32: 1>} : vector<1x64xi32>
    %10 = tpu.iota {dimensions = array<i32: 1>} : vector<1x16xi32>
    %c16_i32 = arith.constant 16 : i32
    %11 = vector.broadcast %c16_i32 : i32 to vector<1x16xi32>
    %12 = arith.cmpi slt, %10, %11 : vector<1x16xi32>
    %cst_5 = arith.constant 0.000000e+00 : f32
    %13 = vector.broadcast %cst_5 : f32 to vector<16x64xf32>
    %c0_i32 = arith.constant 0 : i32
    %14 = vector.broadcast %c0_i32 : i32 to vector<1x64xi32>
    %15 = arith.cmpi sge, %9, %14 : vector<1x64xi32>
    %c8_i32 = arith.constant 8 : i32
    %16 = vector.broadcast %c8_i32 : i32 to vector<1x64xi32>
    %17 = arith.cmpi slt, %9, %16 : vector<1x64xi32>
    %18 = arith.andi %15, %17 : vector<1x64xi1>
    %cst_6 = arith.constant 0.000000e+00 : f32
    %19 = vector.shape_cast %18 : vector<1x64xi1> to vector<1x64xi1>
    %20 = vector.broadcast %19 : vector<1x64xi1> to vector<16x64xi1>
    %21 = vector.broadcast %cst_6 : f32 to vector<16x64xf32>
    %22 = arith.select %20, %5, %21 : vector<16x64xi1>, vector<16x64xf32>
    %23 = arith.truncf %22 : vector<16x64xf32> to vector<16x64xbf16>
    %cst_7 = arith.constant 0.000000e+00 : f32
    %24 = vector.shape_cast %18 : vector<1x64xi1> to vector<1x64xi1>
    %25 = vector.broadcast %24 : vector<1x64xi1> to vector<16x64xi1>
    %26 = vector.broadcast %cst_7 : f32 to vector<16x64xf32>
    %27 = arith.select %25, %8, %26 : vector<16x64xi1>, vector<16x64xf32>
    %28 = arith.truncf %27 : vector<16x64xf32> to vector<16x64xbf16>
    %cst_8 = arith.constant dense<0.000000e+00> : vector<16x16xf32>
    %29 = tpu.matmul %23, %7, %cst_8 {dimension_numbers = #tpu.dot_dimension_numbers<[1], [1], [0], [0], [0, 0, 1, 0], [], []>} : vector<16x64xbf16>, vector<16x64xbf16>, vector<16x16xf32> -> vector<16x16xf32>
    %cst_9 = arith.constant -1.000000e+30 : f32
    %30 = vector.shape_cast %12 : vector<1x16xi1> to vector<1x16xi1>
    %31 = vector.broadcast %30 : vector<1x16xi1> to vector<16x16xi1>
    %32 = vector.broadcast %cst_9 : f32 to vector<16x16xf32>
    %33 = arith.select %31, %29, %32 : vector<16x16xi1>, vector<16x16xf32>
    %cst_10 = arith.constant dense<0xFF800000> : vector<16xf32>
    %34 = vector.multi_reduction <maximumf>, %33, %cst_10 [1] : vector<16x16xf32> to vector<16xf32>
    %35 = vector.shape_cast %34 : vector<16xf32> to vector<16x1xf32>
    %36 = vector.broadcast %35 : vector<16x1xf32> to vector<16x16xf32>
    %37 = arith.subf %33, %36 : vector<16x16xf32>
    %38 = math.exp %37 : vector<16x16xf32>
    %cst_11 = arith.constant dense<0.000000e+00> : vector<16xf32>
    %39 = vector.multi_reduction <add>, %38, %cst_11 [1] : vector<16x16xf32> to vector<16xf32>
    %40 = vector.shape_cast %39 : vector<16xf32> to vector<16x1xf32>
    %41 = vector.broadcast %40 : vector<16x1xf32> to vector<16x16xf32>
    %42 = arith.divf %38, %41 : vector<16x16xf32>
    %43 = arith.truncf %42 : vector<16x16xf32> to vector<16x16xbf16>
    %cst_12 = arith.constant dense<0.000000e+00> : vector<16x64xf32>
    %44 = tpu.matmul %43, %28, %cst_12 {dimension_numbers = #tpu.dot_dimension_numbers<[1], [0], [0], [1], [0, 0, 1, 1], [], []>} : vector<16x16xbf16>, vector<16x64xbf16>, vector<16x64xf32> -> vector<16x64xf32>
    %45 = arith.addf %13, %44 : vector<16x64xf32>
    %c8_i32_13 = arith.constant 8 : i32
    %46 = vector.broadcast %c8_i32_13 : i32 to vector<1x64xi32>
    %47 = arith.cmpi sge, %9, %46 : vector<1x64xi32>
    %c16_i32_14 = arith.constant 16 : i32
    %48 = vector.broadcast %c16_i32_14 : i32 to vector<1x64xi32>
    %49 = arith.cmpi slt, %9, %48 : vector<1x64xi32>
    %50 = arith.andi %47, %49 : vector<1x64xi1>
    %cst_15 = arith.constant 0.000000e+00 : f32
    %51 = vector.shape_cast %50 : vector<1x64xi1> to vector<1x64xi1>
    %52 = vector.broadcast %51 : vector<1x64xi1> to vector<16x64xi1>
    %53 = vector.broadcast %cst_15 : f32 to vector<16x64xf32>
    %54 = arith.select %52, %5, %53 : vector<16x64xi1>, vector<16x64xf32>
    %55 = arith.truncf %54 : vector<16x64xf32> to vector<16x64xbf16>
    %cst_16 = arith.constant 0.000000e+00 : f32
    %56 = vector.shape_cast %50 : vector<1x64xi1> to vector<1x64xi1>
    %57 = vector.broadcast %56 : vector<1x64xi1> to vector<16x64xi1>
    %58 = vector.broadcast %cst_16 : f32 to vector<16x64xf32>
    %59 = arith.select %57, %8, %58 : vector<16x64xi1>, vector<16x64xf32>
    %60 = arith.truncf %59 : vector<16x64xf32> to vector<16x64xbf16>
    %cst_17 = arith.constant dense<0.000000e+00> : vector<16x16xf32>
    %61 = tpu.matmul %55, %7, %cst_17 {dimension_numbers = #tpu.dot_dimension_numbers<[1], [1], [0], [0], [0, 0, 1, 0], [], []>} : vector<16x64xbf16>, vector<16x64xbf16>, vector<16x16xf32> -> vector<16x16xf32>
    %cst_18 = arith.constant -1.000000e+30 : f32
    %62 = vector.shape_cast %12 : vector<1x16xi1> to vector<1x16xi1>
    %63 = vector.broadcast %62 : vector<1x16xi1> to vector<16x16xi1>
    %64 = vector.broadcast %cst_18 : f32 to vector<16x16xf32>
    %65 = arith.select %63, %61, %64 : vector<16x16xi1>, vector<16x16xf32>
    %cst_19 = arith.constant dense<0xFF800000> : vector<16xf32>
    %66 = vector.multi_reduction <maximumf>, %65, %cst_19 [1] : vector<16x16xf32> to vector<16xf32>
    %67 = vector.shape_cast %66 : vector<16xf32> to vector<16x1xf32>
    %68 = vector.broadcast %67 : vector<16x1xf32> to vector<16x16xf32>
    %69 = arith.subf %65, %68 : vector<16x16xf32>
    %70 = math.exp %69 : vector<16x16xf32>
    %cst_20 = arith.constant dense<0.000000e+00> : vector<16xf32>
    %71 = vector.multi_reduction <add>, %70, %cst_20 [1] : vector<16x16xf32> to vector<16xf32>
    %72 = vector.shape_cast %71 : vector<16xf32> to vector<16x1xf32>
    %73 = vector.broadcast %72 : vector<16x1xf32> to vector<16x16xf32>
    %74 = arith.divf %70, %73 : vector<16x16xf32>
    %75 = arith.truncf %74 : vector<16x16xf32> to vector<16x16xbf16>
    %cst_21 = arith.constant dense<0.000000e+00> : vector<16x64xf32>
    %76 = tpu.matmul %75, %60, %cst_21 {dimension_numbers = #tpu.dot_dimension_numbers<[1], [0], [0], [1], [0, 0, 1, 1], [], []>} : vector<16x16xbf16>, vector<16x64xbf16>, vector<16x64xf32> -> vector<16x64xf32>
    %77 = arith.addf %45, %76 : vector<16x64xf32>
    %c16_i32_22 = arith.constant 16 : i32
    %78 = vector.broadcast %c16_i32_22 : i32 to vector<1x64xi32>
    %79 = arith.cmpi sge, %9, %78 : vector<1x64xi32>
    %c24_i32 = arith.constant 24 : i32
    %80 = vector.broadcast %c24_i32 : i32 to vector<1x64xi32>
    %81 = arith.cmpi slt, %9, %80 : vector<1x64xi32>
    %82 = arith.andi %79, %81 : vector<1x64xi1>
    %cst_23 = arith.constant 0.000000e+00 : f32
    %83 = vector.shape_cast %82 : vector<1x64xi1> to vector<1x64xi1>
    %84 = vector.broadcast %83 : vector<1x64xi1> to vector<16x64xi1>
    %85 = vector.broadcast %cst_23 : f32 to vector<16x64xf32>
    %86 = arith.select %84, %5, %85 : vector<16x64xi1>, vector<16x64xf32>
    %87 = arith.truncf %86 : vector<16x64xf32> to vector<16x64xbf16>
    %cst_24 = arith.constant 0.000000e+00 : f32
    %88 = vector.shape_cast %82 : vector<1x64xi1> to vector<1x64xi1>
    %89 = vector.broadcast %88 : vector<1x64xi1> to vector<16x64xi1>
    %90 = vector.broadcast %cst_24 : f32 to vector<16x64xf32>
    %91 = arith.select %89, %8, %90 : vector<16x64xi1>, vector<16x64xf32>
    %92 = arith.truncf %91 : vector<16x64xf32> to vector<16x64xbf16>
    %cst_25 = arith.constant dense<0.000000e+00> : vector<16x16xf32>
    %93 = tpu.matmul %87, %7, %cst_25 {dimension_numbers = #tpu.dot_dimension_numbers<[1], [1], [0], [0], [0, 0, 1, 0], [], []>} : vector<16x64xbf16>, vector<16x64xbf16>, vector<16x16xf32> -> vector<16x16xf32>
    %cst_26 = arith.constant -1.000000e+30 : f32
    %94 = vector.shape_cast %12 : vector<1x16xi1> to vector<1x16xi1>
    %95 = vector.broadcast %94 : vector<1x16xi1> to vector<16x16xi1>
    %96 = vector.broadcast %cst_26 : f32 to vector<16x16xf32>
    %97 = arith.select %95, %93, %96 : vector<16x16xi1>, vector<16x16xf32>
    %cst_27 = arith.constant dense<0xFF800000> : vector<16xf32>
    %98 = vector.multi_reduction <maximumf>, %97, %cst_27 [1] : vector<16x16xf32> to vector<16xf32>
    %99 = vector.shape_cast %98 : vector<16xf32> to vector<16x1xf32>
    %100 = vector.broadcast %99 : vector<16x1xf32> to vector<16x16xf32>
    %101 = arith.subf %97, %100 : vector<16x16xf32>
    %102 = math.exp %101 : vector<16x16xf32>
    %cst_28 = arith.constant dense<0.000000e+00> : vector<16xf32>
    %103 = vector.multi_reduction <add>, %102, %cst_28 [1] : vector<16x16xf32> to vector<16xf32>
    %104 = vector.shape_cast %103 : vector<16xf32> to vector<16x1xf32>
    %105 = vector.broadcast %104 : vector<16x1xf32> to vector<16x16xf32>
    %106 = arith.divf %102, %105 : vector<16x16xf32>
    %107 = arith.truncf %106 : vector<16x16xf32> to vector<16x16xbf16>
    %cst_29 = arith.constant dense<0.000000e+00> : vector<16x64xf32>
    %108 = tpu.matmul %107, %92, %cst_29 {dimension_numbers = #tpu.dot_dimension_numbers<[1], [0], [0], [1], [0, 0, 1, 1], [], []>} : vector<16x16xbf16>, vector<16x64xbf16>, vector<16x64xf32> -> vector<16x64xf32>
    %109 = arith.addf %77, %108 : vector<16x64xf32>
    %c24_i32_30 = arith.constant 24 : i32
    %110 = vector.broadcast %c24_i32_30 : i32 to vector<1x64xi32>
    %111 = arith.cmpi sge, %9, %110 : vector<1x64xi32>
    %c32_i32 = arith.constant 32 : i32
    %112 = vector.broadcast %c32_i32 : i32 to vector<1x64xi32>
    %113 = arith.cmpi slt, %9, %112 : vector<1x64xi32>
    %114 = arith.andi %111, %113 : vector<1x64xi1>
    %cst_31 = arith.constant 0.000000e+00 : f32
    %115 = vector.shape_cast %114 : vector<1x64xi1> to vector<1x64xi1>
    %116 = vector.broadcast %115 : vector<1x64xi1> to vector<16x64xi1>
    %117 = vector.broadcast %cst_31 : f32 to vector<16x64xf32>
    %118 = arith.select %116, %5, %117 : vector<16x64xi1>, vector<16x64xf32>
    %119 = arith.truncf %118 : vector<16x64xf32> to vector<16x64xbf16>
    %cst_32 = arith.constant 0.000000e+00 : f32
    %120 = vector.shape_cast %114 : vector<1x64xi1> to vector<1x64xi1>
    %121 = vector.broadcast %120 : vector<1x64xi1> to vector<16x64xi1>
    %122 = vector.broadcast %cst_32 : f32 to vector<16x64xf32>
    %123 = arith.select %121, %8, %122 : vector<16x64xi1>, vector<16x64xf32>
    %124 = arith.truncf %123 : vector<16x64xf32> to vector<16x64xbf16>
    %cst_33 = arith.constant dense<0.000000e+00> : vector<16x16xf32>
    %125 = tpu.matmul %119, %7, %cst_33 {dimension_numbers = #tpu.dot_dimension_numbers<[1], [1], [0], [0], [0, 0, 1, 0], [], []>} : vector<16x64xbf16>, vector<16x64xbf16>, vector<16x16xf32> -> vector<16x16xf32>
    %cst_34 = arith.constant -1.000000e+30 : f32
    %126 = vector.shape_cast %12 : vector<1x16xi1> to vector<1x16xi1>
    %127 = vector.broadcast %126 : vector<1x16xi1> to vector<16x16xi1>
    %128 = vector.broadcast %cst_34 : f32 to vector<16x16xf32>
    %129 = arith.select %127, %125, %128 : vector<16x16xi1>, vector<16x16xf32>
    %cst_35 = arith.constant dense<0xFF800000> : vector<16xf32>
    %130 = vector.multi_reduction <maximumf>, %129, %cst_35 [1] : vector<16x16xf32> to vector<16xf32>
    %131 = vector.shape_cast %130 : vector<16xf32> to vector<16x1xf32>
    %132 = vector.broadcast %131 : vector<16x1xf32> to vector<16x16xf32>
    %133 = arith.subf %129, %132 : vector<16x16xf32>
    %134 = math.exp %133 : vector<16x16xf32>
    %cst_36 = arith.constant dense<0.000000e+00> : vector<16xf32>
    %135 = vector.multi_reduction <add>, %134, %cst_36 [1] : vector<16x16xf32> to vector<16xf32>
    %136 = vector.shape_cast %135 : vector<16xf32> to vector<16x1xf32>
    %137 = vector.broadcast %136 : vector<16x1xf32> to vector<16x16xf32>
    %138 = arith.divf %134, %137 : vector<16x16xf32>
    %139 = arith.truncf %138 : vector<16x16xf32> to vector<16x16xbf16>
    %cst_37 = arith.constant dense<0.000000e+00> : vector<16x64xf32>
    %140 = tpu.matmul %139, %124, %cst_37 {dimension_numbers = #tpu.dot_dimension_numbers<[1], [0], [0], [1], [0, 0, 1, 1], [], []>} : vector<16x16xbf16>, vector<16x64xbf16>, vector<16x64xf32> -> vector<16x64xf32>
    %141 = arith.addf %109, %140 : vector<16x64xf32>
    %c32_i32_38 = arith.constant 32 : i32
    %142 = vector.broadcast %c32_i32_38 : i32 to vector<1x64xi32>
    %143 = arith.cmpi sge, %9, %142 : vector<1x64xi32>
    %c40_i32 = arith.constant 40 : i32
    %144 = vector.broadcast %c40_i32 : i32 to vector<1x64xi32>
    %145 = arith.cmpi slt, %9, %144 : vector<1x64xi32>
    %146 = arith.andi %143, %145 : vector<1x64xi1>
    %cst_39 = arith.constant 0.000000e+00 : f32
    %147 = vector.shape_cast %146 : vector<1x64xi1> to vector<1x64xi1>
    %148 = vector.broadcast %147 : vector<1x64xi1> to vector<16x64xi1>
    %149 = vector.broadcast %cst_39 : f32 to vector<16x64xf32>
    %150 = arith.select %148, %5, %149 : vector<16x64xi1>, vector<16x64xf32>
    %151 = arith.truncf %150 : vector<16x64xf32> to vector<16x64xbf16>
    %cst_40 = arith.constant 0.000000e+00 : f32
    %152 = vector.shape_cast %146 : vector<1x64xi1> to vector<1x64xi1>
    %153 = vector.broadcast %152 : vector<1x64xi1> to vector<16x64xi1>
    %154 = vector.broadcast %cst_40 : f32 to vector<16x64xf32>
    %155 = arith.select %153, %8, %154 : vector<16x64xi1>, vector<16x64xf32>
    %156 = arith.truncf %155 : vector<16x64xf32> to vector<16x64xbf16>
    %cst_41 = arith.constant dense<0.000000e+00> : vector<16x16xf32>
    %157 = tpu.matmul %151, %7, %cst_41 {dimension_numbers = #tpu.dot_dimension_numbers<[1], [1], [0], [0], [0, 0, 1, 0], [], []>} : vector<16x64xbf16>, vector<16x64xbf16>, vector<16x16xf32> -> vector<16x16xf32>
    %cst_42 = arith.constant -1.000000e+30 : f32
    %158 = vector.shape_cast %12 : vector<1x16xi1> to vector<1x16xi1>
    %159 = vector.broadcast %158 : vector<1x16xi1> to vector<16x16xi1>
    %160 = vector.broadcast %cst_42 : f32 to vector<16x16xf32>
    %161 = arith.select %159, %157, %160 : vector<16x16xi1>, vector<16x16xf32>
    %cst_43 = arith.constant dense<0xFF800000> : vector<16xf32>
    %162 = vector.multi_reduction <maximumf>, %161, %cst_43 [1] : vector<16x16xf32> to vector<16xf32>
    %163 = vector.shape_cast %162 : vector<16xf32> to vector<16x1xf32>
    %164 = vector.broadcast %163 : vector<16x1xf32> to vector<16x16xf32>
    %165 = arith.subf %161, %164 : vector<16x16xf32>
    %166 = math.exp %165 : vector<16x16xf32>
    %cst_44 = arith.constant dense<0.000000e+00> : vector<16xf32>
    %167 = vector.multi_reduction <add>, %166, %cst_44 [1] : vector<16x16xf32> to vector<16xf32>
    %168 = vector.shape_cast %167 : vector<16xf32> to vector<16x1xf32>
    %169 = vector.broadcast %168 : vector<16x1xf32> to vector<16x16xf32>
    %170 = arith.divf %166, %169 : vector<16x16xf32>
    %171 = arith.truncf %170 : vector<16x16xf32> to vector<16x16xbf16>
    %cst_45 = arith.constant dense<0.000000e+00> : vector<16x64xf32>
    %172 = tpu.matmul %171, %156, %cst_45 {dimension_numbers = #tpu.dot_dimension_numbers<[1], [0], [0], [1], [0, 0, 1, 1], [], []>} : vector<16x16xbf16>, vector<16x64xbf16>, vector<16x64xf32> -> vector<16x64xf32>
    %173 = arith.addf %141, %172 : vector<16x64xf32>
    %c40_i32_46 = arith.constant 40 : i32
    %174 = vector.broadcast %c40_i32_46 : i32 to vector<1x64xi32>
    %175 = arith.cmpi sge, %9, %174 : vector<1x64xi32>
    %c48_i32 = arith.constant 48 : i32
    %176 = vector.broadcast %c48_i32 : i32 to vector<1x64xi32>
    %177 = arith.cmpi slt, %9, %176 : vector<1x64xi32>
    %178 = arith.andi %175, %177 : vector<1x64xi1>
    %cst_47 = arith.constant 0.000000e+00 : f32
    %179 = vector.shape_cast %178 : vector<1x64xi1> to vector<1x64xi1>
    %180 = vector.broadcast %179 : vector<1x64xi1> to vector<16x64xi1>
    %181 = vector.broadcast %cst_47 : f32 to vector<16x64xf32>
    %182 = arith.select %180, %5, %181 : vector<16x64xi1>, vector<16x64xf32>
    %183 = arith.truncf %182 : vector<16x64xf32> to vector<16x64xbf16>
    %cst_48 = arith.constant 0.000000e+00 : f32
    %184 = vector.shape_cast %178 : vector<1x64xi1> to vector<1x64xi1>
    %185 = vector.broadcast %184 : vector<1x64xi1> to vector<16x64xi1>
    %186 = vector.broadcast %cst_48 : f32 to vector<16x64xf32>
    %187 = arith.select %185, %8, %186 : vector<16x64xi1>, vector<16x64xf32>
    %188 = arith.truncf %187 : vector<16x64xf32> to vector<16x64xbf16>
    %cst_49 = arith.constant dense<0.000000e+00> : vector<16x16xf32>
    %189 = tpu.matmul %183, %7, %cst_49 {dimension_numbers = #tpu.dot_dimension_numbers<[1], [1], [0], [0], [0, 0, 1, 0], [], []>} : vector<16x64xbf16>, vector<16x64xbf16>, vector<16x16xf32> -> vector<16x16xf32>
    %cst_50 = arith.constant -1.000000e+30 : f32
    %190 = vector.shape_cast %12 : vector<1x16xi1> to vector<1x16xi1>
    %191 = vector.broadcast %190 : vector<1x16xi1> to vector<16x16xi1>
    %192 = vector.broadcast %cst_50 : f32 to vector<16x16xf32>
    %193 = arith.select %191, %189, %192 : vector<16x16xi1>, vector<16x16xf32>
    %cst_51 = arith.constant dense<0xFF800000> : vector<16xf32>
    %194 = vector.multi_reduction <maximumf>, %193, %cst_51 [1] : vector<16x16xf32> to vector<16xf32>
    %195 = vector.shape_cast %194 : vector<16xf32> to vector<16x1xf32>
    %196 = vector.broadcast %195 : vector<16x1xf32> to vector<16x16xf32>
    %197 = arith.subf %193, %196 : vector<16x16xf32>
    %198 = math.exp %197 : vector<16x16xf32>
    %cst_52 = arith.constant dense<0.000000e+00> : vector<16xf32>
    %199 = vector.multi_reduction <add>, %198, %cst_52 [1] : vector<16x16xf32> to vector<16xf32>
    %200 = vector.shape_cast %199 : vector<16xf32> to vector<16x1xf32>
    %201 = vector.broadcast %200 : vector<16x1xf32> to vector<16x16xf32>
    %202 = arith.divf %198, %201 : vector<16x16xf32>
    %203 = arith.truncf %202 : vector<16x16xf32> to vector<16x16xbf16>
    %cst_53 = arith.constant dense<0.000000e+00> : vector<16x64xf32>
    %204 = tpu.matmul %203, %188, %cst_53 {dimension_numbers = #tpu.dot_dimension_numbers<[1], [0], [0], [1], [0, 0, 1, 1], [], []>} : vector<16x16xbf16>, vector<16x64xbf16>, vector<16x64xf32> -> vector<16x64xf32>
    %205 = arith.addf %173, %204 : vector<16x64xf32>
    %c48_i32_54 = arith.constant 48 : i32
    %206 = vector.broadcast %c48_i32_54 : i32 to vector<1x64xi32>
    %207 = arith.cmpi sge, %9, %206 : vector<1x64xi32>
    %c56_i32 = arith.constant 56 : i32
    %208 = vector.broadcast %c56_i32 : i32 to vector<1x64xi32>
    %209 = arith.cmpi slt, %9, %208 : vector<1x64xi32>
    %210 = arith.andi %207, %209 : vector<1x64xi1>
    %cst_55 = arith.constant 0.000000e+00 : f32
    %211 = vector.shape_cast %210 : vector<1x64xi1> to vector<1x64xi1>
    %212 = vector.broadcast %211 : vector<1x64xi1> to vector<16x64xi1>
    %213 = vector.broadcast %cst_55 : f32 to vector<16x64xf32>
    %214 = arith.select %212, %5, %213 : vector<16x64xi1>, vector<16x64xf32>
    %215 = arith.truncf %214 : vector<16x64xf32> to vector<16x64xbf16>
    %cst_56 = arith.constant 0.000000e+00 : f32
    %216 = vector.shape_cast %210 : vector<1x64xi1> to vector<1x64xi1>
    %217 = vector.broadcast %216 : vector<1x64xi1> to vector<16x64xi1>
    %218 = vector.broadcast %cst_56 : f32 to vector<16x64xf32>
    %219 = arith.select %217, %8, %218 : vector<16x64xi1>, vector<16x64xf32>
    %220 = arith.truncf %219 : vector<16x64xf32> to vector<16x64xbf16>
    %cst_57 = arith.constant dense<0.000000e+00> : vector<16x16xf32>
    %221 = tpu.matmul %215, %7, %cst_57 {dimension_numbers = #tpu.dot_dimension_numbers<[1], [1], [0], [0], [0, 0, 1, 0], [], []>} : vector<16x64xbf16>, vector<16x64xbf16>, vector<16x16xf32> -> vector<16x16xf32>
    %cst_58 = arith.constant -1.000000e+30 : f32
    %222 = vector.shape_cast %12 : vector<1x16xi1> to vector<1x16xi1>
    %223 = vector.broadcast %222 : vector<1x16xi1> to vector<16x16xi1>
    %224 = vector.broadcast %cst_58 : f32 to vector<16x16xf32>
    %225 = arith.select %223, %221, %224 : vector<16x16xi1>, vector<16x16xf32>
    %cst_59 = arith.constant dense<0xFF800000> : vector<16xf32>
    %226 = vector.multi_reduction <maximumf>, %225, %cst_59 [1] : vector<16x16xf32> to vector<16xf32>
    %227 = vector.shape_cast %226 : vector<16xf32> to vector<16x1xf32>
    %228 = vector.broadcast %227 : vector<16x1xf32> to vector<16x16xf32>
    %229 = arith.subf %225, %228 : vector<16x16xf32>
    %230 = math.exp %229 : vector<16x16xf32>
    %cst_60 = arith.constant dense<0.000000e+00> : vector<16xf32>
    %231 = vector.multi_reduction <add>, %230, %cst_60 [1] : vector<16x16xf32> to vector<16xf32>
    %232 = vector.shape_cast %231 : vector<16xf32> to vector<16x1xf32>
    %233 = vector.broadcast %232 : vector<16x1xf32> to vector<16x16xf32>
    %234 = arith.divf %230, %233 : vector<16x16xf32>
    %235 = arith.truncf %234 : vector<16x16xf32> to vector<16x16xbf16>
    %cst_61 = arith.constant dense<0.000000e+00> : vector<16x64xf32>
    %236 = tpu.matmul %235, %220, %cst_61 {dimension_numbers = #tpu.dot_dimension_numbers<[1], [0], [0], [1], [0, 0, 1, 1], [], []>} : vector<16x16xbf16>, vector<16x64xbf16>, vector<16x64xf32> -> vector<16x64xf32>
    %237 = arith.addf %205, %236 : vector<16x64xf32>
    %c56_i32_62 = arith.constant 56 : i32
    %238 = vector.broadcast %c56_i32_62 : i32 to vector<1x64xi32>
    %239 = arith.cmpi sge, %9, %238 : vector<1x64xi32>
    %c64_i32 = arith.constant 64 : i32
    %240 = vector.broadcast %c64_i32 : i32 to vector<1x64xi32>
    %241 = arith.cmpi slt, %9, %240 : vector<1x64xi32>
    %242 = arith.andi %239, %241 : vector<1x64xi1>
    %cst_63 = arith.constant 0.000000e+00 : f32
    %243 = vector.shape_cast %242 : vector<1x64xi1> to vector<1x64xi1>
    %244 = vector.broadcast %243 : vector<1x64xi1> to vector<16x64xi1>
    %245 = vector.broadcast %cst_63 : f32 to vector<16x64xf32>
    %246 = arith.select %244, %5, %245 : vector<16x64xi1>, vector<16x64xf32>
    %247 = arith.truncf %246 : vector<16x64xf32> to vector<16x64xbf16>
    %cst_64 = arith.constant 0.000000e+00 : f32
    %248 = vector.shape_cast %242 : vector<1x64xi1> to vector<1x64xi1>
    %249 = vector.broadcast %248 : vector<1x64xi1> to vector<16x64xi1>
    %250 = vector.broadcast %cst_64 : f32 to vector<16x64xf32>
    %251 = arith.select %249, %8, %250 : vector<16x64xi1>, vector<16x64xf32>
    %252 = arith.truncf %251 : vector<16x64xf32> to vector<16x64xbf16>
    %cst_65 = arith.constant dense<0.000000e+00> : vector<16x16xf32>
    %253 = tpu.matmul %247, %7, %cst_65 {dimension_numbers = #tpu.dot_dimension_numbers<[1], [1], [0], [0], [0, 0, 1, 0], [], []>} : vector<16x64xbf16>, vector<16x64xbf16>, vector<16x16xf32> -> vector<16x16xf32>
    %cst_66 = arith.constant -1.000000e+30 : f32
    %254 = vector.shape_cast %12 : vector<1x16xi1> to vector<1x16xi1>
    %255 = vector.broadcast %254 : vector<1x16xi1> to vector<16x16xi1>
    %256 = vector.broadcast %cst_66 : f32 to vector<16x16xf32>
    %257 = arith.select %255, %253, %256 : vector<16x16xi1>, vector<16x16xf32>
    %cst_67 = arith.constant dense<0xFF800000> : vector<16xf32>
    %258 = vector.multi_reduction <maximumf>, %257, %cst_67 [1] : vector<16x16xf32> to vector<16xf32>
    %259 = vector.shape_cast %258 : vector<16xf32> to vector<16x1xf32>
    %260 = vector.broadcast %259 : vector<16x1xf32> to vector<16x16xf32>
    %261 = arith.subf %257, %260 : vector<16x16xf32>
    %262 = math.exp %261 : vector<16x16xf32>
    %cst_68 = arith.constant dense<0.000000e+00> : vector<16xf32>
    %263 = vector.multi_reduction <add>, %262, %cst_68 [1] : vector<16x16xf32> to vector<16xf32>
    %264 = vector.shape_cast %263 : vector<16xf32> to vector<16x1xf32>
    %265 = vector.broadcast %264 : vector<16x1xf32> to vector<16x16xf32>
    %266 = arith.divf %262, %265 : vector<16x16xf32>
    %267 = arith.truncf %266 : vector<16x16xf32> to vector<16x16xbf16>
    %cst_69 = arith.constant dense<0.000000e+00> : vector<16x64xf32>
    %268 = tpu.matmul %267, %252, %cst_69 {dimension_numbers = #tpu.dot_dimension_numbers<[1], [0], [0], [1], [0, 0, 1, 1], [], []>} : vector<16x16xbf16>, vector<16x64xbf16>, vector<16x64xf32> -> vector<16x64xf32>
    %269 = arith.addf %237, %268 : vector<16x64xf32>
    %c0_70 = arith.constant 0 : index
    %c0_71 = arith.constant 0 : index
    %270 = vector.load %arg4[%c0_70, %c0_71] : memref<64x64xf32, #tpu.memory_space<vmem>>, vector<64x64xf32>
    %271 = arith.truncf %269 : vector<16x64xf32> to vector<16x64xbf16>
    %272 = arith.truncf %270 : vector<64x64xf32> to vector<64x64xbf16>
    %cst_72 = arith.constant dense<0.000000e+00> : vector<16x64xf32>
    %273 = tpu.matmul %271, %272, %cst_72 {dimension_numbers = #tpu.dot_dimension_numbers<[1], [0], [0], [1], [0, 0, 1, 1], [], []>} : vector<16x64xbf16>, vector<64x64xbf16>, vector<16x64xf32> -> vector<16x64xf32>
    %274 = arith.addf %0, %273 : vector<16x64xf32>
    %c0_73 = arith.constant 0 : index
    %c0_74 = arith.constant 0 : index
    %275 = vector.load %arg5[%c0_73, %c0_74] : memref<1x64xf32, #tpu.memory_space<vmem>>, vector<1x64xf32>
    %276 = vector.broadcast %275 : vector<1x64xf32> to vector<16x64xf32>
    %277 = arith.addf %274, %276 : vector<16x64xf32>
    %c0_75 = arith.constant 0 : index
    %c0_76 = arith.constant 0 : index
    %278 = vector.load %arg6[%c0_75, %c0_76] : memref<1x64xf32, #tpu.memory_space<vmem>>, vector<1x64xf32>
    %c0_77 = arith.constant 0 : index
    %c0_78 = arith.constant 0 : index
    %279 = vector.load %arg7[%c0_77, %c0_78] : memref<1x64xf32, #tpu.memory_space<vmem>>, vector<1x64xf32>
    %cst_79 = arith.constant dense<0.000000e+00> : vector<16xf32>
    %280 = vector.multi_reduction <add>, %277, %cst_79 [1] : vector<16x64xf32> to vector<16xf32>
    %281 = vector.shape_cast %280 : vector<16xf32> to vector<16x1xf32>
    %cst_80 = arith.constant 6.400000e+01 : f32
    %282 = vector.broadcast %cst_80 : f32 to vector<16x1xf32>
    %283 = arith.divf %281, %282 : vector<16x1xf32>
    %284 = vector.broadcast %283 : vector<16x1xf32> to vector<16x64xf32>
    %285 = arith.subf %277, %284 : vector<16x64xf32>
    %286 = arith.mulf %285, %285 : vector<16x64xf32>
    %cst_81 = arith.constant dense<0.000000e+00> : vector<16xf32>
    %287 = vector.multi_reduction <add>, %286, %cst_81 [1] : vector<16x64xf32> to vector<16xf32>
    %288 = vector.shape_cast %287 : vector<16xf32> to vector<16x1xf32>
    %cst_82 = arith.constant 6.400000e+01 : f32
    %289 = vector.broadcast %cst_82 : f32 to vector<16x1xf32>
    %290 = arith.divf %288, %289 : vector<16x1xf32>
    %291 = vector.broadcast %283 : vector<16x1xf32> to vector<16x64xf32>
    %292 = arith.subf %277, %291 : vector<16x64xf32>
    %cst_83 = arith.constant 9.99999974E-6 : f32
    %293 = vector.broadcast %cst_83 : f32 to vector<16x1xf32>
    %294 = arith.addf %290, %293 : vector<16x1xf32>
    %295 = math.rsqrt %294 : vector<16x1xf32>
    %296 = vector.broadcast %295 : vector<16x1xf32> to vector<16x64xf32>
    %297 = arith.mulf %292, %296 : vector<16x64xf32>
    %298 = vector.broadcast %278 : vector<1x64xf32> to vector<16x64xf32>
    %299 = arith.mulf %297, %298 : vector<16x64xf32>
    %300 = vector.broadcast %279 : vector<1x64xf32> to vector<16x64xf32>
    %301 = arith.addf %299, %300 : vector<16x64xf32>
    %c0_84 = arith.constant 0 : index
    %c0_85 = arith.constant 0 : index
    %302 = vector.load %arg8[%c0_84, %c0_85] : memref<64x128xf32, #tpu.memory_space<vmem>>, vector<64x128xf32>
    %303 = arith.truncf %301 : vector<16x64xf32> to vector<16x64xbf16>
    %304 = arith.truncf %302 : vector<64x128xf32> to vector<64x128xbf16>
    %cst_86 = arith.constant dense<0.000000e+00> : vector<16x128xf32>
    %305 = tpu.matmul %303, %304, %cst_86 {dimension_numbers = #tpu.dot_dimension_numbers<[1], [0], [0], [1], [0, 0, 1, 1], [], []>} : vector<16x64xbf16>, vector<64x128xbf16>, vector<16x128xf32> -> vector<16x128xf32>
    %c0_87 = arith.constant 0 : index
    %c0_88 = arith.constant 0 : index
    %306 = vector.load %arg9[%c0_87, %c0_88] : memref<1x128xf32, #tpu.memory_space<vmem>>, vector<1x128xf32>
    %307 = vector.broadcast %306 : vector<1x128xf32> to vector<16x128xf32>
    %308 = arith.addf %305, %307 : vector<16x128xf32>
    %cst_89 = arith.constant 0.000000e+00 : f32
    %309 = vector.broadcast %cst_89 : f32 to vector<16x128xf32>
    %310 = arith.maximumf %308, %309 : vector<16x128xf32>
    %c0_90 = arith.constant 0 : index
    %c0_91 = arith.constant 0 : index
    %311 = vector.load %arg10[%c0_90, %c0_91] : memref<128x64xf32, #tpu.memory_space<vmem>>, vector<128x64xf32>
    %312 = arith.truncf %310 : vector<16x128xf32> to vector<16x128xbf16>
    %313 = arith.truncf %311 : vector<128x64xf32> to vector<128x64xbf16>
    %cst_92 = arith.constant dense<0.000000e+00> : vector<16x64xf32>
    %314 = tpu.matmul %312, %313, %cst_92 {dimension_numbers = #tpu.dot_dimension_numbers<[1], [0], [0], [1], [0, 0, 1, 1], [], []>} : vector<16x128xbf16>, vector<128x64xbf16>, vector<16x64xf32> -> vector<16x64xf32>
    %315 = arith.addf %301, %314 : vector<16x64xf32>
    %c0_93 = arith.constant 0 : index
    %c0_94 = arith.constant 0 : index
    %316 = vector.load %arg11[%c0_93, %c0_94] : memref<1x64xf32, #tpu.memory_space<vmem>>, vector<1x64xf32>
    %317 = vector.broadcast %316 : vector<1x64xf32> to vector<16x64xf32>
    %318 = arith.addf %315, %317 : vector<16x64xf32>
    %c0_95 = arith.constant 0 : index
    %c0_96 = arith.constant 0 : index
    %319 = vector.load %arg12[%c0_95, %c0_96] : memref<1x64xf32, #tpu.memory_space<vmem>>, vector<1x64xf32>
    %c0_97 = arith.constant 0 : index
    %c0_98 = arith.constant 0 : index
    %320 = vector.load %arg13[%c0_97, %c0_98] : memref<1x64xf32, #tpu.memory_space<vmem>>, vector<1x64xf32>
    %cst_99 = arith.constant dense<0.000000e+00> : vector<16xf32>
    %321 = vector.multi_reduction <add>, %318, %cst_99 [1] : vector<16x64xf32> to vector<16xf32>
    %322 = vector.shape_cast %321 : vector<16xf32> to vector<16x1xf32>
    %cst_100 = arith.constant 6.400000e+01 : f32
    %323 = vector.broadcast %cst_100 : f32 to vector<16x1xf32>
    %324 = arith.divf %322, %323 : vector<16x1xf32>
    %325 = vector.broadcast %324 : vector<16x1xf32> to vector<16x64xf32>
    %326 = arith.subf %318, %325 : vector<16x64xf32>
    %327 = arith.mulf %326, %326 : vector<16x64xf32>
    %cst_101 = arith.constant dense<0.000000e+00> : vector<16xf32>
    %328 = vector.multi_reduction <add>, %327, %cst_101 [1] : vector<16x64xf32> to vector<16xf32>
    %329 = vector.shape_cast %328 : vector<16xf32> to vector<16x1xf32>
    %cst_102 = arith.constant 6.400000e+01 : f32
    %330 = vector.broadcast %cst_102 : f32 to vector<16x1xf32>
    %331 = arith.divf %329, %330 : vector<16x1xf32>
    %332 = vector.broadcast %324 : vector<16x1xf32> to vector<16x64xf32>
    %333 = arith.subf %318, %332 : vector<16x64xf32>
    %cst_103 = arith.constant 9.99999974E-6 : f32
    %334 = vector.broadcast %cst_103 : f32 to vector<16x1xf32>
    %335 = arith.addf %331, %334 : vector<16x1xf32>
    %336 = math.rsqrt %335 : vector<16x1xf32>
    %337 = vector.broadcast %336 : vector<16x1xf32> to vector<16x64xf32>
    %338 = arith.mulf %333, %337 : vector<16x64xf32>
    %339 = vector.broadcast %319 : vector<1x64xf32> to vector<16x64xf32>
    %340 = arith.mulf %338, %339 : vector<16x64xf32>
    %341 = vector.broadcast %320 : vector<1x64xf32> to vector<16x64xf32>
    %342 = arith.addf %340, %341 : vector<16x64xf32>
    %c0_104 = arith.constant 0 : index
    %c0_105 = arith.constant 0 : index
    %343 = vector.load %arg14[%c0_104, %c0_105] : memref<16x64xf32, #tpu.memory_space<vmem>>, vector<16x64xf32>
    tpu.vector_store %arg14[%c0_104, %c0_105], %342 {strides = array<i32>} : memref<16x64xf32, #tpu.memory_space<vmem>>, vector<16x64xf32>,
    return
  }
  func.func @transform_0(%arg0: i32) -> (i32, i32) {
    %c0_i32 = arith.constant 0 : i32
    %c0_i32_0 = arith.constant 0 : i32
    return %arg0, %c0_i32 : i32, i32
  }
  func.func @transform_1(%arg0: i32) -> (i32, i32) {
    %c0_i32 = arith.constant 0 : i32
    %c0_i32_0 = arith.constant 0 : i32
    return %arg0, %c0_i32 : i32, i32
  }
  func.func @transform_2(%arg0: i32) -> (i32, i32) {
    %c0_i32 = arith.constant 0 : i32
    %c0_i32_0 = arith.constant 0 : i32
    %c0_i32_1 = arith.constant 0 : i32
    return %c0_i32, %c0_i32_0 : i32, i32
  }
  func.func @transform_3(%arg0: i32) -> (i32, i32) {
    %c0_i32 = arith.constant 0 : i32
    %c0_i32_0 = arith.constant 0 : i32
    %c0_i32_1 = arith.constant 0 : i32
    return %c0_i32, %c0_i32_0 : i32, i32
  }
  func.func @transform_4(%arg0: i32) -> (i32, i32) {
    %c0_i32 = arith.constant 0 : i32
    %c0_i32_0 = arith.constant 0 : i32
    %c0_i32_1 = arith.constant 0 : i32
    return %c0_i32, %c0_i32_0 : i32, i32
  }
  func.func @transform_5(%arg0: i32) -> (i32, i32) {
    %c0_i32 = arith.constant 0 : i32
    %c0_i32_0 = arith.constant 0 : i32
    %c0_i32_1 = arith.constant 0 : i32
    return %c0_i32, %c0_i32_0 : i32, i32
  }
  func.func @transform_6(%arg0: i32) -> (i32, i32) {
    %c0_i32 = arith.constant 0 : i32
    %c0_i32_0 = arith.constant 0 : i32
    %c0_i32_1 = arith.constant 0 : i32
    return %c0_i32, %c0_i32_0 : i32, i32
  }
  func.func @transform_7(%arg0: i32) -> (i32, i32) {
    %c0_i32 = arith.constant 0 : i32
    %c0_i32_0 = arith.constant 0 : i32
    %c0_i32_1 = arith.constant 0 : i32
    return %c0_i32, %c0_i32_0 : i32, i32
  }
  func.func @transform_8(%arg0: i32) -> (i32, i32) {
    %c0_i32 = arith.constant 0 : i32
    %c0_i32_0 = arith.constant 0 : i32
    %c0_i32_1 = arith.constant 0 : i32
    return %c0_i32, %c0_i32_0 : i32, i32
  }
  func.func @transform_9(%arg0: i32) -> (i32, i32) {
    %c0_i32 = arith.constant 0 : i32
    %c0_i32_0 = arith.constant 0 : i32
    %c0_i32_1 = arith.constant 0 : i32
    return %c0_i32, %c0_i32_0 : i32, i32
  }
  func.func @transform_10(%arg0: i32) -> (i32, i32) {
    %c0_i32 = arith.constant 0 : i32
    %c0_i32_0 = arith.constant 0 : i32
    %c0_i32_1 = arith.constant 0 : i32
    return %c0_i32, %c0_i32_0 : i32, i32
  }
  func.func @transform_11(%arg0: i32) -> (i32, i32) {
    %c0_i32 = arith.constant 0 : i32
    %c0_i32_0 = arith.constant 0 : i32
    %c0_i32_1 = arith.constant 0 : i32
    return %c0_i32, %c0_i32_0 : i32, i32
  }
  func.func @transform_12(%arg0: i32) -> (i32, i32) {
    %c0_i32 = arith.constant 0 : i32
    %c0_i32_0 = arith.constant 0 : i32
    %c0_i32_1 = arith.constant 0 : i32
    return %c0_i32, %c0_i32_0 : i32, i32
  }
  func.func @transform_13(%arg0: i32) -> (i32, i32) {
    %c0_i32 = arith.constant 0 : i32
    %c0_i32_0 = arith.constant 0 : i32
    return %arg0, %c0_i32 : i32, i32
  }
}

module attributes {stable_mosaic.version = 11 : i64} {
  func.func @_scores_kernel(%arg0: i32, %arg1: memref<16x64xf32, #tpu.memory_space<vmem>>, %arg2: memref<16x64xf32, #tpu.memory_space<vmem>>, %arg3: memref<64x1xf32, #tpu.memory_space<vmem>>, %arg4: memref<1x1xf32, #tpu.memory_space<vmem>>, %arg5: memref<16x1xf32, #tpu.memory_space<vmem>>) attributes {dimension_semantics = [#tpu.dimension_semantics<parallel>], iteration_bounds = array<i64: 1>, scalar_prefetch = 0 : i64, scratch_operands = 0 : i64, tpu.core_type = #tpu.core_type<tc>, window_params = [{transform_indices = @transform_0, window_bounds = array<i64: 16, 64>}, {transform_indices = @transform_1, window_bounds = array<i64: 16, 64>}, {pipeline_mode = #tpu.pipeline_mode<synchronous>, transform_indices = @transform_2, window_bounds = array<i64: 64, 1>}, {pipeline_mode = #tpu.pipeline_mode<synchronous>, transform_indices = @transform_3, window_bounds = array<i64: 1, 1>}, {transform_indices = @transform_4, window_bounds = array<i64: 16, 1>}]} {
    %c0 = arith.constant 0 : index
    %c0_0 = arith.constant 0 : index
    %0 = vector.load %arg1[%c0, %c0_0] : memref<16x64xf32, #tpu.memory_space<vmem>>, vector<16x64xf32>
    %c0_1 = arith.constant 0 : index
    %c0_2 = arith.constant 0 : index
    %1 = vector.load %arg2[%c0_1, %c0_2] : memref<16x64xf32, #tpu.memory_space<vmem>>, vector<16x64xf32>
    %2 = arith.addf %0, %1 : vector<16x64xf32>
    %cst = arith.constant 5.000000e-01 : f32
    %3 = vector.broadcast %cst : f32 to vector<16x64xf32>
    %4 = arith.mulf %2, %3 : vector<16x64xf32>
    %c0_3 = arith.constant 0 : index
    %c0_4 = arith.constant 0 : index
    %5 = vector.load %arg3[%c0_3, %c0_4] : memref<64x1xf32, #tpu.memory_space<vmem>>, vector<64x1xf32>
    %cst_5 = arith.constant dense<0.000000e+00> : vector<16x1xf32>
    %6 = tpu.matmul %4, %5, %cst_5 {dimension_numbers = #tpu.dot_dimension_numbers<[1], [0], [0], [1], [0, 0, 1, 1], [], []>} : vector<16x64xf32>, vector<64x1xf32>, vector<16x1xf32> -> vector<16x1xf32>
    %c0_6 = arith.constant 0 : index
    %c0_7 = arith.constant 0 : index
    %7 = vector.load %arg4[%c0_6, %c0_7] : memref<1x1xf32, #tpu.memory_space<vmem>>, vector<1x1xf32>
    %8 = vector.broadcast %7 : vector<1x1xf32> to vector<16x1xf32>
    %9 = arith.addf %6, %8 : vector<16x1xf32>
    %c0_8 = arith.constant 0 : index
    %c0_9 = arith.constant 0 : index
    %10 = vector.load %arg5[%c0_8, %c0_9] : memref<16x1xf32, #tpu.memory_space<vmem>>, vector<16x1xf32>
    tpu.vector_store %arg5[%c0_8, %c0_9], %9 {strides = array<i32>} : memref<16x1xf32, #tpu.memory_space<vmem>>, vector<16x1xf32>,
    return
  }
  func.func @transform_0(%arg0: i32) -> (i32, i32) {
    %c0_i32 = arith.constant 0 : i32
    %c0_i32_0 = arith.constant 0 : i32
    return %arg0, %c0_i32 : i32, i32
  }
  func.func @transform_1(%arg0: i32) -> (i32, i32) {
    %c0_i32 = arith.constant 0 : i32
    %c0_i32_0 = arith.constant 0 : i32
    return %arg0, %c0_i32 : i32, i32
  }
  func.func @transform_2(%arg0: i32) -> (i32, i32) {
    %c0_i32 = arith.constant 0 : i32
    %c0_i32_0 = arith.constant 0 : i32
    %c0_i32_1 = arith.constant 0 : i32
    return %c0_i32, %c0_i32_0 : i32, i32
  }
  func.func @transform_3(%arg0: i32) -> (i32, i32) {
    %c0_i32 = arith.constant 0 : i32
    %c0_i32_0 = arith.constant 0 : i32
    %c0_i32_1 = arith.constant 0 : i32
    return %c0_i32, %c0_i32_0 : i32, i32
  }
  func.func @transform_4(%arg0: i32) -> (i32, i32) {
    %c0_i32 = arith.constant 0 : i32
    %c0_i32_0 = arith.constant 0 : i32
    return %arg0, %c0_i32 : i32, i32
  }
}

module attributes {stable_mosaic.version = 11 : i64} {
  func.func @_linear_act_kernel(%arg0: i32, %arg1: memref<16x64xf32, #tpu.memory_space<vmem>>, %arg2: memref<64x64xf32, #tpu.memory_space<vmem>>, %arg3: memref<1x64xf32, #tpu.memory_space<vmem>>, %arg4: memref<16x64xf32, #tpu.memory_space<vmem>>) attributes {dimension_semantics = [#tpu.dimension_semantics<parallel>], iteration_bounds = array<i64: 1>, scalar_prefetch = 0 : i64, scratch_operands = 0 : i64, tpu.core_type = #tpu.core_type<tc>, window_params = [{transform_indices = @transform_0, window_bounds = array<i64: 16, 64>}, {pipeline_mode = #tpu.pipeline_mode<synchronous>, transform_indices = @transform_1, window_bounds = array<i64: 64, 64>}, {pipeline_mode = #tpu.pipeline_mode<synchronous>, transform_indices = @transform_2, window_bounds = array<i64: 1, 64>}, {transform_indices = @transform_3, window_bounds = array<i64: 16, 64>}]} {
    %c0 = arith.constant 0 : index
    %c0_0 = arith.constant 0 : index
    %0 = vector.load %arg1[%c0, %c0_0] : memref<16x64xf32, #tpu.memory_space<vmem>>, vector<16x64xf32>
    %c0_1 = arith.constant 0 : index
    %c0_2 = arith.constant 0 : index
    %1 = vector.load %arg2[%c0_1, %c0_2] : memref<64x64xf32, #tpu.memory_space<vmem>>, vector<64x64xf32>
    %cst = arith.constant dense<0.000000e+00> : vector<16x64xf32>
    %2 = tpu.matmul %0, %1, %cst {dimension_numbers = #tpu.dot_dimension_numbers<[1], [0], [0], [1], [0, 0, 1, 1], [], []>} : vector<16x64xf32>, vector<64x64xf32>, vector<16x64xf32> -> vector<16x64xf32>
    %c0_3 = arith.constant 0 : index
    %c0_4 = arith.constant 0 : index
    %3 = vector.load %arg3[%c0_3, %c0_4] : memref<1x64xf32, #tpu.memory_space<vmem>>, vector<1x64xf32>
    %4 = vector.broadcast %3 : vector<1x64xf32> to vector<16x64xf32>
    %5 = arith.addf %2, %4 : vector<16x64xf32>
    %cst_5 = arith.constant 2.000000e+01 : f32
    %6 = vector.broadcast %cst_5 : f32 to vector<16x64xf32>
    %7 = arith.minimumf %5, %6 : vector<16x64xf32>
    %8 = math.exp %7 : vector<16x64xf32>
    %cst_6 = arith.constant 2.000000e+01 : f32
    %9 = vector.broadcast %cst_6 : f32 to vector<16x64xf32>
    %10 = arith.cmpf ogt, %5, %9 : vector<16x64xf32>
    %cst_7 = arith.constant -1.500000e+01 : f32
    %11 = vector.broadcast %cst_7 : f32 to vector<16x64xf32>
    %12 = arith.cmpf olt, %5, %11 : vector<16x64xf32>
    %cst_8 = arith.constant 1.000000e+00 : f32
    %13 = vector.broadcast %cst_8 : f32 to vector<16x64xf32>
    %14 = arith.addf %13, %8 : vector<16x64xf32>
    %15 = math.log %14 : vector<16x64xf32>
    %16 = arith.select %12, %8, %15 : vector<16x64xi1>, vector<16x64xf32>
    %17 = arith.select %10, %5, %16 : vector<16x64xi1>, vector<16x64xf32>
    %c0_9 = arith.constant 0 : index
    %c0_10 = arith.constant 0 : index
    %18 = vector.load %arg4[%c0_9, %c0_10] : memref<16x64xf32, #tpu.memory_space<vmem>>, vector<16x64xf32>
    tpu.vector_store %arg4[%c0_9, %c0_10], %17 {strides = array<i32>} : memref<16x64xf32, #tpu.memory_space<vmem>>, vector<16x64xf32>,
    return
  }
  func.func @transform_0(%arg0: i32) -> (i32, i32) {
    %c0_i32 = arith.constant 0 : i32
    %c0_i32_0 = arith.constant 0 : i32
    return %arg0, %c0_i32 : i32, i32
  }
  func.func @transform_1(%arg0: i32) -> (i32, i32) {
    %c0_i32 = arith.constant 0 : i32
    %c0_i32_0 = arith.constant 0 : i32
    %c0_i32_1 = arith.constant 0 : i32
    return %c0_i32, %c0_i32_0 : i32, i32
  }
  func.func @transform_2(%arg0: i32) -> (i32, i32) {
    %c0_i32 = arith.constant 0 : i32
    %c0_i32_0 = arith.constant 0 : i32
    %c0_i32_1 = arith.constant 0 : i32
    return %c0_i32, %c0_i32_0 : i32, i32
  }
  func.func @transform_3(%arg0: i32) -> (i32, i32) {
    %c0_i32 = arith.constant 0 : i32
    %c0_i32_0 = arith.constant 0 : i32
    return %arg0, %c0_i32 : i32, i32
  }
}

module attributes {stable_mosaic.version = 11 : i64} {
  func.func @_linear_act_kernel(%arg0: i32, %arg1: memref<16x64xf32, #tpu.memory_space<vmem>>, %arg2: memref<64x1xf32, #tpu.memory_space<vmem>>, %arg3: memref<1x1xf32, #tpu.memory_space<vmem>>, %arg4: memref<16x1xf32, #tpu.memory_space<vmem>>) attributes {dimension_semantics = [#tpu.dimension_semantics<parallel>], iteration_bounds = array<i64: 1>, scalar_prefetch = 0 : i64, scratch_operands = 0 : i64, tpu.core_type = #tpu.core_type<tc>, window_params = [{transform_indices = @transform_0, window_bounds = array<i64: 16, 64>}, {pipeline_mode = #tpu.pipeline_mode<synchronous>, transform_indices = @transform_1, window_bounds = array<i64: 64, 1>}, {pipeline_mode = #tpu.pipeline_mode<synchronous>, transform_indices = @transform_2, window_bounds = array<i64: 1, 1>}, {transform_indices = @transform_3, window_bounds = array<i64: 16, 1>}]} {
    %c0 = arith.constant 0 : index
    %c0_0 = arith.constant 0 : index
    %0 = vector.load %arg1[%c0, %c0_0] : memref<16x64xf32, #tpu.memory_space<vmem>>, vector<16x64xf32>
    %c0_1 = arith.constant 0 : index
    %c0_2 = arith.constant 0 : index
    %1 = vector.load %arg2[%c0_1, %c0_2] : memref<64x1xf32, #tpu.memory_space<vmem>>, vector<64x1xf32>
    %cst = arith.constant dense<0.000000e+00> : vector<16x1xf32>
    %2 = tpu.matmul %0, %1, %cst {dimension_numbers = #tpu.dot_dimension_numbers<[1], [0], [0], [1], [0, 0, 1, 1], [], []>} : vector<16x64xf32>, vector<64x1xf32>, vector<16x1xf32> -> vector<16x1xf32>
    %c0_3 = arith.constant 0 : index
    %c0_4 = arith.constant 0 : index
    %3 = vector.load %arg3[%c0_3, %c0_4] : memref<1x1xf32, #tpu.memory_space<vmem>>, vector<1x1xf32>
    %4 = vector.broadcast %3 : vector<1x1xf32> to vector<16x1xf32>
    %5 = arith.addf %2, %4 : vector<16x1xf32>
    %c0_5 = arith.constant 0 : index
    %c0_6 = arith.constant 0 : index
    %6 = vector.load %arg4[%c0_5, %c0_6] : memref<16x1xf32, #tpu.memory_space<vmem>>, vector<16x1xf32>
    tpu.vector_store %arg4[%c0_5, %c0_6], %5 {strides = array<i32>} : memref<16x1xf32, #tpu.memory_space<vmem>>, vector<16x1xf32>,
    return
  }
  func.func @transform_0(%arg0: i32) -> (i32, i32) {
    %c0_i32 = arith.constant 0 : i32
    %c0_i32_0 = arith.constant 0 : i32
    return %arg0, %c0_i32 : i32, i32
  }
  func.func @transform_1(%arg0: i32) -> (i32, i32) {
    %c0_i32 = arith.constant 0 : i32
    %c0_i32_0 = arith.constant 0 : i32
    %c0_i32_1 = arith.constant 0 : i32
    return %c0_i32, %c0_i32_0 : i32, i32
  }
  func.func @transform_2(%arg0: i32) -> (i32, i32) {
    %c0_i32 = arith.constant 0 : i32
    %c0_i32_0 = arith.constant 0 : i32
    %c0_i32_1 = arith.constant 0 : i32
    return %c0_i32, %c0_i32_0 : i32, i32
  }
  func.func @transform_3(%arg0: i32) -> (i32, i32) {
    %c0_i32 = arith.constant 0 : i32
    %c0_i32_0 = arith.constant 0 : i32
    return %arg0, %c0_i32 : i32, i32
  }
}

</mosaic_0001>

<llo_original>
// kernel: gatgnn_forward.21
$region0: #{gatgnn_forward.21}
  #allocation0 [shape = 'u32[]', space=smem, size = 0x4, offset = 0x4, fixed_abs, tag = 'smem constant byte address 0x4 - core index']
  #allocation1 [shape = 'u32[144,128]{1,0:T(1,128)}', space=vmem, size = 0x12000, scoped, tag = 'internal scratch']
  %s0 = inlined_call_operand.vmem [shape: f32[16,92], index: 0, kind: input, shape index: {}]
  %s1 = inlined_call_operand.vmem [shape: f32[92,64], index: 1, kind: input, shape index: {}]
  %s2 = inlined_call_operand.vmem [shape: f32[1,64], index: 2, kind: input, shape index: {}]
  %s3 = inlined_call_operand.vmem [shape: f32[16,64], index: 3, kind: output, shape index: {}]
  %s4 = sld [smem:[#allocation0]]
  $region22: #{gatgnn_forward.21} parent=0
    _
  %s6 = ssub.s32 1, %s4
  %s7 = scalar_select 0, %s6, %s4
  // Predicated region
  $region2: #{gatgnn_forward.21} parent=0 // pred_check
    _
  $region3: #{gatgnn_forward.21} parent=0 // pred_check_branch
    %9 = sbr.rel (0) target = $region5
  $region4: #{gatgnn_forward.21} parent=0 // pred_region
    _
  $region5: #{gatgnn_forward.21} parent=0 // pred_fallthru
    _
  // Predicated region
  $region6: #{gatgnn_forward.21} parent=0 // pred_check
    _
  $region7: #{gatgnn_forward.21} parent=0 // pred_check_branch
    %11 = sbr.rel (0) target = $region9
  $region8: #{gatgnn_forward.21} parent=0 // pred_region
    _
  $region9: #{gatgnn_forward.21} parent=0 // pred_fallthru
    _
  // Predicated region
  $region10: #{gatgnn_forward.21} parent=0 // pred_check
    _
  $region11: #{gatgnn_forward.21} parent=0 // pred_check_branch
    %13 = sbr.rel (0) target = $region13
  $region12: #{gatgnn_forward.21} parent=0 // pred_region
    _
  $region13: #{gatgnn_forward.21} parent=0 // pred_fallthru
    _
  %v14 = vld [vmem:[%s0] sm:$0xff]
  %v15 = vld [vmem:[%s0 + $0x8] sm:$0xff]
  %v16 = vld [vmem:[%s1] sm:$0xff]
  %v17 = vld [vmem:[%s1 + $0x8] sm:$0xff]
  %v18 = vld [vmem:[%s1 + $0x10] sm:$0xff]
  %v19 = vld [vmem:[%s1 + $0x18] sm:$0xff]
  %v20 = vld [vmem:[%s1 + $0x20] sm:$0xff]
  %v21 = vld [vmem:[%s1 + $0x28] sm:$0xff]
  %v22 = vld [vmem:[%s1 + $0x30] sm:$0xff]
  %v23 = vld [vmem:[%s1 + $0x38] sm:$0xff]
  %v24 = vld [vmem:[%s1 + $0x40] sm:$0xff]
  %v25 = vld [vmem:[%s1 + $0x48] sm:$0xff]
  %v26 = vld [vmem:[%s1 + $0x50] sm:$0xff]
  %v27 = vld [vmem:[%s1 + $0x58] sm:$0xf]
  %v28 = vld [vmem:[%s2] sm:$0x1]
  %v30 = vlaneseq
  %v31 = vshrl.u32 %v30, 7
  %v32 = vsub.s32 0, %v31
  %v33 = vrot.slane %v28, %v32
  %vm35 = vcmask 752640
  %v37 = vsel %vm35, %v14, 0
  %v40 = vsel %vm35, %v15, 0
  %vm42 = vcmask 1043456
  %v44 = vsel %vm42, %v27, 0
  %46 = vmatprep.subr.mxu0 0.0
  %47 = vmatpush1.msra.mxu0 %v16
  %48 = vmatprep.subr.mxu0 0.0
  %49 = vmatpush1.msra.mxu0 %v17
  %50 = vmatprep.subr.mxu0 0.0
  %51 = vmatpush1.msra.mxu0 %v18
  %52 = vmatprep.subr.mxu0 0.0
  %53 = vmatpush1.msra.mxu0 %v19
  %54 = vmatprep.subr.mxu0 0.0
  %55 = vmatpush1.msra.mxu0 %v20
  %56 = vmatprep.subr.mxu0 0.0
  %57 = vmatpush1.msra.mxu0 %v21
  %58 = vmatprep.subr.mxu0 0.0
  %59 = vmatpush1.msra.mxu0 %v22
  %60 = vmatprep.subr.mxu0 0.0
  %61 = vmatpush1.msra.mxu0 %v23
  %62 = vmatprep.subr.mxu0 0.0
  %63 = vmatpush1.msra.mxu0 %v24
  %64 = vmatprep.subr.mxu0 0.0
  %65 = vmatpush1.msra.mxu0 %v25
  %66 = vmatprep.subr.mxu0 0.0
  %67 = vmatpush1.msra.mxu0 %v26
  %68 = vmatprep.subr.mxu0 0.0
  %69 = vmatpush1.msra.mxu0 %v44
  %70 = vmatprep.subr.mxu0 0.0
  %71 = vmatpush1.msra.mxu0 0.0
  %72 = vmatprep.subr.mxu0 0.0
  %73 = vmatpush1.msra.mxu0 0.0
  %74 = vmatprep.subr.mxu0 0.0
  %75 = vmatpush1.msra.mxu0 0.0
  %76 = vmatprep.subr.mxu0 0.0
  %77 = vmatpush1.msra.mxu0 0.0
  %78 = vmatprep.subr.mxu0 0.0
  %79 = vmatpush1.msra.mxu0 0.0
  %80 = vmatprep.subr.mxu0 0.0
  %81 = vmatpush1.msra.mxu0 0.0
  %82 = vmatprep.subr.mxu0 0.0
  %83 = vmatpush1.msra.mxu0 0.0
  %84 = vmatprep.subr.mxu0 0.0
  %85 = vmatpush1.msra.mxu0 0.0
  %86 = vmatprep.subr.mxu0 0.0
  %87 = vmatpush1.msra.mxu0 0.0
  %88 = vmatprep.subr.mxu0 0.0
  %89 = vmatpush1.msra.mxu0 0.0
  %90 = vmatprep.subr.mxu0 0.0
  %91 = vmatpush1.msra.mxu0 0.0
  %92 = vmatprep.subr.mxu0 0.0
  %93 = vmatpush1.msra.mxu0 0.0
  %94 = vmatprep.subr.mxu0 0.0
  %95 = vmatpush1.msra.mxu0 0.0
  %96 = vmatprep.subr.mxu0 0.0
  %97 = vmatpush1.msra.mxu0 0.0
  %98 = vmatprep.subr.mxu0 0.0
  %99 = vmatpush1.msra.mxu0 0.0
  %100 = vmatprep.subr.mxu0 0.0
  %101 = vmatpush1.msra.mxu0 0.0
  %102 = vmatprep.subr.mxu0 0.0
  %103 = vmatpush1.msra.mxu0 0.0
  %104 = vmatprep.subr.mxu0 0.0
  %105 = vmatpush1.msra.mxu0 0.0
  %106 = vmatprep.subr.mxu0 0.0
  %107 = vmatpush1.msra.mxu0 0.0
  %108 = vmatprep.subr.mxu0 0.0
  %109 = vmatpush1.msra.mxu0 0.0
  %110 = vmatprep.mubr.f32.mxu0 0.0
  %111 = vmatmul.mubr.f32.gmra.mrb[0].mxu0 %v37
  %v112 = vpop.f32.mrb[0].mxu0
  %v113 = vadd.f32 %v33, %v112
  %v114 = vpop.f32.mrb[0].mxu0
  %115 = vmatprep.mubr.f32.mxu0 0.0
  %116 = vmatmul.mubr.f32.gmra.mrb[0].mxu0 %v40
  %v117 = vpop.f32.mrb[0].mxu0
  %v118 = vadd.f32 %v33, %v117
  %v119 = vpop.f32.mrb[0].mxu0
  %120 = vdwg.mxu0
  %vm121 = vcmask 523264
  %122 = vst.msk [vmem:[%s3] sm:$0xff] %vm121, %v113
  %123 = vst.msk [vmem:[%s3 + $0x8] sm:$0xff] %vm121, %v118
  // Predicated region
  $region14: #{gatgnn_forward.21} parent=0 // pred_check
    _
  $region15: #{gatgnn_forward.21} parent=0 // pred_check_branch
    %125 = sbr.rel (0) target = $region17
  $region16: #{gatgnn_forward.21} parent=0 // pred_region
    _
  $region17: #{gatgnn_forward.21} parent=0 // pred_fallthru
    _
  // Predicated region
  $region18: #{gatgnn_forward.21} parent=0 // pred_check
    _
  $region19: #{gatgnn_forward.21} parent=0 // pred_check_branch
    %127 = sbr.rel (0) target = $region21
  $region20: #{gatgnn_forward.21} parent=0 // pred_region
    _
  $region21: #{gatgnn_forward.21} parent=0 // pred_fallthru
    _

// kernel: gatgnn_forward.22
$region0: #{gatgnn_forward.22}
  #allocation0 [shape = 'u32[]', space=smem, size = 0x4, offset = 0x4, fixed_abs, tag = 'smem constant byte address 0x4 - core index']
  #allocation1 [shape = 'u32[144,128]{1,0:T(1,128)}', space=vmem, size = 0x12000, scoped, tag = 'internal scratch']
  %s0 = inlined_call_operand.vmem [shape: f32[64,41], index: 0, kind: input, shape index: {}]
  %s1 = inlined_call_operand.vmem [shape: f32[41,64], index: 1, kind: input, shape index: {}]
  %s2 = inlined_call_operand.vmem [shape: f32[1,64], index: 2, kind: input, shape index: {}]
  %s3 = inlined_call_operand.vmem [shape: f32[64,64], index: 3, kind: output, shape index: {}]
  %s4 = sld [smem:[#allocation0]]
  $region22: #{gatgnn_forward.22} parent=0
    _
  %s6 = ssub.s32 1, %s4
  %s7 = scalar_select 0, %s6, %s4
  // Predicated region
  $region2: #{gatgnn_forward.22} parent=0 // pred_check
    _
  $region3: #{gatgnn_forward.22} parent=0 // pred_check_branch
    %9 = sbr.rel (0) target = $region5
  $region4: #{gatgnn_forward.22} parent=0 // pred_region
    _
  $region5: #{gatgnn_forward.22} parent=0 // pred_fallthru
    _
  // Predicated region
  $region6: #{gatgnn_forward.22} parent=0 // pred_check
    _
  $region7: #{gatgnn_forward.22} parent=0 // pred_check_branch
    %11 = sbr.rel (0) target = $region9
  $region8: #{gatgnn_forward.22} parent=0 // pred_region
    _
  $region9: #{gatgnn_forward.22} parent=0 // pred_fallthru
    _
  // Predicated region
  $region10: #{gatgnn_forward.22} parent=0 // pred_check
    _
  $region11: #{gatgnn_forward.22} parent=0 // pred_check_branch
    %13 = sbr.rel (0) target = $region13
  $region12: #{gatgnn_forward.22} parent=0 // pred_region
    _
  $region13: #{gatgnn_forward.22} parent=0 // pred_fallthru
    _
  %v14 = vld [vmem:[%s0] sm:$0xff]
  %v15 = vld [vmem:[%s0 + $0x8] sm:$0xff]
  %v16 = vld [vmem:[%s0 + $0x10] sm:$0xff]
  %v17 = vld [vmem:[%s0 + $0x18] sm:$0xff]
  %v18 = vld [vmem:[%s0 + $0x20] sm:$0xff]
  %v19 = vld [vmem:[%s0 + $0x28] sm:$0xff]
  %v20 = vld [vmem:[%s0 + $0x30] sm:$0xff]
  %v21 = vld [vmem:[%s0 + $0x38] sm:$0xff]
  %v22 = vld [vmem:[%s1] sm:$0xff]
  %v23 = vld [vmem:[%s1 + $0x8] sm:$0xff]
  %v24 = vld [vmem:[%s1 + $0x10] sm:$0xff]
  %v25 = vld [vmem:[%s1 + $0x18] sm:$0xff]
  %v26 = vld [vmem:[%s1 + $0x20] sm:$0xff]
  %v27 = vld [vmem:[%s1 + $0x28] sm:$0x1]
  %v28 = vld [vmem:[%s2] sm:$0x1]
  %v30 = vlaneseq
  %v31 = vshrl.u32 %v30, 7
  %v32 = vsub.s32 0, %v31
  %v33 = vrot.slane %v28, %v32
  %vm35 = vcmask 334848
  %v37 = vsel %vm35, %v14, 0
  %v40 = vsel %vm35, %v15, 0
  %v43 = vsel %vm35, %v16, 0
  %v46 = vsel %vm35, %v17, 0
  %v49 = vsel %vm35, %v18, 0
  %v52 = vsel %vm35, %v19, 0
  %v55 = vsel %vm35, %v20, 0
  %v58 = vsel %vm35, %v21, 0
  %vm60 = vcmask 1040384
  %v62 = vsel %vm60, %v27, 0
  %64 = vmatprep.subr.mxu0 0.0
  %65 = vmatpush1.msra.mxu0 %v22
  %66 = vmatprep.subr.mxu0 0.0
  %67 = vmatpush1.msra.mxu0 %v23
  %68 = vmatprep.subr.mxu0 0.0
  %69 = vmatpush1.msra.mxu0 %v24
  %70 = vmatprep.subr.mxu0 0.0
  %71 = vmatpush1.msra.mxu0 %v25
  %72 = vmatprep.subr.mxu0 0.0
  %73 = vmatpush1.msra.mxu0 %v26
  %74 = vmatprep.subr.mxu0 0.0
  %75 = vmatpush1.msra.mxu0 %v62
  %76 = vmatprep.subr.mxu0 0.0
  %77 = vmatpush1.msra.mxu0 0.0
  %78 = vmatprep.subr.mxu0 0.0
  %79 = vmatpush1.msra.mxu0 0.0
  %80 = vmatprep.subr.mxu0 0.0
  %81 = vmatpush1.msra.mxu0 0.0
  %82 = vmatprep.subr.mxu0 0.0
  %83 = vmatpush1.msra.mxu0 0.0
  %84 = vmatprep.subr.mxu0 0.0
  %85 = vmatpush1.msra.mxu0 0.0
  %86 = vmatprep.subr.mxu0 0.0
  %87 = vmatpush1.msra.mxu0 0.0
  %88 = vmatprep.subr.mxu0 0.0
  %89 = vmatpush1.msra.mxu0 0.0
  %90 = vmatprep.subr.mxu0 0.0
  %91 = vmatpush1.msra.mxu0 0.0
  %92 = vmatprep.subr.mxu0 0.0
  %93 = vmatpush1.msra.mxu0 0.0
  %94 = vmatprep.subr.mxu0 0.0
  %95 = vmatpush1.msra.mxu0 0.0
  %96 = vmatprep.subr.mxu0 0.0
  %97 = vmatpush1.msra.mxu0 0.0
  %98 = vmatprep.subr.mxu0 0.0
  %99 = vmatpush1.msra.mxu0 0.0
  %100 = vmatprep.subr.mxu0 0.0
  %101 = vmatpush1.msra.mxu0 0.0
  %102 = vmatprep.subr.mxu0 0.0
  %103 = vmatpush1.msra.mxu0 0.0
  %104 = vmatprep.subr.mxu0 0.0
  %105 = vmatpush1.msra.mxu0 0.0
  %106 = vmatprep.subr.mxu0 0.0
  %107 = vmatpush1.msra.mxu0 0.0
  %108 = vmatprep.subr.mxu0 0.0
  %109 = vmatpush1.msra.mxu0 0.0
  %110 = vmatprep.subr.mxu0 0.0
  %111 = vmatpush1.msra.mxu0 0.0
  %112 = vmatprep.subr.mxu0 0.0
  %113 = vmatpush1.msra.mxu0 0.0
  %114 = vmatprep.subr.mxu0 0.0
  %115 = vmatpush1.msra.mxu0 0.0
  %116 = vmatprep.subr.mxu0 0.0
  %117 = vmatpush1.msra.mxu0 0.0
  %118 = vmatprep.subr.mxu0 0.0
  %119 = vmatpush1.msra.mxu0 0.0
  %120 = vmatprep.subr.mxu0 0.0
  %121 = vmatpush1.msra.mxu0 0.0
  %122 = vmatprep.subr.mxu0 0.0
  %123 = vmatpush1.msra.mxu0 0.0
  %124 = vmatprep.subr.mxu0 0.0
  %125 = vmatpush1.msra.mxu0 0.0
  %126 = vmatprep.subr.mxu0 0.0
  %127 = vmatpush1.msra.mxu0 0.0
  %128 = vmatprep.mubr.f32.mxu0 0.0
  %129 = vmatmul.mubr.f32.gmra.mrb[0].mxu0 %v37
  %v130 = vpop.f32.mrb[0].mxu0
  %v131 = vadd.f32 %v33, %v130
  %v132 = vpop.f32.mrb[0].mxu0
  %133 = vmatprep.mubr.f32.mxu0 0.0
  %134 = vmatmul.mubr.f32.gmra.mrb[0].mxu0 %v40
  %v135 = vpop.f32.mrb[0].mxu0
  %v136 = vadd.f32 %v33, %v135
  %v137 = vpop.f32.mrb[0].mxu0
  %138 = vmatprep.mubr.f32.mxu0 0.0
  %139 = vmatmul.mubr.f32.gmra.mrb[0].mxu0 %v43
  %v140 = vpop.f32.mrb[0].mxu0
  %v141 = vadd.f32 %v33, %v140
  %v142 = vpop.f32.mrb[0].mxu0
  %143 = vmatprep.mubr.f32.mxu0 0.0
  %144 = vmatmul.mubr.f32.gmra.mrb[0].mxu0 %v46
  %v145 = vpop.f32.mrb[0].mxu0
  %v146 = vadd.f32 %v33, %v145
  %v147 = vpop.f32.mrb[0].mxu0
  %148 = vmatprep.mubr.f32.mxu0 0.0
  %149 = vmatmul.mubr.f32.gmra.mrb[0].mxu0 %v49
  %v150 = vpop.f32.mrb[0].mxu0
  %v151 = vadd.f32 %v33, %v150
  %v152 = vpop.f32.mrb[0].mxu0
  %153 = vmatprep.mubr.f32.mxu0 0.0
  %154 = vmatmul.mubr.f32.gmra.mrb[0].mxu0 %v52
  %v155 = vpop.f32.mrb[0].mxu0
  %v156 = vadd.f32 %v33, %v155
  %v157 = vpop.f32.mrb[0].mxu0
  %158 = vmatprep.mubr.f32.mxu0 0.0
  %159 = vmatmul.mubr.f32.gmra.mrb[0].mxu0 %v55
  %v160 = vpop.f32.mrb[0].mxu0
  %v161 = vadd.f32 %v33, %v160
  %v162 = vpop.f32.mrb[0].mxu0
  %163 = vmatprep.mubr.f32.mxu0 0.0
  %164 = vmatmul.mubr.f32.gmra.mrb[0].mxu0 %v58
  %v165 = vpop.f32.mrb[0].mxu0
  %v166 = vadd.f32 %v33, %v165
  %v167 = vpop.f32.mrb[0].mxu0
  %168 = vdwg.mxu0
  %vm169 = vcmp.gt.f32.partialorder %v131, 0.0
  %vm170 = vcmp.gt.f32.partialorder %v136, 0.0
  %vm171 = vcmp.gt.f32.partialorder %v141, 0.0
  %vm172 = vcmp.gt.f32.partialorder %v146, 0.0
  %vm173 = vcmp.gt.f32.partialorder %v151, 0.0
  %vm174 = vcmp.gt.f32.partialorder %v156, 0.0
  %vm175 = vcmp.gt.f32.partialorder %v161, 0.0
  %vm176 = vcmp.gt.f32.partialorder %v166, 0.0
  %v177 = vmul.f32 %v131, 0.2
  %v178 = vmul.f32 %v136, 0.2
  %v179 = vmul.f32 %v141, 0.2
  %v180 = vmul.f32 %v146, 0.2
  %v181 = vmul.f32 %v151, 0.2
  %v182 = vmul.f32 %v156, 0.2
  %v183 = vmul.f32 %v161, 0.2
  %v184 = vmul.f32 %v166, 0.2
  %v185 = vsel %vm169, %v131, %v177
  %v186 = vsel %vm170, %v136, %v178
  %v187 = vsel %vm171, %v141, %v179
  %v188 = vsel %vm172, %v146, %v180
  %v189 = vsel %vm173, %v151, %v181
  %v190 = vsel %vm174, %v156, %v182
  %v191 = vsel %vm175, %v161, %v183
  %v192 = vsel %vm176, %v166, %v184
  %vm193 = vcmask 523264
  %194 = vst.msk [vmem:[%s3] sm:$0xff] %vm193, %v185
  %195 = vst.msk [vmem:[%s3 + $0x8] sm:$0xff] %vm193, %v186
  %196 = vst.msk [vmem:[%s3 + $0x10] sm:$0xff] %vm193, %v187
  %197 = vst.msk [vmem:[%s3 + $0x18] sm:$0xff] %vm193, %v188
  %198 = vst.msk [vmem:[%s3 + $0x20] sm:$0xff] %vm193, %v189
  %199 = vst.msk [vmem:[%s3 + $0x28] sm:$0xff] %vm193, %v190
  %200 = vst.msk [vmem:[%s3 + $0x30] sm:$0xff] %vm193, %v191
  %201 = vst.msk [vmem:[%s3 + $0x38] sm:$0xff] %vm193, %v192
  // Predicated region
  $region14: #{gatgnn_forward.22} parent=0 // pred_check
    _
  $region15: #{gatgnn_forward.22} parent=0 // pred_check_branch
    %203 = sbr.rel (0) target = $region17
  $region16: #{gatgnn_forward.22} parent=0 // pred_region
    _
  $region17: #{gatgnn_forward.22} parent=0 // pred_fallthru
    _
  // Predicated region
  $region18: #{gatgnn_forward.22} parent=0 // pred_check
    _
  $region19: #{gatgnn_forward.22} parent=0 // pred_check_branch
    %205 = sbr.rel (0) target = $region21
  $region20: #{gatgnn_forward.22} parent=0 // pred_region
    _
  $region21: #{gatgnn_forward.22} parent=0 // pred_fallthru
    _

// kernel: gatgnn_forward.23
$region0: #{gatgnn_forward.23}
  #allocation0 [shape = 'u32[]', space=smem, size = 0x4, offset = 0x4, fixed_abs, tag = 'smem constant byte address 0x4 - core index']
  #allocation1 [shape = 'u32[144,128]{1,0:T(1,128)}', space=vmem, size = 0x12000, scoped, tag = 'internal scratch']
  %s0 = inlined_call_operand.vmem [shape: f32[64,64], index: 0, kind: input, shape index: {}]
  %s1 = inlined_call_operand.vmem [shape: f32[64,64], index: 1, kind: input, shape index: {}]
  %s2 = inlined_call_operand.vmem [shape: f32[64,64], index: 2, kind: input, shape index: {}]
  %s3 = inlined_call_operand.vmem [shape: f32[64,256], index: 3, kind: input, shape index: {}]
  %s4 = inlined_call_operand.vmem [shape: f32[64,256], index: 4, kind: input, shape index: {}]
  %s5 = inlined_call_operand.vmem [shape: f32[1,256], index: 5, kind: input, shape index: {}]
  %s6 = inlined_call_operand.vmem [shape: f32[1,256], index: 6, kind: input, shape index: {}]
  %s7 = inlined_call_operand.vmem [shape: f32[256,4], index: 7, kind: input, shape index: {}]
  %s8 = inlined_call_operand.vmem [shape: f32[1,4], index: 8, kind: input, shape index: {}]
  %s9 = inlined_call_operand.vmem [shape: f32[1,4], index: 9, kind: input, shape index: {}]
  %s10 = inlined_call_operand.vmem [shape: f32[64,256], index: 10, kind: output, shape index: {0}]
  %s11 = inlined_call_operand.vmem [shape: f32[64,4], index: 11, kind: output, shape index: {1}]
  %12 = xla_tuple %s10, %s11
  %s13 = sld [smem:[#allocation0]]
  $region58: #{gatgnn_forward.23} parent=0
    _
  %s15 = ssub.s32 1, %s13
  %s16 = scalar_select 0, %s15, %s13
  // Predicated region
  $region2: #{gatgnn_forward.23} parent=0 // pred_check
    _
  $region3: #{gatgnn_forward.23} parent=0 // pred_check_branch
    %18 = sbr.rel (0) target = $region5
  $region4: #{gatgnn_forward.23} parent=0 // pred_region
    _
  $region5: #{gatgnn_forward.23} parent=0 // pred_fallthru
    _
  // Predicated region
  $region6: #{gatgnn_forward.23} parent=0 // pred_check
    _
  $region7: #{gatgnn_forward.23} parent=0 // pred_check_branch
    %20 = sbr.rel (0) target = $region9
  $region8: #{gatgnn_forward.23} parent=0 // pred_region
    _
  $region9: #{gatgnn_forward.23} parent=0 // pred_fallthru
    _
  // Predicated region
  $region10: #{gatgnn_forward.23} parent=0 // pred_check
    _
  $region11: #{gatgnn_forward.23} parent=0 // pred_check_branch
    %22 = sbr.rel (0) target = $region13
  $region12: #{gatgnn_forward.23} parent=0 // pred_region
    _
  $region13: #{gatgnn_forward.23} parent=0 // pred_fallthru
    _
  // Predicated region
  $region14: #{gatgnn_forward.23} parent=0 // pred_check
    _
  $region15: #{gatgnn_forward.23} parent=0 // pred_check_branch
    %24 = sbr.rel (0) target = $region17
  $region16: #{gatgnn_forward.23} parent=0 // pred_region
    _
  $region17: #{gatgnn_forward.23} parent=0 // pred_fallthru
    _
  // Predicated region
  $region18: #{gatgnn_forward.23} parent=0 // pred_check
    _
  $region19: #{gatgnn_forward.23} parent=0 // pred_check_branch
    %26 = sbr.rel (0) target = $region21
  $region20: #{gatgnn_forward.23} parent=0 // pred_region
    _
  $region21: #{gatgnn_forward.23} parent=0 // pred_fallthru
    _
  // Predicated region
  $region22: #{gatgnn_forward.23} parent=0 // pred_check
    _
  $region23: #{gatgnn_forward.23} parent=0 // pred_check_branch
    %28 = sbr.rel (0) target = $region25
  $region24: #{gatgnn_forward.23} parent=0 // pred_region
    _
  $region25: #{gatgnn_forward.23} parent=0 // pred_fallthru
    _
  // Predicated region
  $region26: #{gatgnn_forward.23} parent=0 // pred_check
    _
  $region27: #{gatgnn_forward.23} parent=0 // pred_check_branch
    %30 = sbr.rel (0) target = $region29
  $region28: #{gatgnn_forward.23} parent=0 // pred_region
    _
  $region29: #{gatgnn_forward.23} parent=0 // pred_fallthru
    _
  // Predicated region
  $region30: #{gatgnn_forward.23} parent=0 // pred_check
    _
  $region31: #{gatgnn_forward.23} parent=0 // pred_check_branch
    %32 = sbr.rel (0) target = $region33
  $region32: #{gatgnn_forward.23} parent=0 // pred_region
    _
  $region33: #{gatgnn_forward.23} parent=0 // pred_fallthru
    _
  // Predicated region
  $region34: #{gatgnn_forward.23} parent=0 // pred_check
    _
  $region35: #{gatgnn_forward.23} parent=0 // pred_check_branch
    %34 = sbr.rel (0) target = $region37
  $region36: #{gatgnn_forward.23} parent=0 // pred_region
    _
  $region37: #{gatgnn_forward.23} parent=0 // pred_fallthru
    _
  // Predicated region
  $region38: #{gatgnn_forward.23} parent=0 // pred_check
    _
  $region39: #{gatgnn_forward.23} parent=0 // pred_check_branch
    %36 = sbr.rel (0) target = $region41
  $region40: #{gatgnn_forward.23} parent=0 // pred_region
    _
  $region41: #{gatgnn_forward.23} parent=0 // pred_fallthru
    _
  %v38 = vld [vmem:[%s2] sm:$0xff]
  %v39 = vld [vmem:[%s2 + $0x8] sm:$0xff]
  %v40 = vld [vmem:[%s2 + $0x10] sm:$0xff]
  %v41 = vld [vmem:[%s2 + $0x18] sm:$0xff]
  %v42 = vld [vmem:[%s2 + $0x20] sm:$0xff]
  %v43 = vld [vmem:[%s2 + $0x28] sm:$0xff]
  %v44 = vld [vmem:[%s2 + $0x30] sm:$0xff]
  %v45 = vld [vmem:[%s2 + $0x38] sm:$0xff]
  %v46 = vld [vmem:[%s4] sm:$0xff]
  %v47 = vld [vmem:[%s4 + $0x8] sm:$0xff]
  %v48 = vld [vmem:[%s4 + $0x10] sm:$0xff]
  %v49 = vld [vmem:[%s4 + $0x18] sm:$0xff]
  %v50 = vld [vmem:[%s4 + $0x20] sm:$0xff]
  %v51 = vld [vmem:[%s4 + $0x28] sm:$0xff]
  %v52 = vld [vmem:[%s4 + $0x30] sm:$0xff]
  %v53 = vld [vmem:[%s4 + $0x38] sm:$0xff]
  %v54 = vld [vmem:[%s4 + $0x40] sm:$0xff]
  %v55 = vld [vmem:[%s4 + $0x48] sm:$0xff]
  %v56 = vld [vmem:[%s4 + $0x50] sm:$0xff]
  %v57 = vld [vmem:[%s4 + $0x58] sm:$0xff]
  %v58 = vld [vmem:[%s4 + $0x60] sm:$0xff]
  %v59 = vld [vmem:[%s4 + $0x68] sm:$0xff]
  %v60 = vld [vmem:[%s4 + $0x70] sm:$0xff]
  %v61 = vld [vmem:[%s4 + $0x78] sm:$0xff]
  %v62 = vpack.c.bf16 %v39, %v38
  %v63 = vpack.c.bf16 %v41, %v40
  %v64 = vpack.c.bf16 %v43, %v42
  %v65 = vpack.c.bf16 %v45, %v44
  %v66 = vpack.c.bf16 %v48, %v46
  %v67 = vpack.c.bf16 %v49, %v47
  %v68 = vpack.c.bf16 %v52, %v50
  %v69 = vpack.c.bf16 %v53, %v51
  %v70 = vpack.c.bf16 %v56, %v54
  %v71 = vpack.c.bf16 %v57, %v55
  %v72 = vpack.c.bf16 %v60, %v58
  %v73 = vpack.c.bf16 %v61, %v59
  %vm74 = vcmask 523264
  %v76 = vsel %vm74, %v62, 0
  %v79 = vsel %vm74, %v63, 0
  %v82 = vsel %vm74, %v64, 0
  %v85 = vsel %vm74, %v65, 0
  %87 = vmatprep.subr.bf16.mxu0 %v67
  %88 = vmatpush1.bf16.msra.mxu0 %v66
  %89 = vmatprep.subr.bf16.mxu0 %v69
  %90 = vmatpush1.bf16.msra.mxu0 %v68
  %91 = vmatprep.subr.bf16.mxu0 %v71
  %92 = vmatpush1.bf16.msra.mxu0 %v70
  %93 = vmatprep.subr.bf16.mxu0 %v73
  %94 = vmatpush1.bf16.msra.mxu0 %v72
  %95 = vmatprep.subr.bf16.mxu0 0
  %96 = vmatpush1.bf16.msra.mxu0 0
  %97 = vmatprep.subr.bf16.mxu0 0
  %98 = vmatpush1.bf16.msra.mxu0 0
  %99 = vmatprep.subr.bf16.mxu0 0
  %100 = vmatpush1.bf16.msra.mxu0 0
  %101 = vmatprep.subr.bf16.mxu0 0
  %102 = vmatpush1.bf16.msra.mxu0 0
  %103 = vmatprep.subr.bf16.mxu0 0
  %104 = vmatpush1.bf16.msra.mxu0 0
  %105 = vmatprep.subr.bf16.mxu0 0
  %106 = vmatpush1.bf16.msra.mxu0 0
  %107 = vmatprep.subr.bf16.mxu0 0
  %108 = vmatpush1.bf16.msra.mxu0 0
  %109 = vmatprep.subr.bf16.mxu0 0
  %110 = vmatpush1.bf16.msra.mxu0 0
  %111 = vmatprep.subr.bf16.mxu0 0
  %112 = vmatpush1.bf16.msra.mxu0 0
  %113 = vmatprep.subr.bf16.mxu0 0
  %114 = vmatpush1.bf16.msra.mxu0 0
  %115 = vmatprep.subr.bf16.mxu0 0
  %116 = vmatpush1.bf16.msra.mxu0 0
  %117 = vmatprep.subr.bf16.mxu0 0
  %118 = vmatpush1.bf16.msra.mxu0 0
  %119 = vmatprep.mubr.bf16.mxu0 0
  %120 = vmatmul.mubr.bf16.gmra.mrb[0].mxu0 %v76
  %v121 = vpop.f32.mrb[0].mxu0
  %v122 = vadd.f32 0.0, %v121
  %v123 = vpop.f32.mrb[0].mxu0
  %v124 = vadd.f32 0.0, %v123
  %v125 = vpop.f32.mrb[0].mxu0
  %v126 = vadd.f32 0.0, %v125
  %v127 = vpop.f32.mrb[0].mxu0
  %v128 = vadd.f32 0.0, %v127
  %129 = vmatprep.mubr.bf16.mxu0 0
  %130 = vmatmul.mubr.bf16.gmra.mrb[0].mxu0 %v79
  %v131 = vpop.f32.mrb[0].mxu0
  %v132 = vadd.f32 0.0, %v131
  %v133 = vpop.f32.mrb[0].mxu0
  %v134 = vadd.f32 0.0, %v133
  %v135 = vpop.f32.mrb[0].mxu0
  %v136 = vadd.f32 0.0, %v135
  %v137 = vpop.f32.mrb[0].mxu0
  %v138 = vadd.f32 0.0, %v137
  %139 = vmatprep.mubr.bf16.mxu0 0
  %140 = vmatmul.mubr.bf16.gmra.mrb[0].mxu0 %v82
  %v141 = vpop.f32.mrb[0].mxu0
  %v142 = vadd.f32 0.0, %v141
  %v143 = vpop.f32.mrb[0].mxu0
  %v144 = vadd.f32 0.0, %v143
  %v145 = vpop.f32.mrb[0].mxu0
  %v146 = vadd.f32 0.0, %v145
  %v147 = vpop.f32.mrb[0].mxu0
  %v148 = vadd.f32 0.0, %v147
  %149 = vmatprep.mubr.bf16.mxu0 0
  %150 = vmatmul.mubr.bf16.gmra.mrb[0].mxu0 %v85
  %v151 = vpop.f32.mrb[0].mxu0
  %v152 = vadd.f32 0.0, %v151
  %v153 = vpop.f32.mrb[0].mxu0
  %v154 = vadd.f32 0.0, %v153
  %v155 = vpop.f32.mrb[0].mxu0
  %v156 = vadd.f32 0.0, %v155
  %v157 = vpop.f32.mrb[0].mxu0
  %v158 = vadd.f32 0.0, %v157
  %159 = vdwg.mxu0
  %v160 = vld [vmem:[%s0] sm:$0xff]
  %v161 = vld [vmem:[%s0 + $0x8] sm:$0xff]
  %v162 = vld [vmem:[%s0 + $0x10] sm:$0xff]
  %v163 = vld [vmem:[%s0 + $0x18] sm:$0xff]
  %v164 = vld [vmem:[%s0 + $0x20] sm:$0xff]
  %v165 = vld [vmem:[%s0 + $0x28] sm:$0xff]
  %v166 = vld [vmem:[%s0 + $0x30] sm:$0xff]
  %v167 = vld [vmem:[%s0 + $0x38] sm:$0xff]
  %v168 = vld [vmem:[%s3] sm:$0xff]
  %v169 = vld [vmem:[%s3 + $0x8] sm:$0xff]
  %v170 = vld [vmem:[%s3 + $0x10] sm:$0xff]
  %v171 = vld [vmem:[%s3 + $0x18] sm:$0xff]
  %v172 = vld [vmem:[%s3 + $0x20] sm:$0xff]
  %v173 = vld [vmem:[%s3 + $0x28] sm:$0xff]
  %v174 = vld [vmem:[%s3 + $0x30] sm:$0xff]
  %v175 = vld [vmem:[%s3 + $0x38] sm:$0xff]
  %v176 = vld [vmem:[%s3 + $0x40] sm:$0xff]
  %v177 = vld [vmem:[%s3 + $0x48] sm:$0xff]
  %v178 = vld [vmem:[%s3 + $0x50] sm:$0xff]
  %v179 = vld [vmem:[%s3 + $0x58] sm:$0xff]
  %v180 = vld [vmem:[%s3 + $0x60] sm:$0xff]
  %v181 = vld [vmem:[%s3 + $0x68] sm:$0xff]
  %v182 = vld [vmem:[%s3 + $0x70] sm:$0xff]
  %v183 = vld [vmem:[%s3 + $0x78] sm:$0xff]
  %v184 = vpack.c.bf16 %v161, %v160
  %v185 = vpack.c.bf16 %v163, %v162
  %v186 = vpack.c.bf16 %v165, %v164
  %v187 = vpack.c.bf16 %v167, %v166
  %v188 = vpack.c.bf16 %v170, %v168
  %v189 = vpack.c.bf16 %v171, %v169
  %v190 = vpack.c.bf16 %v174, %v172
  %v191 = vpack.c.bf16 %v175, %v173
  %v192 = vpack.c.bf16 %v178, %v176
  %v193 = vpack.c.bf16 %v179, %v177
  %v194 = vpack.c.bf16 %v182, %v180
  %v195 = vpack.c.bf16 %v183, %v181
  %v197 = vsel %vm74, %v184, 0
  %v200 = vsel %vm74, %v185, 0
  %v203 = vsel %vm74, %v186, 0
  %v206 = vsel %vm74, %v187, 0
  %208 = vmatprep.subr.bf16.mxu0 %v189
  %209 = vmatpush1.bf16.msra.mxu0 %v188
  %210 = vmatprep.subr.bf16.mxu0 %v191
  %211 = vmatpush1.bf16.msra.mxu0 %v190
  %212 = vmatprep.subr.bf16.mxu0 %v193
  %213 = vmatpush1.bf16.msra.mxu0 %v192
  %214 = vmatprep.subr.bf16.mxu0 %v195
  %215 = vmatpush1.bf16.msra.mxu0 %v194
  %216 = vmatprep.subr.bf16.mxu0 0
  %217 = vmatpush1.bf16.msra.mxu0 0
  %218 = vmatprep.subr.bf16.mxu0 0
  %219 = vmatpush1.bf16.msra.mxu0 0
  %220 = vmatprep.subr.bf16.mxu0 0
  %221 = vmatpush1.bf16.msra.mxu0 0
  %222 = vmatprep.subr.bf16.mxu0 0
  %223 = vmatpush1.bf16.msra.mxu0 0
  %224 = vmatprep.subr.bf16.mxu0 0
  %225 = vmatpush1.bf16.msra.mxu0 0
  %226 = vmatprep.subr.bf16.mxu0 0
  %227 = vmatpush1.bf16.msra.mxu0 0
  %228 = vmatprep.subr.bf16.mxu0 0
  %229 = vmatpush1.bf16.msra.mxu0 0
  %230 = vmatprep.subr.bf16.mxu0 0
  %231 = vmatpush1.bf16.msra.mxu0 0
  %232 = vmatprep.subr.bf16.mxu0 0
  %233 = vmatpush1.bf16.msra.mxu0 0
  %234 = vmatprep.subr.bf16.mxu0 0
  %235 = vmatpush1.bf16.msra.mxu0 0
  %236 = vmatprep.subr.bf16.mxu0 0
  %237 = vmatpush1.bf16.msra.mxu0 0
  %238 = vmatprep.subr.bf16.mxu0 0
  %239 = vmatpush1.bf16.msra.mxu0 0
  %240 = vmatprep.mubr.bf16.mxu0 0
  %241 = vmatmul.mubr.bf16.gmra.mrb[0].mxu0 %v197
  %v242 = vpop.f32.mrb[0].mxu0
  %v243 = vadd.f32 %v122, %v242
  %v244 = vpop.f32.mrb[0].mxu0
  %v245 = vadd.f32 %v124, %v244
  %v246 = vpop.f32.mrb[0].mxu0
  %v247 = vadd.f32 %v126, %v246
  %v248 = vpop.f32.mrb[0].mxu0
  %v249 = vadd.f32 %v128, %v248
  %250 = vmatprep.mubr.bf16.mxu0 0
  %251 = vmatmul.mubr.bf16.gmra.mrb[0].mxu0 %v200
  %v252 = vpop.f32.mrb[0].mxu0
  %v253 = vadd.f32 %v132, %v252
  %v254 = vpop.f32.mrb[0].mxu0
  %v255 = vadd.f32 %v134, %v254
  %v256 = vpop.f32.mrb[0].mxu0
  %v257 = vadd.f32 %v136, %v256
  %v258 = vpop.f32.mrb[0].mxu0
  %v259 = vadd.f32 %v138, %v258
  %260 = vmatprep.mubr.bf16.mxu0 0
  %261 = vmatmul.mubr.bf16.gmra.mrb[0].mxu0 %v203
  %v262 = vpop.f32.mrb[0].mxu0
  %v263 = vadd.f32 %v142, %v262
  %v264 = vpop.f32.mrb[0].mxu0
  %v265 = vadd.f32 %v144, %v264
  %v266 = vpop.f32.mrb[0].mxu0
  %v267 = vadd.f32 %v146, %v266
  %v268 = vpop.f32.mrb[0].mxu0
  %v269 = vadd.f32 %v148, %v268
  %270 = vmatprep.mubr.bf16.mxu0 0
  %271 = vmatmul.mubr.bf16.gmra.mrb[0].mxu0 %v206
  %v272 = vpop.f32.mrb[0].mxu0
  %v273 = vadd.f32 %v152, %v272
  %v274 = vpop.f32.mrb[0].mxu0
  %v275 = vadd.f32 %v154, %v274
  %v276 = vpop.f32.mrb[0].mxu0
  %v277 = vadd.f32 %v156, %v276
  %v278 = vpop.f32.mrb[0].mxu0
  %v279 = vadd.f32 %v158, %v278
  %280 = vdwg.mxu0
  %v281 = vmin.f32 %v243, 20.0
  %v282 = vmin.f32 %v245, 20.0
  %v283 = vmin.f32 %v247, 20.0
  %v284 = vmin.f32 %v249, 20.0
  %v285 = vmin.f32 %v253, 20.0
  %v286 = vmin.f32 %v255, 20.0
  %v287 = vmin.f32 %v257, 20.0
  %v288 = vmin.f32 %v259, 20.0
  %v289 = vmin.f32 %v263, 20.0
  %v290 = vmin.f32 %v265, 20.0
  %v291 = vmin.f32 %v267, 20.0
  %v292 = vmin.f32 %v269, 20.0
  %v293 = vmin.f32 %v273, 20.0
  %v294 = vmin.f32 %v275, 20.0
  %v295 = vmin.f32 %v277, 20.0
  %v296 = vmin.f32 %v279, 20.0
  %v297 = vmul.f32 %v281, 1.442695
  %v298 = vpow.pop %v297
  %v299 = vmul.f32 %v282, 1.442695
  %v300 = vpow.pop %v299
  %v301 = vmul.f32 %v283, 1.442695
  %v302 = vpow.pop %v301
  %v303 = vmul.f32 %v284, 1.442695
  %v304 = vpow.pop %v303
  %v305 = vmul.f32 %v285, 1.442695
  %v306 = vpow.pop %v305
  %v307 = vmul.f32 %v286, 1.442695
  %v308 = vpow.pop %v307
  %v309 = vmul.f32 %v287, 1.442695
  %v310 = vpow.pop %v309
  %v311 = vmul.f32 %v288, 1.442695
  %v312 = vpow.pop %v311
  %v313 = vmul.f32 %v289, 1.442695
  %v314 = vpow.pop %v313
  %v315 = vmul.f32 %v290, 1.442695
  %v316 = vpow.pop %v315
  %v317 = vmul.f32 %v291, 1.442695
  %v318 = vpow.pop %v317
  %v319 = vmul.f32 %v292, 1.442695
  %v320 = vpow.pop %v319
  %v321 = vmul.f32 %v293, 1.442695
  %v322 = vpow.pop %v321
  %v323 = vmul.f32 %v294, 1.442695
  %v324 = vpow.pop %v323
  %v325 = vmul.f32 %v295, 1.442695
  %v326 = vpow.pop %v325
  %v327 = vmul.f32 %v296, 1.442695
  %v328 = vpow.pop %v327
  %vm329 = vcmp.gt.f32.partialorder %v243, 20.0
  %vm330 = vcmp.gt.f32.partialorder %v245, 20.0
  %vm331 = vcmp.gt.f32.partialorder %v247, 20.0
  %vm332 = vcmp.gt.f32.partialorder %v249, 20.0
  %vm333 = vcmp.gt.f32.partialorder %v253, 20.0
  %vm334 = vcmp.gt.f32.partialorder %v255, 20.0
  %vm335 = vcmp.gt.f32.partialorder %v257, 20.0
  %vm336 = vcmp.gt.f32.partialorder %v259, 20.0
  %vm337 = vcmp.gt.f32.partialorder %v263, 20.0
  %vm338 = vcmp.gt.f32.partialorder %v265, 20.0
  %vm339 = vcmp.gt.f32.partialorder %v267, 20.0
  %vm340 = vcmp.gt.f32.partialorder %v269, 20.0
  %vm341 = vcmp.gt.f32.partialorder %v273, 20.0
  %vm342 = vcmp.gt.f32.partialorder %v275, 20.0
  %vm343 = vcmp.gt.f32.partialorder %v277, 20.0
  %vm344 = vcmp.gt.f32.partialorder %v279, 20.0
  %vm345 = vcmp.lt.f32.partialorder %v243, -15.0
  %vm346 = vcmp.lt.f32.partialorder %v245, -15.0
  %vm347 = vcmp.lt.f32.partialorder %v247, -15.0
  %vm348 = vcmp.lt.f32.partialorder %v249, -15.0
  %vm349 = vcmp.lt.f32.partialorder %v253, -15.0
  %vm350 = vcmp.lt.f32.partialorder %v255, -15.0
  %vm351 = vcmp.lt.f32.partialorder %v257, -15.0
  %vm352 = vcmp.lt.f32.partialorder %v259, -15.0
  %vm353 = vcmp.lt.f32.partialorder %v263, -15.0
  %vm354 = vcmp.lt.f32.partialorder %v265, -15.0
  %vm355 = vcmp.lt.f32.partialorder %v267, -15.0
  %vm356 = vcmp.lt.f32.partialorder %v269, -15.0
  %vm357 = vcmp.lt.f32.partialorder %v273, -15.0
  %vm358 = vcmp.lt.f32.partialorder %v275, -15.0
  %vm359 = vcmp.lt.f32.partialorder %v277, -15.0
  %vm360 = vcmp.lt.f32.partialorder %v279, -15.0
  %v361 = vadd.f32 %v298, 1.0
  %v362 = vadd.f32 %v300, 1.0
  %v363 = vadd.f32 %v302, 1.0
  %v364 = vadd.f32 %v304, 1.0
  %v365 = vadd.f32 %v306, 1.0
  %v366 = vadd.f32 %v308, 1.0
  %v367 = vadd.f32 %v310, 1.0
  %v368 = vadd.f32 %v312, 1.0
  %v369 = vadd.f32 %v314, 1.0
  %v370 = vadd.f32 %v316, 1.0
  %v371 = vadd.f32 %v318, 1.0
  %v372 = vadd.f32 %v320, 1.0
  %v373 = vadd.f32 %v322, 1.0
  %v374 = vadd.f32 %v324, 1.0
  %v375 = vadd.f32 %v326, 1.0
  %v376 = vadd.f32 %v328, 1.0
  %v377 = vlog2.pop %v361
  %v378 = vmul.f32 %v377, 0.6931472
  %v379 = vlog2.pop %v362
  %v380 = vmul.f32 %v379, 0.6931472
  %v381 = vlog2.pop %v363
  %v382 = vmul.f32 %v381, 0.6931472
  %v383 = vlog2.pop %v364
  %v384 = vmul.f32 %v383, 0.6931472
  %v385 = vlog2.pop %v365
  %v386 = vmul.f32 %v385, 0.6931472
  %v387 = vlog2.pop %v366
  %v388 = vmul.f32 %v387, 0.6931472
  %v389 = vlog2.pop %v367
  %v390 = vmul.f32 %v389, 0.6931472
  %v391 = vlog2.pop %v368
  %v392 = vmul.f32 %v391, 0.6931472
  %v393 = vlog2.pop %v369
  %v394 = vmul.f32 %v393, 0.6931472
  %v395 = vlog2.pop %v370
  %v396 = vmul.f32 %v395, 0.6931472
  %v397 = vlog2.pop %v371
  %v398 = vmul.f32 %v397, 0.6931472
  %v399 = vlog2.pop %v372
  %v400 = vmul.f32 %v399, 0.6931472
  %v401 = vlog2.pop %v373
  %v402 = vmul.f32 %v401, 0.6931472
  %v403 = vlog2.pop %v374
  %v404 = vmul.f32 %v403, 0.6931472
  %v405 = vlog2.pop %v375
  %v406 = vmul.f32 %v405, 0.6931472
  %v407 = vlog2.pop %v376
  %v408 = vmul.f32 %v407, 0.6931472
  %v409 = vsel %vm345, %v298, %v378
  %v410 = vsel %vm346, %v300, %v380
  %v411 = vsel %vm347, %v302, %v382
  %v412 = vsel %vm348, %v304, %v384
  %v413 = vsel %vm349, %v306, %v386
  %v414 = vsel %vm350, %v308, %v388
  %v415 = vsel %vm351, %v310, %v390
  %v416 = vsel %vm352, %v312, %v392
  %v417 = vsel %vm353, %v314, %v394
  %v418 = vsel %vm354, %v316, %v396
  %v419 = vsel %vm355, %v318, %v398
  %v420 = vsel %vm356, %v320, %v400
  %v421 = vsel %vm357, %v322, %v402
  %v422 = vsel %vm358, %v324, %v404
  %v423 = vsel %vm359, %v326, %v406
  %v424 = vsel %vm360, %v328, %v408
  %v425 = vsel %vm329, %v243, %v409
  %v426 = vsel %vm330, %v245, %v410
  %v427 = vsel %vm331, %v247, %v411
  %v428 = vsel %vm332, %v249, %v412
  %v429 = vsel %vm333, %v253, %v413
  %v430 = vsel %vm334, %v255, %v414
  %v431 = vsel %vm335, %v257, %v415
  %v432 = vsel %vm336, %v259, %v416
  %v433 = vsel %vm337, %v263, %v417
  %v434 = vsel %vm338, %v265, %v418
  %v435 = vsel %vm339, %v267, %v419
  %v436 = vsel %vm340, %v269, %v420
  %v437 = vsel %vm341, %v273, %v421
  %v438 = vsel %vm342, %v275, %v422
  %v439 = vsel %vm343, %v277, %v423
  %v440 = vsel %vm344, %v279, %v424
  %v441 = vld [vmem:[%s1] sm:$0xff]
  %v442 = vld [vmem:[%s1 + $0x8] sm:$0xff]
  %v443 = vld [vmem:[%s1 + $0x10] sm:$0xff]
  %v444 = vld [vmem:[%s1 + $0x18] sm:$0xff]
  %v445 = vld [vmem:[%s1 + $0x20] sm:$0xff]
  %v446 = vld [vmem:[%s1 + $0x28] sm:$0xff]
  %v447 = vld [vmem:[%s1 + $0x30] sm:$0xff]
  %v448 = vld [vmem:[%s1 + $0x38] sm:$0xff]
  %v449 = vpack.c.bf16 %v442, %v441
  %v450 = vpack.c.bf16 %v444, %v443
  %v451 = vpack.c.bf16 %v446, %v445
  %v452 = vpack.c.bf16 %v448, %v447
  %v454 = vsel %vm74, %v449, 0
  %v457 = vsel %vm74, %v450, 0
  %v460 = vsel %vm74, %v451, 0
  %v463 = vsel %vm74, %v452, 0
  %465 = vmatprep.subr.bf16.mxu0 %v189
  %466 = vmatpush1.bf16.msra.mxu0 %v188
  %467 = vmatprep.subr.bf16.mxu0 %v191
  %468 = vmatpush1.bf16.msra.mxu0 %v190
  %469 = vmatprep.subr.bf16.mxu0 %v193
  %470 = vmatpush1.bf16.msra.mxu0 %v192
  %471 = vmatprep.subr.bf16.mxu0 %v195
  %472 = vmatpush1.bf16.msra.mxu0 %v194
  %473 = vmatprep.subr.bf16.mxu0 0
  %474 = vmatpush1.bf16.msra.mxu0 0
  %475 = vmatprep.subr.bf16.mxu0 0
  %476 = vmatpush1.bf16.msra.mxu0 0
  %477 = vmatprep.subr.bf16.mxu0 0
  %478 = vmatpush1.bf16.msra.mxu0 0
  %479 = vmatprep.subr.bf16.mxu0 0
  %480 = vmatpush1.bf16.msra.mxu0 0
  %481 = vmatprep.subr.bf16.mxu0 0
  %482 = vmatpush1.bf16.msra.mxu0 0
  %483 = vmatprep.subr.bf16.mxu0 0
  %484 = vmatpush1.bf16.msra.mxu0 0
  %485 = vmatprep.subr.bf16.mxu0 0
  %486 = vmatpush1.bf16.msra.mxu0 0
  %487 = vmatprep.subr.bf16.mxu0 0
  %488 = vmatpush1.bf16.msra.mxu0 0
  %489 = vmatprep.subr.bf16.mxu0 0
  %490 = vmatpush1.bf16.msra.mxu0 0
  %491 = vmatprep.subr.bf16.mxu0 0
  %492 = vmatpush1.bf16.msra.mxu0 0
  %493 = vmatprep.subr.bf16.mxu0 0
  %494 = vmatpush1.bf16.msra.mxu0 0
  %495 = vmatprep.subr.bf16.mxu0 0
  %496 = vmatpush1.bf16.msra.mxu0 0
  %497 = vmatprep.mubr.bf16.mxu0 0
  %498 = vmatmul.mubr.bf16.gmra.mrb[0].mxu0 %v454
  %v499 = vpop.f32.mrb[0].mxu0
  %v500 = vadd.f32 %v122, %v499
  %v501 = vpop.f32.mrb[0].mxu0
  %v502 = vadd.f32 %v124, %v501
  %v503 = vpop.f32.mrb[0].mxu0
  %v504 = vadd.f32 %v126, %v503
  %v505 = vpop.f32.mrb[0].mxu0
  %v506 = vadd.f32 %v128, %v505
  %507 = vmatprep.mubr.bf16.mxu0 0
  %508 = vmatmul.mubr.bf16.gmra.mrb[0].mxu0 %v457
  %v509 = vpop.f32.mrb[0].mxu0
  %v510 = vadd.f32 %v132, %v509
  %v511 = vpop.f32.mrb[0].mxu0
  %v512 = vadd.f32 %v134, %v511
  %v513 = vpop.f32.mrb[0].mxu0
  %v514 = vadd.f32 %v136, %v513
  %v515 = vpop.f32.mrb[0].mxu0
  %v516 = vadd.f32 %v138, %v515
  %517 = vmatprep.mubr.bf16.mxu0 0
  %518 = vmatmul.mubr.bf16.gmra.mrb[0].mxu0 %v460
  %v519 = vpop.f32.mrb[0].mxu0
  %v520 = vadd.f32 %v142, %v519
  %v521 = vpop.f32.mrb[0].mxu0
  %v522 = vadd.f32 %v144, %v521
  %v523 = vpop.f32.mrb[0].mxu0
  %v524 = vadd.f32 %v146, %v523
  %v525 = vpop.f32.mrb[0].mxu0
  %v526 = vadd.f32 %v148, %v525
  %527 = vmatprep.mubr.bf16.mxu0 0
  %528 = vmatmul.mubr.bf16.gmra.mrb[0].mxu0 %v463
  %v529 = vpop.f32.mrb[0].mxu0
  %v530 = vadd.f32 %v152, %v529
  %v531 = vpop.f32.mrb[0].mxu0
  %v532 = vadd.f32 %v154, %v531
  %v533 = vpop.f32.mrb[0].mxu0
  %v534 = vadd.f32 %v156, %v533
  %v535 = vpop.f32.mrb[0].mxu0
  %v536 = vadd.f32 %v158, %v535
  %537 = vdwg.mxu0
  %v538 = vmin.f32 %v500, 20.0
  %v539 = vmin.f32 %v502, 20.0
  %v540 = vmin.f32 %v504, 20.0
  %v541 = vmin.f32 %v506, 20.0
  %v542 = vmin.f32 %v510, 20.0
  %v543 = vmin.f32 %v512, 20.0
  %v544 = vmin.f32 %v514, 20.0
  %v545 = vmin.f32 %v516, 20.0
  %v546 = vmin.f32 %v520, 20.0
  %v547 = vmin.f32 %v522, 20.0
  %v548 = vmin.f32 %v524, 20.0
  %v549 = vmin.f32 %v526, 20.0
  %v550 = vmin.f32 %v530, 20.0
  %v551 = vmin.f32 %v532, 20.0
  %v552 = vmin.f32 %v534, 20.0
  %v553 = vmin.f32 %v536, 20.0
  %v554 = vmul.f32 %v538, 1.442695
  %v555 = vpow.pop %v554
  %v556 = vmul.f32 %v539, 1.442695
  %v557 = vpow.pop %v556
  %v558 = vmul.f32 %v540, 1.442695
  %v559 = vpow.pop %v558
  %v560 = vmul.f32 %v541, 1.442695
  %v561 = vpow.pop %v560
  %v562 = vmul.f32 %v542, 1.442695
  %v563 = vpow.pop %v562
  %v564 = vmul.f32 %v543, 1.442695
  %v565 = vpow.pop %v564
  %v566 = vmul.f32 %v544, 1.442695
  %v567 = vpow.pop %v566
  %v568 = vmul.f32 %v545, 1.442695
  %v569 = vpow.pop %v568
  %v570 = vmul.f32 %v546, 1.442695
  %v571 = vpow.pop %v570
  %v572 = vmul.f32 %v547, 1.442695
  %v573 = vpow.pop %v572
  %v574 = vmul.f32 %v548, 1.442695
  %v575 = vpow.pop %v574
  %v576 = vmul.f32 %v549, 1.442695
  %v577 = vpow.pop %v576
  %v578 = vmul.f32 %v550, 1.442695
  %v579 = vpow.pop %v578
  %v580 = vmul.f32 %v551, 1.442695
  %v581 = vpow.pop %v580
  %v582 = vmul.f32 %v552, 1.442695
  %v583 = vpow.pop %v582
  %v584 = vmul.f32 %v553, 1.442695
  %v585 = vpow.pop %v584
  %vm586 = vcmp.gt.f32.partialorder %v500, 20.0
  %vm587 = vcmp.gt.f32.partialorder %v502, 20.0
  %vm588 = vcmp.gt.f32.partialorder %v504, 20.0
  %vm589 = vcmp.gt.f32.partialorder %v506, 20.0
  %vm590 = vcmp.gt.f32.partialorder %v510, 20.0
  %vm591 = vcmp.gt.f32.partialorder %v512, 20.0
  %vm592 = vcmp.gt.f32.partialorder %v514, 20.0
  %vm593 = vcmp.gt.f32.partialorder %v516, 20.0
  %vm594 = vcmp.gt.f32.partialorder %v520, 20.0
  %vm595 = vcmp.gt.f32.partialorder %v522, 20.0
  %vm596 = vcmp.gt.f32.partialorder %v524, 20.0
  %vm597 = vcmp.gt.f32.partialorder %v526, 20.0
  %vm598 = vcmp.gt.f32.partialorder %v530, 20.0
  %vm599 = vcmp.gt.f32.partialorder %v532, 20.0
  %vm600 = vcmp.gt.f32.partialorder %v534, 20.0
  %vm601 = vcmp.gt.f32.partialorder %v536, 20.0
  %vm602 = vcmp.lt.f32.partialorder %v500, -15.0
  %vm603 = vcmp.lt.f32.partialorder %v502, -15.0
  %vm604 = vcmp.lt.f32.partialorder %v504, -15.0
  %vm605 = vcmp.lt.f32.partialorder %v506, -15.0
  %vm606 = vcmp.lt.f32.partialorder %v510, -15.0
  %vm607 = vcmp.lt.f32.partialorder %v512, -15.0
  %vm608 = vcmp.lt.f32.partialorder %v514, -15.0
  %vm609 = vcmp.lt.f32.partialorder %v516, -15.0
  %vm610 = vcmp.lt.f32.partialorder %v520, -15.0
  %vm611 = vcmp.lt.f32.partialorder %v522, -15.0
  %vm612 = vcmp.lt.f32.partialorder %v524, -15.0
  %vm613 = vcmp.lt.f32.partialorder %v526, -15.0
  %vm614 = vcmp.lt.f32.partialorder %v530, -15.0
  %vm615 = vcmp.lt.f32.partialorder %v532, -15.0
  %vm616 = vcmp.lt.f32.partialorder %v534, -15.0
  %vm617 = vcmp.lt.f32.partialorder %v536, -15.0
  %v618 = vadd.f32 %v555, 1.0
  %v619 = vadd.f32 %v557, 1.0
  %v620 = vadd.f32 %v559, 1.0
  %v621 = vadd.f32 %v561, 1.0
  %v622 = vadd.f32 %v563, 1.0
  %v623 = vadd.f32 %v565, 1.0
  %v624 = vadd.f32 %v567, 1.0
  %v625 = vadd.f32 %v569, 1.0
  %v626 = vadd.f32 %v571, 1.0
  %v627 = vadd.f32 %v573, 1.0
  %v628 = vadd.f32 %v575, 1.0
  %v629 = vadd.f32 %v577, 1.0
  %v630 = vadd.f32 %v579, 1.0
  %v631 = vadd.f32 %v581, 1.0
  %v632 = vadd.f32 %v583, 1.0
  %v633 = vadd.f32 %v585, 1.0
  %v634 = vlog2.pop %v618
  %v635 = vmul.f32 %v634, 0.6931472
  %v636 = vlog2.pop %v619
  %v637 = vmul.f32 %v636, 0.6931472
  %v638 = vlog2.pop %v620
  %v639 = vmul.f32 %v638, 0.6931472
  %v640 = vlog2.pop %v621
  %v641 = vmul.f32 %v640, 0.6931472
  %v642 = vlog2.pop %v622
  %v643 = vmul.f32 %v642, 0.6931472
  %v644 = vlog2.pop %v623
  %v645 = vmul.f32 %v644, 0.6931472
  %v646 = vlog2.pop %v624
  %v647 = vmul.f32 %v646, 0.6931472
  %v648 = vlog2.pop %v625
  %v649 = vmul.f32 %v648, 0.6931472
  %v650 = vlog2.pop %v626
  %v651 = vmul.f32 %v650, 0.6931472
  %v652 = vlog2.pop %v627
  %v653 = vmul.f32 %v652, 0.6931472
  %v654 = vlog2.pop %v628
  %v655 = vmul.f32 %v654, 0.6931472
  %v656 = vlog2.pop %v629
  %v657 = vmul.f32 %v656, 0.6931472
  %v658 = vlog2.pop %v630
  %v659 = vmul.f32 %v658, 0.6931472
  %v660 = vlog2.pop %v631
  %v661 = vmul.f32 %v660, 0.6931472
  %v662 = vlog2.pop %v632
  %v663 = vmul.f32 %v662, 0.6931472
  %v664 = vlog2.pop %v633
  %v665 = vmul.f32 %v664, 0.6931472
  %v666 = vsel %vm602, %v555, %v635
  %v667 = vsel %vm603, %v557, %v637
  %v668 = vsel %vm604, %v559, %v639
  %v669 = vsel %vm605, %v561, %v641
  %v670 = vsel %vm606, %v563, %v643
  %v671 = vsel %vm607, %v565, %v645
  %v672 = vsel %vm608, %v567, %v647
  %v673 = vsel %vm609, %v569, %v649
  %v674 = vsel %vm610, %v571, %v651
  %v675 = vsel %vm611, %v573, %v653
  %v676 = vsel %vm612, %v575, %v655
  %v677 = vsel %vm613, %v577, %v657
  %v678 = vsel %vm614, %v579, %v659
  %v679 = vsel %vm615, %v581, %v661
  %v680 = vsel %vm616, %v583, %v663
  %v681 = vsel %vm617, %v585, %v665
  %v682 = vsel %vm586, %v500, %v666
  %v683 = vsel %vm587, %v502, %v667
  %v684 = vsel %vm588, %v504, %v668
  %v685 = vsel %vm589, %v506, %v669
  %v686 = vsel %vm590, %v510, %v670
  %v687 = vsel %vm591, %v512, %v671
  %v688 = vsel %vm592, %v514, %v672
  %v689 = vsel %vm593, %v516, %v673
  %v690 = vsel %vm594, %v520, %v674
  %v691 = vsel %vm595, %v522, %v675
  %v692 = vsel %vm596, %v524, %v676
  %v693 = vsel %vm597, %v526, %v677
  %v694 = vsel %vm598, %v530, %v678
  %v695 = vsel %vm599, %v532, %v679
  %v696 = vsel %vm600, %v534, %v680
  %v697 = vsel %vm601, %v536, %v681
  %v698 = vld [vmem:[%s5] sm:$0x3]
  %v700 = vlaneseq
  %v701 = vshrl.u32 %v700, 7
  %v702 = vsub.s32 0, %v701
  %v703 = vrot.slane %v698, %v702
  %v704 = vlaneseq
  %v705 = vshrl.u32 %v704, 7
  %v706 = vsub.s32 1, %v705
  %v707 = vrot.slane %v698, %v706
  %v710 = vmul.f32 %v425, %v703
  %v711 = vmul.f32 %v426, %v707
  %v712 = vmul.f32 %v427, %v703
  %v713 = vmul.f32 %v428, %v707
  %v714 = vmul.f32 %v429, %v703
  %v715 = vmul.f32 %v430, %v707
  %v716 = vmul.f32 %v431, %v703
  %v717 = vmul.f32 %v432, %v707
  %v718 = vmul.f32 %v433, %v703
  %v719 = vmul.f32 %v434, %v707
  %v720 = vmul.f32 %v435, %v703
  %v721 = vmul.f32 %v436, %v707
  %v722 = vmul.f32 %v437, %v703
  %v723 = vmul.f32 %v438, %v707
  %v724 = vmul.f32 %v439, %v703
  %v725 = vmul.f32 %v440, %v707
  %v726 = vld [vmem:[%s6] sm:$0x3]
  %v728 = vlaneseq
  %v729 = vshrl.u32 %v728, 7
  %v730 = vsub.s32 0, %v729
  %v731 = vrot.slane %v726, %v730
  %v732 = vlaneseq
  %v733 = vshrl.u32 %v732, 7
  %v734 = vsub.s32 1, %v733
  %v735 = vrot.slane %v726, %v734
  %v738 = vmul.f32 %v682, %v731
  %v739 = vmul.f32 %v683, %v735
  %v740 = vmul.f32 %v684, %v731
  %v741 = vmul.f32 %v685, %v735
  %v742 = vmul.f32 %v686, %v731
  %v743 = vmul.f32 %v687, %v735
  %v744 = vmul.f32 %v688, %v731
  %v745 = vmul.f32 %v689, %v735
  %v746 = vmul.f32 %v690, %v731
  %v747 = vmul.f32 %v691, %v735
  %v748 = vmul.f32 %v692, %v731
  %v749 = vmul.f32 %v693, %v735
  %v750 = vmul.f32 %v694, %v731
  %v751 = vmul.f32 %v695, %v735
  %v752 = vmul.f32 %v696, %v731
  %v753 = vmul.f32 %v697, %v735
  %v754 = vadd.f32 %v710, %v738
  %v755 = vadd.f32 %v711, %v739
  %v756 = vadd.f32 %v712, %v740
  %v757 = vadd.f32 %v713, %v741
  %v758 = vadd.f32 %v714, %v742
  %v759 = vadd.f32 %v715, %v743
  %v760 = vadd.f32 %v716, %v744
  %v761 = vadd.f32 %v717, %v745
  %v762 = vadd.f32 %v718, %v746
  %v763 = vadd.f32 %v719, %v747
  %v764 = vadd.f32 %v720, %v748
  %v765 = vadd.f32 %v721, %v749
  %v766 = vadd.f32 %v722, %v750
  %v767 = vadd.f32 %v723, %v751
  %v768 = vadd.f32 %v724, %v752
  %v769 = vadd.f32 %v725, %v753
  %v770 = vld [vmem:[%s7] sm:$0xff]
  %v771 = vld [vmem:[%s7 + $0x8] sm:$0xff]
  %v772 = vld [vmem:[%s7 + $0x10] sm:$0xff]
  %v773 = vld [vmem:[%s7 + $0x18] sm:$0xff]
  %v774 = vld [vmem:[%s7 + $0x20] sm:$0xff]
  %v775 = vld [vmem:[%s7 + $0x28] sm:$0xff]
  %v776 = vld [vmem:[%s7 + $0x30] sm:$0xff]
  %v777 = vld [vmem:[%s7 + $0x38] sm:$0xff]
  %v778 = vld [vmem:[%s7 + $0x40] sm:$0xff]
  %v779 = vld [vmem:[%s7 + $0x48] sm:$0xff]
  %v780 = vld [vmem:[%s7 + $0x50] sm:$0xff]
  %v781 = vld [vmem:[%s7 + $0x58] sm:$0xff]
  %v782 = vld [vmem:[%s7 + $0x60] sm:$0xff]
  %v783 = vld [vmem:[%s7 + $0x68] sm:$0xff]
  %v784 = vld [vmem:[%s7 + $0x70] sm:$0xff]
  %v785 = vld [vmem:[%s7 + $0x78] sm:$0xff]
  %v786 = vld [vmem:[%s7 + $0x80] sm:$0xff]
  %v787 = vld [vmem:[%s7 + $0x88] sm:$0xff]
  %v788 = vld [vmem:[%s7 + $0x90] sm:$0xff]
  %v789 = vld [vmem:[%s7 + $0x98] sm:$0xff]
  %v790 = vld [vmem:[%s7 + $0xa0] sm:$0xff]
  %v791 = vld [vmem:[%s7 + $0xa8] sm:$0xff]
  %v792 = vld [vmem:[%s7 + $0xb0] sm:$0xff]
  %v793 = vld [vmem:[%s7 + $0xb8] sm:$0xff]
  %v794 = vld [vmem:[%s7 + $0xc0] sm:$0xff]
  %v795 = vld [vmem:[%s7 + $0xc8] sm:$0xff]
  %v796 = vld [vmem:[%s7 + $0xd0] sm:$0xff]
  %v797 = vld [vmem:[%s7 + $0xd8] sm:$0xff]
  %v798 = vld [vmem:[%s7 + $0xe0] sm:$0xff]
  %v799 = vld [vmem:[%s7 + $0xe8] sm:$0xff]
  %v800 = vld [vmem:[%s7 + $0xf0] sm:$0xff]
  %v801 = vld [vmem:[%s7 + $0xf8] sm:$0xff]
  %802 = vmatprep.subr.mxu0 0.0
  %803 = vmatpush1.msra.mxu0 %v770
  %804 = vmatprep.subr.mxu0 0.0
  %805 = vmatpush1.msra.mxu0 %v771
  %806 = vmatprep.subr.mxu0 0.0
  %807 = vmatpush1.msra.mxu0 %v772
  %808 = vmatprep.subr.mxu0 0.0
  %809 = vmatpush1.msra.mxu0 %v773
  %810 = vmatprep.subr.mxu0 0.0
  %811 = vmatpush1.msra.mxu0 %v774
  %812 = vmatprep.subr.mxu0 0.0
  %813 = vmatpush1.msra.mxu0 %v775
  %814 = vmatprep.subr.mxu0 0.0
  %815 = vmatpush1.msra.mxu0 %v776
  %816 = vmatprep.subr.mxu0 0.0
  %817 = vmatpush1.msra.mxu0 %v777
  %818 = vmatprep.subr.mxu0 0.0
  %819 = vmatpush1.msra.mxu0 %v778
  %820 = vmatprep.subr.mxu0 0.0
  %821 = vmatpush1.msra.mxu0 %v779
  %822 = vmatprep.subr.mxu0 0.0
  %823 = vmatpush1.msra.mxu0 %v780
  %824 = vmatprep.subr.mxu0 0.0
  %825 = vmatpush1.msra.mxu0 %v781
  %826 = vmatprep.subr.mxu0 0.0
  %827 = vmatpush1.msra.mxu0 %v782
  %828 = vmatprep.subr.mxu0 0.0
  %829 = vmatpush1.msra.mxu0 %v783
  %830 = vmatprep.subr.mxu0 0.0
  %831 = vmatpush1.msra.mxu0 %v784
  %832 = vmatprep.subr.mxu0 0.0
  %833 = vmatpush1.msra.mxu0 %v785
  %834 = vmatprep.subr.mxu0 0.0
  %835 = vmatpush1.msra.mxu0 %v786
  %836 = vmatprep.subr.mxu0 0.0
  %837 = vmatpush1.msra.mxu0 %v787
  %838 = vmatprep.subr.mxu0 0.0
  %839 = vmatpush1.msra.mxu0 %v788
  %840 = vmatprep.subr.mxu0 0.0
  %841 = vmatpush1.msra.mxu0 %v789
  %842 = vmatprep.subr.mxu0 0.0
  %843 = vmatpush1.msra.mxu0 %v790
  %844 = vmatprep.subr.mxu0 0.0
  %845 = vmatpush1.msra.mxu0 %v791
  %846 = vmatprep.subr.mxu0 0.0
  %847 = vmatpush1.msra.mxu0 %v792
  %848 = vmatprep.subr.mxu0 0.0
  %849 = vmatpush1.msra.mxu0 %v793
  %850 = vmatprep.subr.mxu0 0.0
  %851 = vmatpush1.msra.mxu0 %v794
  %852 = vmatprep.subr.mxu0 0.0
  %853 = vmatpush1.msra.mxu0 %v795
  %854 = vmatprep.subr.mxu0 0.0
  %855 = vmatpush1.msra.mxu0 %v796
  %856 = vmatprep.subr.mxu0 0.0
  %857 = vmatpush1.msra.mxu0 %v797
  %858 = vmatprep.subr.mxu0 0.0
  %859 = vmatpush1.msra.mxu0 %v798
  %860 = vmatprep.subr.mxu0 0.0
  %861 = vmatpush1.msra.mxu0 %v799
  %862 = vmatprep.subr.mxu0 0.0
  %863 = vmatpush1.msra.mxu0 %v800
  %864 = vmatprep.subr.mxu0 0.0
  %865 = vmatpush1.msra.mxu0 %v801
  %866 = vmatprep.mubr.f32.mxu0 %v755
  %867 = vmatmul.mubr.f32.gmra.mrb[0].mxu0 %v754
  %v868 = vpop.f32.mrb[0].mxu0
  %v869 = vadd.f32 0.0, %v868
  %v870 = vpop.f32.mrb[0].mxu0
  %871 = vmatprep.mubr.f32.mxu0 %v757
  %872 = vmatmul.mubr.f32.gmra.mrb[0].mxu0 %v756
  %v873 = vpop.f32.mrb[0].mxu0
  %v874 = vadd.f32 0.0, %v873
  %v875 = vpop.f32.mrb[0].mxu0
  %876 = vmatprep.mubr.f32.mxu0 %v759
  %877 = vmatmul.mubr.f32.gmra.mrb[0].mxu0 %v758
  %v878 = vpop.f32.mrb[0].mxu0
  %v879 = vadd.f32 0.0, %v878
  %v880 = vpop.f32.mrb[0].mxu0
  %881 = vmatprep.mubr.f32.mxu0 %v761
  %882 = vmatmul.mubr.f32.gmra.mrb[0].mxu0 %v760
  %v883 = vpop.f32.mrb[0].mxu0
  %v884 = vadd.f32 0.0, %v883
  %v885 = vpop.f32.mrb[0].mxu0
  %886 = vmatprep.mubr.f32.mxu0 %v763
  %887 = vmatmul.mubr.f32.gmra.mrb[0].mxu0 %v762
  %v888 = vpop.f32.mrb[0].mxu0
  %v889 = vadd.f32 0.0, %v888
  %v890 = vpop.f32.mrb[0].mxu0
  %891 = vmatprep.mubr.f32.mxu0 %v765
  %892 = vmatmul.mubr.f32.gmra.mrb[0].mxu0 %v764
  %v893 = vpop.f32.mrb[0].mxu0
  %v894 = vadd.f32 0.0, %v893
  %v895 = vpop.f32.mrb[0].mxu0
  %896 = vmatprep.mubr.f32.mxu0 %v767
  %897 = vmatmul.mubr.f32.gmra.mrb[0].mxu0 %v766
  %v898 = vpop.f32.mrb[0].mxu0
  %v899 = vadd.f32 0.0, %v898
  %v900 = vpop.f32.mrb[0].mxu0
  %901 = vmatprep.mubr.f32.mxu0 %v769
  %902 = vmatmul.mubr.f32.gmra.mrb[0].mxu0 %v768
  %v903 = vpop.f32.mrb[0].mxu0
  %v904 = vadd.f32 0.0, %v903
  %v905 = vpop.f32.mrb[0].mxu0
  %906 = vdwg.mxu0
  %v907 = vmin.f32 %v869, 20.0
  %v908 = vmin.f32 %v874, 20.0
  %v909 = vmin.f32 %v879, 20.0
  %v910 = vmin.f32 %v884, 20.0
  %v911 = vmin.f32 %v889, 20.0
  %v912 = vmin.f32 %v894, 20.0
  %v913 = vmin.f32 %v899, 20.0
  %v914 = vmin.f32 %v904, 20.0
  %v915 = vmul.f32 %v907, 1.442695
  %v916 = vpow.pop %v915
  %v917 = vmul.f32 %v908, 1.442695
  %v918 = vpow.pop %v917
  %v919 = vmul.f32 %v909, 1.442695
  %v920 = vpow.pop %v919
  %v921 = vmul.f32 %v910, 1.442695
  %v922 = vpow.pop %v921
  %v923 = vmul.f32 %v911, 1.442695
  %v924 = vpow.pop %v923
  %v925 = vmul.f32 %v912, 1.442695
  %v926 = vpow.pop %v925
  %v927 = vmul.f32 %v913, 1.442695
  %v928 = vpow.pop %v927
  %v929 = vmul.f32 %v914, 1.442695
  %v930 = vpow.pop %v929
  %vm931 = vcmp.gt.f32.partialorder %v869, 20.0
  %vm932 = vcmp.gt.f32.partialorder %v874, 20.0
  %vm933 = vcmp.gt.f32.partialorder %v879, 20.0
  %vm934 = vcmp.gt.f32.partialorder %v884, 20.0
  %vm935 = vcmp.gt.f32.partialorder %v889, 20.0
  %vm936 = vcmp.gt.f32.partialorder %v894, 20.0
  %vm937 = vcmp.gt.f32.partialorder %v899, 20.0
  %vm938 = vcmp.gt.f32.partialorder %v904, 20.0
  %vm939 = vcmp.lt.f32.partialorder %v869, -15.0
  %vm940 = vcmp.lt.f32.partialorder %v874, -15.0
  %vm941 = vcmp.lt.f32.partialorder %v879, -15.0
  %vm942 = vcmp.lt.f32.partialorder %v884, -15.0
  %vm943 = vcmp.lt.f32.partialorder %v889, -15.0
  %vm944 = vcmp.lt.f32.partialorder %v894, -15.0
  %vm945 = vcmp.lt.f32.partialorder %v899, -15.0
  %vm946 = vcmp.lt.f32.partialorder %v904, -15.0
  %v947 = vadd.f32 %v916, 1.0
  %v948 = vadd.f32 %v918, 1.0
  %v949 = vadd.f32 %v920, 1.0
  %v950 = vadd.f32 %v922, 1.0
  %v951 = vadd.f32 %v924, 1.0
  %v952 = vadd.f32 %v926, 1.0
  %v953 = vadd.f32 %v928, 1.0
  %v954 = vadd.f32 %v930, 1.0
  %v955 = vlog2.pop %v947
  %v956 = vmul.f32 %v955, 0.6931472
  %v957 = vlog2.pop %v948
  %v958 = vmul.f32 %v957, 0.6931472
  %v959 = vlog2.pop %v949
  %v960 = vmul.f32 %v959, 0.6931472
  %v961 = vlog2.pop %v950
  %v962 = vmul.f32 %v961, 0.6931472
  %v963 = vlog2.pop %v951
  %v964 = vmul.f32 %v963, 0.6931472
  %v965 = vlog2.pop %v952
  %v966 = vmul.f32 %v965, 0.6931472
  %v967 = vlog2.pop %v953
  %v968 = vmul.f32 %v967, 0.6931472
  %v969 = vlog2.pop %v954
  %v970 = vmul.f32 %v969, 0.6931472
  %v971 = vsel %vm939, %v916, %v956
  %v972 = vsel %vm940, %v918, %v958
  %v973 = vsel %vm941, %v920, %v960
  %v974 = vsel %vm942, %v922, %v962
  %v975 = vsel %vm943, %v924, %v964
  %v976 = vsel %vm944, %v926, %v966
  %v977 = vsel %vm945, %v928, %v968
  %v978 = vsel %vm946, %v930, %v970
  %v979 = vsel %vm931, %v869, %v971
  %v980 = vsel %vm932, %v874, %v972
  %v981 = vsel %vm933, %v879, %v973
  %v982 = vsel %vm934, %v884, %v974
  %v983 = vsel %vm935, %v889, %v975
  %v984 = vsel %vm936, %v894, %v976
  %v985 = vsel %vm937, %v899, %v977
  %v986 = vsel %vm938, %v904, %v978
  %v987 = vld [vmem:[%s8] sm:$0x1]
  %v989 = vlaneseq
  %v990 = vshrl.u32 %v989, 7
  %v991 = vsub.s32 0, %v990
  %v992 = vrot.slane %v987, %v991
  %v994 = vmul.f32 %v979, %v992
  %v995 = vmul.f32 %v980, %v992
  %v996 = vmul.f32 %v981, %v992
  %v997 = vmul.f32 %v982, %v992
  %v998 = vmul.f32 %v983, %v992
  %v999 = vmul.f32 %v984, %v992
  %v1000 = vmul.f32 %v985, %v992
  %v1001 = vmul.f32 %v986, %v992
  %v1002 = vld [vmem:[%s9] sm:$0x1]
  %v1004 = vlaneseq
  %v1005 = vshrl.u32 %v1004, 7
  %v1006 = vsub.s32 0, %v1005
  %v1007 = vrot.slane %v1002, %v1006
  %v1009 = vadd.f32 %v994, %v1007
  %v1010 = vadd.f32 %v995, %v1007
  %v1011 = vadd.f32 %v996, %v1007
  %v1012 = vadd.f32 %v997, %v1007
  %v1013 = vadd.f32 %v998, %v1007
  %v1014 = vadd.f32 %v999, %v1007
  %v1015 = vadd.f32 %v1000, %v1007
  %v1016 = vadd.f32 %v1001, %v1007
  %v1017 = vmin.f32 %v1009, 20.0
  %v1018 = vmin.f32 %v1010, 20.0
  %v1019 = vmin.f32 %v1011, 20.0
  %v1020 = vmin.f32 %v1012, 20.0
  %v1021 = vmin.f32 %v1013, 20.0
  %v1022 = vmin.f32 %v1014, 20.0
  %v1023 = vmin.f32 %v1015, 20.0
  %v1024 = vmin.f32 %v1016, 20.0
  %v1025 = vmul.f32 %v1017, 1.442695
  %v1026 = vpow.pop %v1025
  %v1027 = vmul.f32 %v1018, 1.442695
  %v1028 = vpow.pop %v1027
  %v1029 = vmul.f32 %v1019, 1.442695
  %v1030 = vpow.pop %v1029
  %v1031 = vmul.f32 %v1020, 1.442695
  %v1032 = vpow.pop %v1031
  %v1033 = vmul.f32 %v1021, 1.442695
  %v1034 = vpow.pop %v1033
  %v1035 = vmul.f32 %v1022, 1.442695
  %v1036 = vpow.pop %v1035
  %v1037 = vmul.f32 %v1023, 1.442695
  %v1038 = vpow.pop %v1037
  %v1039 = vmul.f32 %v1024, 1.442695
  %v1040 = vpow.pop %v1039
  %vm1041 = vcmp.gt.f32.partialorder %v1009, 20.0
  %vm1042 = vcmp.gt.f32.partialorder %v1010, 20.0
  %vm1043 = vcmp.gt.f32.partialorder %v1011, 20.0
  %vm1044 = vcmp.gt.f32.partialorder %v1012, 20.0
  %vm1045 = vcmp.gt.f32.partialorder %v1013, 20.0
  %vm1046 = vcmp.gt.f32.partialorder %v1014, 20.0
  %vm1047 = vcmp.gt.f32.partialorder %v1015, 20.0
  %vm1048 = vcmp.gt.f32.partialorder %v1016, 20.0
  %vm1049 = vcmp.lt.f32.partialorder %v1009, -15.0
  %vm1050 = vcmp.lt.f32.partialorder %v1010, -15.0
  %vm1051 = vcmp.lt.f32.partialorder %v1011, -15.0
  %vm1052 = vcmp.lt.f32.partialorder %v1012, -15.0
  %vm1053 = vcmp.lt.f32.partialorder %v1013, -15.0
  %vm1054 = vcmp.lt.f32.partialorder %v1014, -15.0
  %vm1055 = vcmp.lt.f32.partialorder %v1015, -15.0
  %vm1056 = vcmp.lt.f32.partialorder %v1016, -15.0
  %v1057 = vadd.f32 %v1026, 1.0
  %v1058 = vadd.f32 %v1028, 1.0
  %v1059 = vadd.f32 %v1030, 1.0
  %v1060 = vadd.f32 %v1032, 1.0
  %v1061 = vadd.f32 %v1034, 1.0
  %v1062 = vadd.f32 %v1036, 1.0
  %v1063 = vadd.f32 %v1038, 1.0
  %v1064 = vadd.f32 %v1040, 1.0
  %v1065 = vlog2.pop %v1057
  %v1066 = vmul.f32 %v1065, 0.6931472
  %v1067 = vlog2.pop %v1058
  %v1068 = vmul.f32 %v1067, 0.6931472
  %v1069 = vlog2.pop %v1059
  %v1070 = vmul.f32 %v1069, 0.6931472
  %v1071 = vlog2.pop %v1060
  %v1072 = vmul.f32 %v1071, 0.6931472
  %v1073 = vlog2.pop %v1061
  %v1074 = vmul.f32 %v1073, 0.6931472
  %v1075 = vlog2.pop %v1062
  %v1076 = vmul.f32 %v1075, 0.6931472
  %v1077 = vlog2.pop %v1063
  %v1078 = vmul.f32 %v1077, 0.6931472
  %v1079 = vlog2.pop %v1064
  %v1080 = vmul.f32 %v1079, 0.6931472
  %v1081 = vsel %vm1049, %v1026, %v1066
  %v1082 = vsel %vm1050, %v1028, %v1068
  %v1083 = vsel %vm1051, %v1030, %v1070
  %v1084 = vsel %vm1052, %v1032, %v1072
  %v1085 = vsel %vm1053, %v1034, %v1074
  %v1086 = vsel %vm1054, %v1036, %v1076
  %v1087 = vsel %vm1055, %v1038, %v1078
  %v1088 = vsel %vm1056, %v1040, %v1080
  %v1089 = vsel %vm1041, %v1009, %v1081
  %v1090 = vsel %vm1042, %v1010, %v1082
  %v1091 = vsel %vm1043, %v1011, %v1083
  %v1092 = vsel %vm1044, %v1012, %v1084
  %v1093 = vsel %vm1045, %v1013, %v1085
  %v1094 = vsel %vm1046, %v1014, %v1086
  %v1095 = vsel %vm1047, %v1015, %v1087
  %v1096 = vsel %vm1048, %v1016, %v1088
  %1097 = vst [vmem:[%s10] sm:$0xff] %v682
  %1098 = vst [vmem:[%s10 + $0x8] sm:$0xff] %v683
  %1099 = vst [vmem:[%s10 + $0x10] sm:$0xff] %v684
  %1100 = vst [vmem:[%s10 + $0x18] sm:$0xff] %v685
  %1101 = vst [vmem:[%s10 + $0x20] sm:$0xff] %v686
  %1102 = vst [vmem:[%s10 + $0x28] sm:$0xff] %v687
  %1103 = vst [vmem:[%s10 + $0x30] sm:$0xff] %v688
  %1104 = vst [vmem:[%s10 + $0x38] sm:$0xff] %v689
  %1105 = vst [vmem:[%s10 + $0x40] sm:$0xff] %v690
  %1106 = vst [vmem:[%s10 + $0x48] sm:$0xff] %v691
  %1107 = vst [vmem:[%s10 + $0x50] sm:$0xff] %v692
  %1108 = vst [vmem:[%s10 + $0x58] sm:$0xff] %v693
  %1109 = vst [vmem:[%s10 + $0x60] sm:$0xff] %v694
  %1110 = vst [vmem:[%s10 + $0x68] sm:$0xff] %v695
  %1111 = vst [vmem:[%s10 + $0x70] sm:$0xff] %v696
  %1112 = vst [vmem:[%s10 + $0x78] sm:$0xff] %v697
  %vm1113 = vcmask 31744
  %1114 = vst.msk [vmem:[%s11] sm:$0xff] %vm1113, %v1089
  %1115 = vst.msk [vmem:[%s11 + $0x8] sm:$0xff] %vm1113, %v1090
  %1116 = vst.msk [vmem:[%s11 + $0x10] sm:$0xff] %vm1113, %v1091
  %1117 = vst.msk [vmem:[%s11 + $0x18] sm:$0xff] %vm1113, %v1092
  %1118 = vst.msk [vmem:[%s11 + $0x20] sm:$0xff] %vm1113, %v1093
  %1119 = vst.msk [vmem:[%s11 + $0x28] sm:$0xff] %vm1113, %v1094
  %1120 = vst.msk [vmem:[%s11 + $0x30] sm:$0xff] %vm1113, %v1095
  %1121 = vst.msk [vmem:[%s11 + $0x38] sm:$0xff] %vm1113, %v1096
  // Predicated region
  $region42: #{gatgnn_forward.23} parent=0 // pred_check
    _
  $region43: #{gatgnn_forward.23} parent=0 // pred_check_branch
    %1123 = sbr.rel (0) target = $region45
  $region44: #{gatgnn_forward.23} parent=0 // pred_region
    _
  $region45: #{gatgnn_forward.23} parent=0 // pred_fallthru
    _
  // Predicated region
  $region46: #{gatgnn_forward.23} parent=0 // pred_check
    _
  $region47: #{gatgnn_forward.23} parent=0 // pred_check_branch
    %1125 = sbr.rel (0) target = $region49
  $region48: #{gatgnn_forward.23} parent=0 // pred_region
    _
  $region49: #{gatgnn_forward.23} parent=0 // pred_fallthru
    _
  // Predicated region
  $region50: #{gatgnn_forward.23} parent=0 // pred_check
    _
  $region51: #{gatgnn_forward.23} parent=0 // pred_check_branch
    %1127 = sbr.rel (0) target = $region53
  $region52: #{gatgnn_forward.23} parent=0 // pred_region
    _
  $region53: #{gatgnn_forward.23} parent=0 // pred_fallthru
    _
  // Predicated region
  $region54: #{gatgnn_forward.23} parent=0 // pred_check
    _
  $region55: #{gatgnn_forward.23} parent=0 // pred_check_branch
    %1129 = sbr.rel (0) target = $region57
  $region56: #{gatgnn_forward.23} parent=0 // pred_region
    _
  $region57: #{gatgnn_forward.23} parent=0 // pred_fallthru
    _

// kernel: gatgnn_forward.24
$region0: #{gatgnn_forward.24}
  #allocation0 [shape = 'u32[]', space=smem, size = 0x4, offset = 0x4, fixed_abs, tag = 'smem constant byte address 0x4 - core index']
  #allocation1 [shape = 'u32[144,128]{1,0:T(1,128)}', space=vmem, size = 0x12000, scoped, tag = 'internal scratch']
  %s0 = inlined_call_operand.vmem [shape: f32[16,256], index: 0, kind: input, shape index: {}]
  %s1 = inlined_call_operand.vmem [shape: f32[256,64], index: 1, kind: input, shape index: {}]
  %s2 = inlined_call_operand.vmem [shape: f32[1,64], index: 2, kind: input, shape index: {}]
  %s3 = inlined_call_operand.vmem [shape: f32[1,64], index: 3, kind: input, shape index: {}]
  %s4 = inlined_call_operand.vmem [shape: f32[16,64], index: 4, kind: output, shape index: {}]
  %s5 = sld [smem:[#allocation0]]
  $region26: #{gatgnn_forward.24} parent=0
    _
  %s7 = ssub.s32 1, %s5
  %s8 = scalar_select 0, %s7, %s5
  // Predicated region
  $region2: #{gatgnn_forward.24} parent=0 // pred_check
    _
  $region3: #{gatgnn_forward.24} parent=0 // pred_check_branch
    %10 = sbr.rel (0) target = $region5
  $region4: #{gatgnn_forward.24} parent=0 // pred_region
    _
  $region5: #{gatgnn_forward.24} parent=0 // pred_fallthru
    _
  // Predicated region
  $region6: #{gatgnn_forward.24} parent=0 // pred_check
    _
  $region7: #{gatgnn_forward.24} parent=0 // pred_check_branch
    %12 = sbr.rel (0) target = $region9
  $region8: #{gatgnn_forward.24} parent=0 // pred_region
    _
  $region9: #{gatgnn_forward.24} parent=0 // pred_fallthru
    _
  // Predicated region
  $region10: #{gatgnn_forward.24} parent=0 // pred_check
    _
  $region11: #{gatgnn_forward.24} parent=0 // pred_check_branch
    %14 = sbr.rel (0) target = $region13
  $region12: #{gatgnn_forward.24} parent=0 // pred_region
    _
  $region13: #{gatgnn_forward.24} parent=0 // pred_fallthru
    _
  // Predicated region
  $region14: #{gatgnn_forward.24} parent=0 // pred_check
    _
  $region15: #{gatgnn_forward.24} parent=0 // pred_check_branch
    %16 = sbr.rel (0) target = $region17
  $region16: #{gatgnn_forward.24} parent=0 // pred_region
    _
  $region17: #{gatgnn_forward.24} parent=0 // pred_fallthru
    _
  %v17 = vld [vmem:[%s0] sm:$0xff]
  %v18 = vld [vmem:[%s0 + $0x8] sm:$0xff]
  %v19 = vld [vmem:[%s0 + $0x10] sm:$0xff]
  %v20 = vld [vmem:[%s0 + $0x18] sm:$0xff]
  %v21 = vld [vmem:[%s1] sm:$0xff]
  %v22 = vld [vmem:[%s1 + $0x8] sm:$0xff]
  %v23 = vld [vmem:[%s1 + $0x10] sm:$0xff]
  %v24 = vld [vmem:[%s1 + $0x18] sm:$0xff]
  %v25 = vld [vmem:[%s1 + $0x20] sm:$0xff]
  %v26 = vld [vmem:[%s1 + $0x28] sm:$0xff]
  %v27 = vld [vmem:[%s1 + $0x30] sm:$0xff]
  %v28 = vld [vmem:[%s1 + $0x38] sm:$0xff]
  %v29 = vld [vmem:[%s1 + $0x40] sm:$0xff]
  %v30 = vld [vmem:[%s1 + $0x48] sm:$0xff]
  %v31 = vld [vmem:[%s1 + $0x50] sm:$0xff]
  %v32 = vld [vmem:[%s1 + $0x58] sm:$0xff]
  %v33 = vld [vmem:[%s1 + $0x60] sm:$0xff]
  %v34 = vld [vmem:[%s1 + $0x68] sm:$0xff]
  %v35 = vld [vmem:[%s1 + $0x70] sm:$0xff]
  %v36 = vld [vmem:[%s1 + $0x78] sm:$0xff]
  %v37 = vld [vmem:[%s1 + $0x80] sm:$0xff]
  %v38 = vld [vmem:[%s1 + $0x88] sm:$0xff]
  %v39 = vld [vmem:[%s1 + $0x90] sm:$0xff]
  %v40 = vld [vmem:[%s1 + $0x98] sm:$0xff]
  %v41 = vld [vmem:[%s1 + $0xa0] sm:$0xff]
  %v42 = vld [vmem:[%s1 + $0xa8] sm:$0xff]
  %v43 = vld [vmem:[%s1 + $0xb0] sm:$0xff]
  %v44 = vld [vmem:[%s1 + $0xb8] sm:$0xff]
  %v45 = vld [vmem:[%s1 + $0xc0] sm:$0xff]
  %v46 = vld [vmem:[%s1 + $0xc8] sm:$0xff]
  %v47 = vld [vmem:[%s1 + $0xd0] sm:$0xff]
  %v48 = vld [vmem:[%s1 + $0xd8] sm:$0xff]
  %v49 = vld [vmem:[%s1 + $0xe0] sm:$0xff]
  %v50 = vld [vmem:[%s1 + $0xe8] sm:$0xff]
  %v51 = vld [vmem:[%s1 + $0xf0] sm:$0xff]
  %v52 = vld [vmem:[%s1 + $0xf8] sm:$0xff]
  %53 = vmatprep.subr.mxu0 0.0
  %54 = vmatpush1.msra.mxu0 %v21
  %55 = vmatprep.subr.mxu0 0.0
  %56 = vmatpush1.msra.mxu0 %v22
  %57 = vmatprep.subr.mxu0 0.0
  %58 = vmatpush1.msra.mxu0 %v23
  %59 = vmatprep.subr.mxu0 0.0
  %60 = vmatpush1.msra.mxu0 %v24
  %61 = vmatprep.subr.mxu0 0.0
  %62 = vmatpush1.msra.mxu0 %v25
  %63 = vmatprep.subr.mxu0 0.0
  %64 = vmatpush1.msra.mxu0 %v26
  %65 = vmatprep.subr.mxu0 0.0
  %66 = vmatpush1.msra.mxu0 %v27
  %67 = vmatprep.subr.mxu0 0.0
  %68 = vmatpush1.msra.mxu0 %v28
  %69 = vmatprep.subr.mxu0 0.0
  %70 = vmatpush1.msra.mxu0 %v29
  %71 = vmatprep.subr.mxu0 0.0
  %72 = vmatpush1.msra.mxu0 %v30
  %73 = vmatprep.subr.mxu0 0.0
  %74 = vmatpush1.msra.mxu0 %v31
  %75 = vmatprep.subr.mxu0 0.0
  %76 = vmatpush1.msra.mxu0 %v32
  %77 = vmatprep.subr.mxu0 0.0
  %78 = vmatpush1.msra.mxu0 %v33
  %79 = vmatprep.subr.mxu0 0.0
  %80 = vmatpush1.msra.mxu0 %v34
  %81 = vmatprep.subr.mxu0 0.0
  %82 = vmatpush1.msra.mxu0 %v35
  %83 = vmatprep.subr.mxu0 0.0
  %84 = vmatpush1.msra.mxu0 %v36
  %85 = vmatprep.subr.mxu0 0.0
  %86 = vmatpush1.msra.mxu0 %v37
  %87 = vmatprep.subr.mxu0 0.0
  %88 = vmatpush1.msra.mxu0 %v38
  %89 = vmatprep.subr.mxu0 0.0
  %90 = vmatpush1.msra.mxu0 %v39
  %91 = vmatprep.subr.mxu0 0.0
  %92 = vmatpush1.msra.mxu0 %v40
  %93 = vmatprep.subr.mxu0 0.0
  %94 = vmatpush1.msra.mxu0 %v41
  %95 = vmatprep.subr.mxu0 0.0
  %96 = vmatpush1.msra.mxu0 %v42
  %97 = vmatprep.subr.mxu0 0.0
  %98 = vmatpush1.msra.mxu0 %v43
  %99 = vmatprep.subr.mxu0 0.0
  %100 = vmatpush1.msra.mxu0 %v44
  %101 = vmatprep.subr.mxu0 0.0
  %102 = vmatpush1.msra.mxu0 %v45
  %103 = vmatprep.subr.mxu0 0.0
  %104 = vmatpush1.msra.mxu0 %v46
  %105 = vmatprep.subr.mxu0 0.0
  %106 = vmatpush1.msra.mxu0 %v47
  %107 = vmatprep.subr.mxu0 0.0
  %108 = vmatpush1.msra.mxu0 %v48
  %109 = vmatprep.subr.mxu0 0.0
  %110 = vmatpush1.msra.mxu0 %v49
  %111 = vmatprep.subr.mxu0 0.0
  %112 = vmatpush1.msra.mxu0 %v50
  %113 = vmatprep.subr.mxu0 0.0
  %114 = vmatpush1.msra.mxu0 %v51
  %115 = vmatprep.subr.mxu0 0.0
  %116 = vmatpush1.msra.mxu0 %v52
  %117 = vmatprep.mubr.f32.mxu0 %v18
  %118 = vmatmul.mubr.f32.gmra.mrb[0].mxu0 %v17
  %v119 = vpop.f32.mrb[0].mxu0
  %v120 = vadd.f32 0.0, %v119
  %v121 = vpop.f32.mrb[0].mxu0
  %122 = vmatprep.mubr.f32.mxu0 %v20
  %123 = vmatmul.mubr.f32.gmra.mrb[0].mxu0 %v19
  %v124 = vpop.f32.mrb[0].mxu0
  %v125 = vadd.f32 0.0, %v124
  %v126 = vpop.f32.mrb[0].mxu0
  %127 = vdwg.mxu0
  %v128 = vld [vmem:[%s2] sm:$0x1]
  %v130 = vlaneseq
  %v131 = vshrl.u32 %v130, 7
  %v132 = vsub.s32 0, %v131
  %v133 = vrot.slane %v128, %v132
  %v135 = vmul.f32 %v120, %v133
  %v136 = vmul.f32 %v125, %v133
  %v137 = vld [vmem:[%s3] sm:$0x1]
  %v139 = vlaneseq
  %v140 = vshrl.u32 %v139, 7
  %v141 = vsub.s32 0, %v140
  %v142 = vrot.slane %v137, %v141
  %v144 = vadd.f32 %v135, %v142
  %v145 = vadd.f32 %v136, %v142
  %v146 = vmin.f32 %v144, 20.0
  %v147 = vmin.f32 %v145, 20.0
  %v148 = vmul.f32 %v146, 1.442695
  %v149 = vpow.pop %v148
  %v150 = vmul.f32 %v147, 1.442695
  %v151 = vpow.pop %v150
  %vm152 = vcmp.gt.f32.partialorder %v144, 20.0
  %vm153 = vcmp.gt.f32.partialorder %v145, 20.0
  %vm154 = vcmp.lt.f32.partialorder %v144, -15.0
  %vm155 = vcmp.lt.f32.partialorder %v145, -15.0
  %v156 = vadd.f32 %v149, 1.0
  %v157 = vadd.f32 %v151, 1.0
  %v158 = vlog2.pop %v156
  %v159 = vmul.f32 %v158, 0.6931472
  %v160 = vlog2.pop %v157
  %v161 = vmul.f32 %v160, 0.6931472
  %v162 = vsel %vm154, %v149, %v159
  %v163 = vsel %vm155, %v151, %v161
  %v164 = vsel %vm152, %v144, %v162
  %v165 = vsel %vm153, %v145, %v163
  %vm166 = vcmask 523264
  %167 = vst.msk [vmem:[%s4] sm:$0xff] %vm166, %v164
  %168 = vst.msk [vmem:[%s4 + $0x8] sm:$0xff] %vm166, %v165
  // Predicated region
  $region18: #{gatgnn_forward.24} parent=0 // pred_check
    _
  $region19: #{gatgnn_forward.24} parent=0 // pred_check_branch
    %170 = sbr.rel (0) target = $region21
  $region20: #{gatgnn_forward.24} parent=0 // pred_region
    _
  $region21: #{gatgnn_forward.24} parent=0 // pred_fallthru
    _
  // Predicated region
  $region22: #{gatgnn_forward.24} parent=0 // pred_check
    _
  $region23: #{gatgnn_forward.24} parent=0 // pred_check_branch
    %172 = sbr.rel (0) target = $region25
  $region24: #{gatgnn_forward.24} parent=0 // pred_region
    _
  $region25: #{gatgnn_forward.24} parent=0 // pred_fallthru
    _

// kernel: gatgnn_forward.29
$region0: #{gatgnn_forward.29}
  #allocation0 [shape = 'u32[]', space=smem, size = 0x4, offset = 0x4, fixed_abs, tag = 'smem constant byte address 0x4 - core index']
  #allocation1 [shape = 'u32[144,128]{1,0:T(1,128)}', space=vmem, size = 0x12000, scoped, tag = 'internal scratch']
  %s0 = inlined_call_operand.vmem [shape: f32[16,167], index: 0, kind: input, shape index: {}]
  %s1 = inlined_call_operand.vmem [shape: f32[167,64], index: 1, kind: input, shape index: {}]
  %s2 = inlined_call_operand.vmem [shape: f32[1,64], index: 2, kind: input, shape index: {}]
  %s3 = inlined_call_operand.vmem [shape: f32[16,64], index: 3, kind: output, shape index: {}]
  %s4 = sld [smem:[#allocation0]]
  $region22: #{gatgnn_forward.29} parent=0
    _
  %s6 = ssub.s32 1, %s4
  %s7 = scalar_select 0, %s6, %s4
  // Predicated region
  $region2: #{gatgnn_forward.29} parent=0 // pred_check
    _
  $region3: #{gatgnn_forward.29} parent=0 // pred_check_branch
    %9 = sbr.rel (0) target = $region5
  $region4: #{gatgnn_forward.29} parent=0 // pred_region
    _
  $region5: #{gatgnn_forward.29} parent=0 // pred_fallthru
    _
  // Predicated region
  $region6: #{gatgnn_forward.29} parent=0 // pred_check
    _
  $region7: #{gatgnn_forward.29} parent=0 // pred_check_branch
    %11 = sbr.rel (0) target = $region9
  $region8: #{gatgnn_forward.29} parent=0 // pred_region
    _
  $region9: #{gatgnn_forward.29} parent=0 // pred_fallthru
    _
  // Predicated region
  $region10: #{gatgnn_forward.29} parent=0 // pred_check
    _
  $region11: #{gatgnn_forward.29} parent=0 // pred_check_branch
    %13 = sbr.rel (0) target = $region13
  $region12: #{gatgnn_forward.29} parent=0 // pred_region
    _
  $region13: #{gatgnn_forward.29} parent=0 // pred_fallthru
    _
  %v14 = vld [vmem:[%s0] sm:$0xff]
  %v15 = vld [vmem:[%s0 + $0x8] sm:$0xff]
  %v16 = vld [vmem:[%s0 + $0x10] sm:$0xff]
  %v17 = vld [vmem:[%s0 + $0x18] sm:$0xff]
  %v18 = vld [vmem:[%s1] sm:$0xff]
  %v19 = vld [vmem:[%s1 + $0x8] sm:$0xff]
  %v20 = vld [vmem:[%s1 + $0x10] sm:$0xff]
  %v21 = vld [vmem:[%s1 + $0x18] sm:$0xff]
  %v22 = vld [vmem:[%s1 + $0x20] sm:$0xff]
  %v23 = vld [vmem:[%s1 + $0x28] sm:$0xff]
  %v24 = vld [vmem:[%s1 + $0x30] sm:$0xff]
  %v25 = vld [vmem:[%s1 + $0x38] sm:$0xff]
  %v26 = vld [vmem:[%s1 + $0x40] sm:$0xff]
  %v27 = vld [vmem:[%s1 + $0x48] sm:$0xff]
  %v28 = vld [vmem:[%s1 + $0x50] sm:$0xff]
  %v29 = vld [vmem:[%s1 + $0x58] sm:$0xff]
  %v30 = vld [vmem:[%s1 + $0x60] sm:$0xff]
  %v31 = vld [vmem:[%s1 + $0x68] sm:$0xff]
  %v32 = vld [vmem:[%s1 + $0x70] sm:$0xff]
  %v33 = vld [vmem:[%s1 + $0x78] sm:$0xff]
  %v34 = vld [vmem:[%s1 + $0x80] sm:$0xff]
  %v35 = vld [vmem:[%s1 + $0x88] sm:$0xff]
  %v36 = vld [vmem:[%s1 + $0x90] sm:$0xff]
  %v37 = vld [vmem:[%s1 + $0x98] sm:$0xff]
  %v38 = vld [vmem:[%s1 + $0xa0] sm:$0x7f]
  %v39 = vld [vmem:[%s2] sm:$0x1]
  %v41 = vlaneseq
  %v42 = vshrl.u32 %v41, 7
  %v43 = vsub.s32 0, %v42
  %v44 = vrot.slane %v39, %v43
  %vm46 = vcmask 318464
  %v48 = vsel %vm46, %v15, 0
  %v51 = vsel %vm46, %v17, 0
  %vm53 = vcmask 1046528
  %v55 = vsel %vm53, %v38, 0
  %57 = vmatprep.subr.mxu0 0.0
  %58 = vmatpush1.msra.mxu0 %v18
  %59 = vmatprep.subr.mxu0 0.0
  %60 = vmatpush1.msra.mxu0 %v19
  %61 = vmatprep.subr.mxu0 0.0
  %62 = vmatpush1.msra.mxu0 %v20
  %63 = vmatprep.subr.mxu0 0.0
  %64 = vmatpush1.msra.mxu0 %v21
  %65 = vmatprep.subr.mxu0 0.0
  %66 = vmatpush1.msra.mxu0 %v22
  %67 = vmatprep.subr.mxu0 0.0
  %68 = vmatpush1.msra.mxu0 %v23
  %69 = vmatprep.subr.mxu0 0.0
  %70 = vmatpush1.msra.mxu0 %v24
  %71 = vmatprep.subr.mxu0 0.0
  %72 = vmatpush1.msra.mxu0 %v25
  %73 = vmatprep.subr.mxu0 0.0
  %74 = vmatpush1.msra.mxu0 %v26
  %75 = vmatprep.subr.mxu0 0.0
  %76 = vmatpush1.msra.mxu0 %v27
  %77 = vmatprep.subr.mxu0 0.0
  %78 = vmatpush1.msra.mxu0 %v28
  %79 = vmatprep.subr.mxu0 0.0
  %80 = vmatpush1.msra.mxu0 %v29
  %81 = vmatprep.subr.mxu0 0.0
  %82 = vmatpush1.msra.mxu0 %v30
  %83 = vmatprep.subr.mxu0 0.0
  %84 = vmatpush1.msra.mxu0 %v31
  %85 = vmatprep.subr.mxu0 0.0
  %86 = vmatpush1.msra.mxu0 %v32
  %87 = vmatprep.subr.mxu0 0.0
  %88 = vmatpush1.msra.mxu0 %v33
  %89 = vmatprep.subr.mxu0 0.0
  %90 = vmatpush1.msra.mxu0 %v34
  %91 = vmatprep.subr.mxu0 0.0
  %92 = vmatpush1.msra.mxu0 %v35
  %93 = vmatprep.subr.mxu0 0.0
  %94 = vmatpush1.msra.mxu0 %v36
  %95 = vmatprep.subr.mxu0 0.0
  %96 = vmatpush1.msra.mxu0 %v37
  %97 = vmatprep.subr.mxu0 0.0
  %98 = vmatpush1.msra.mxu0 %v55
  %99 = vmatprep.subr.mxu0 0.0
  %100 = vmatpush1.msra.mxu0 0.0
  %101 = vmatprep.subr.mxu0 0.0
  %102 = vmatpush1.msra.mxu0 0.0
  %103 = vmatprep.subr.mxu0 0.0
  %104 = vmatpush1.msra.mxu0 0.0
  %105 = vmatprep.subr.mxu0 0.0
  %106 = vmatpush1.msra.mxu0 0.0
  %107 = vmatprep.subr.mxu0 0.0
  %108 = vmatpush1.msra.mxu0 0.0
  %109 = vmatprep.subr.mxu0 0.0
  %110 = vmatpush1.msra.mxu0 0.0
  %111 = vmatprep.subr.mxu0 0.0
  %112 = vmatpush1.msra.mxu0 0.0
  %113 = vmatprep.subr.mxu0 0.0
  %114 = vmatpush1.msra.mxu0 0.0
  %115 = vmatprep.subr.mxu0 0.0
  %116 = vmatpush1.msra.mxu0 0.0
  %117 = vmatprep.subr.mxu0 0.0
  %118 = vmatpush1.msra.mxu0 0.0
  %119 = vmatprep.subr.mxu0 0.0
  %120 = vmatpush1.msra.mxu0 0.0
  %121 = vmatprep.mubr.f32.mxu0 %v48
  %122 = vmatmul.mubr.f32.gmra.mrb[0].mxu0 %v14
  %v123 = vpop.f32.mrb[0].mxu0
  %v124 = vadd.f32 %v44, %v123
  %v125 = vpop.f32.mrb[0].mxu0
  %126 = vmatprep.mubr.f32.mxu0 %v51
  %127 = vmatmul.mubr.f32.gmra.mrb[0].mxu0 %v16
  %v128 = vpop.f32.mrb[0].mxu0
  %v129 = vadd.f32 %v44, %v128
  %v130 = vpop.f32.mrb[0].mxu0
  %131 = vdwg.mxu0
  %v132 = vmax.f32 %v124, 0.0
  %v133 = vmax.f32 %v129, 0.0
  %vm134 = vcmask 523264
  %135 = vst.msk [vmem:[%s3] sm:$0xff] %vm134, %v132
  %136 = vst.msk [vmem:[%s3 + $0x8] sm:$0xff] %vm134, %v133
  // Predicated region
  $region14: #{gatgnn_forward.29} parent=0 // pred_check
    _
  $region15: #{gatgnn_forward.29} parent=0 // pred_check_branch
    %138 = sbr.rel (0) target = $region17
  $region16: #{gatgnn_forward.29} parent=0 // pred_region
    _
  $region17: #{gatgnn_forward.29} parent=0 // pred_fallthru
    _
  // Predicated region
  $region18: #{gatgnn_forward.29} parent=0 // pred_check
    _
  $region19: #{gatgnn_forward.29} parent=0 // pred_check_branch
    %140 = sbr.rel (0) target = $region21
  $region20: #{gatgnn_forward.29} parent=0 // pred_region
    _
  $region21: #{gatgnn_forward.29} parent=0 // pred_fallthru
    _

// kernel: gatgnn_forward.30
$region0: #{gatgnn_forward.30}
  #allocation0 [shape = 'u32[]', space=smem, size = 0x4, offset = 0x4, fixed_abs, tag = 'smem constant byte address 0x4 - core index']
  #allocation1 [shape = 'u32[144,128]{1,0:T(1,128)}', space=vmem, size = 0x12000, scoped, tag = 'internal scratch']
  %s0 = inlined_call_operand.vmem [shape: f32[16,64], index: 0, kind: input, shape index: {}]
  %s1 = inlined_call_operand.vmem [shape: f32[64,192], index: 1, kind: input, shape index: {}]
  %s2 = inlined_call_operand.vmem [shape: f32[1,192], index: 2, kind: input, shape index: {}]
  %s3 = inlined_call_operand.vmem [shape: f32[16,192], index: 3, kind: output, shape index: {}]
  %s4 = sld [smem:[#allocation0]]
  $region22: #{gatgnn_forward.30} parent=0
    _
  %s6 = ssub.s32 1, %s4
  %s7 = scalar_select 0, %s6, %s4
  // Predicated region
  $region2: #{gatgnn_forward.30} parent=0 // pred_check
    _
  $region3: #{gatgnn_forward.30} parent=0 // pred_check_branch
    %9 = sbr.rel (0) target = $region5
  $region4: #{gatgnn_forward.30} parent=0 // pred_region
    _
  $region5: #{gatgnn_forward.30} parent=0 // pred_fallthru
    _
  // Predicated region
  $region6: #{gatgnn_forward.30} parent=0 // pred_check
    _
  $region7: #{gatgnn_forward.30} parent=0 // pred_check_branch
    %11 = sbr.rel (0) target = $region9
  $region8: #{gatgnn_forward.30} parent=0 // pred_region
    _
  $region9: #{gatgnn_forward.30} parent=0 // pred_fallthru
    _
  // Predicated region
  $region10: #{gatgnn_forward.30} parent=0 // pred_check
    _
  $region11: #{gatgnn_forward.30} parent=0 // pred_check_branch
    %13 = sbr.rel (0) target = $region13
  $region12: #{gatgnn_forward.30} parent=0 // pred_region
    _
  $region13: #{gatgnn_forward.30} parent=0 // pred_fallthru
    _
  %v14 = vld [vmem:[%s0] sm:$0xff]
  %v15 = vld [vmem:[%s0 + $0x8] sm:$0xff]
  %v16 = vld [vmem:[%s1] sm:$0xff]
  %v17 = vld [vmem:[%s1 + $0x8] sm:$0xff]
  %v18 = vld [vmem:[%s1 + $0x10] sm:$0xff]
  %v19 = vld [vmem:[%s1 + $0x18] sm:$0xff]
  %v20 = vld [vmem:[%s1 + $0x20] sm:$0xff]
  %v21 = vld [vmem:[%s1 + $0x28] sm:$0xff]
  %v22 = vld [vmem:[%s1 + $0x30] sm:$0xff]
  %v23 = vld [vmem:[%s1 + $0x38] sm:$0xff]
  %v24 = vld [vmem:[%s1 + $0x40] sm:$0xff]
  %v25 = vld [vmem:[%s1 + $0x48] sm:$0xff]
  %v26 = vld [vmem:[%s1 + $0x50] sm:$0xff]
  %v27 = vld [vmem:[%s1 + $0x58] sm:$0xff]
  %v28 = vld [vmem:[%s1 + $0x60] sm:$0xff]
  %v29 = vld [vmem:[%s1 + $0x68] sm:$0xff]
  %v30 = vld [vmem:[%s1 + $0x70] sm:$0xff]
  %v31 = vld [vmem:[%s1 + $0x78] sm:$0xff]
  %v32 = vld [vmem:[%s2] sm:$0x3]
  %v34 = vlaneseq
  %v35 = vshrl.u32 %v34, 7
  %v36 = vsub.s32 0, %v35
  %v37 = vrot.slane %v32, %v36
  %v38 = vlaneseq
  %v39 = vshrl.u32 %v38, 7
  %v40 = vsub.s32 1, %v39
  %v41 = vrot.slane %v32, %v40
  %vm44 = vcmask 523264
  %v46 = vsel %vm44, %v14, 0
  %v49 = vsel %vm44, %v15, 0
  %51 = vmatprep.subr.mxu0 %v17
  %52 = vmatpush1.msra.mxu0 %v16
  %53 = vmatprep.subr.mxu0 %v19
  %54 = vmatpush1.msra.mxu0 %v18
  %55 = vmatprep.subr.mxu0 %v21
  %56 = vmatpush1.msra.mxu0 %v20
  %57 = vmatprep.subr.mxu0 %v23
  %58 = vmatpush1.msra.mxu0 %v22
  %59 = vmatprep.subr.mxu0 %v25
  %60 = vmatpush1.msra.mxu0 %v24
  %61 = vmatprep.subr.mxu0 %v27
  %62 = vmatpush1.msra.mxu0 %v26
  %63 = vmatprep.subr.mxu0 %v29
  %64 = vmatpush1.msra.mxu0 %v28
  %65 = vmatprep.subr.mxu0 %v31
  %66 = vmatpush1.msra.mxu0 %v30
  %67 = vmatprep.subr.mxu0 0.0
  %68 = vmatpush1.msra.mxu0 0.0
  %69 = vmatprep.subr.mxu0 0.0
  %70 = vmatpush1.msra.mxu0 0.0
  %71 = vmatprep.subr.mxu0 0.0
  %72 = vmatpush1.msra.mxu0 0.0
  %73 = vmatprep.subr.mxu0 0.0
  %74 = vmatpush1.msra.mxu0 0.0
  %75 = vmatprep.subr.mxu0 0.0
  %76 = vmatpush1.msra.mxu0 0.0
  %77 = vmatprep.subr.mxu0 0.0
  %78 = vmatpush1.msra.mxu0 0.0
  %79 = vmatprep.subr.mxu0 0.0
  %80 = vmatpush1.msra.mxu0 0.0
  %81 = vmatprep.subr.mxu0 0.0
  %82 = vmatpush1.msra.mxu0 0.0
  %83 = vmatprep.subr.mxu0 0.0
  %84 = vmatpush1.msra.mxu0 0.0
  %85 = vmatprep.subr.mxu0 0.0
  %86 = vmatpush1.msra.mxu0 0.0
  %87 = vmatprep.subr.mxu0 0.0
  %88 = vmatpush1.msra.mxu0 0.0
  %89 = vmatprep.subr.mxu0 0.0
  %90 = vmatpush1.msra.mxu0 0.0
  %91 = vmatprep.subr.mxu0 0.0
  %92 = vmatpush1.msra.mxu0 0.0
  %93 = vmatprep.subr.mxu0 0.0
  %94 = vmatpush1.msra.mxu0 0.0
  %95 = vmatprep.subr.mxu0 0.0
  %96 = vmatpush1.msra.mxu0 0.0
  %97 = vmatprep.subr.mxu0 0.0
  %98 = vmatpush1.msra.mxu0 0.0
  %99 = vmatprep.subr.mxu0 0.0
  %100 = vmatpush1.msra.mxu0 0.0
  %101 = vmatprep.subr.mxu0 0.0
  %102 = vmatpush1.msra.mxu0 0.0
  %103 = vmatprep.subr.mxu0 0.0
  %104 = vmatpush1.msra.mxu0 0.0
  %105 = vmatprep.subr.mxu0 0.0
  %106 = vmatpush1.msra.mxu0 0.0
  %107 = vmatprep.subr.mxu0 0.0
  %108 = vmatpush1.msra.mxu0 0.0
  %109 = vmatprep.subr.mxu0 0.0
  %110 = vmatpush1.msra.mxu0 0.0
  %111 = vmatprep.subr.mxu0 0.0
  %112 = vmatpush1.msra.mxu0 0.0
  %113 = vmatprep.subr.mxu0 0.0
  %114 = vmatpush1.msra.mxu0 0.0
  %115 = vmatprep.mubr.f32.mxu0 0.0
  %116 = vmatmul.mubr.f32.gmra.mrb[0].mxu0 %v46
  %v117 = vpop.f32.mrb[0].mxu0
  %v118 = vadd.f32 %v37, %v117
  %v119 = vpop.f32.mrb[0].mxu0
  %v120 = vadd.f32 %v41, %v119
  %121 = vmatprep.mubr.f32.mxu0 0.0
  %122 = vmatmul.mubr.f32.gmra.mrb[0].mxu0 %v49
  %v123 = vpop.f32.mrb[0].mxu0
  %v124 = vadd.f32 %v37, %v123
  %v125 = vpop.f32.mrb[0].mxu0
  %v126 = vadd.f32 %v41, %v125
  %127 = vdwg.mxu0
  %128 = vst [vmem:[%s3] sm:$0xff] %v118
  %129 = vst.msk [vmem:[%s3 + $0x8] sm:$0xff] %vm44, %v120
  %130 = vst [vmem:[%s3 + $0x10] sm:$0xff] %v124
  %131 = vst.msk [vmem:[%s3 + $0x18] sm:$0xff] %vm44, %v126
  // Predicated region
  $region14: #{gatgnn_forward.30} parent=0 // pred_check
    _
  $region15: #{gatgnn_forward.30} parent=0 // pred_check_branch
    %133 = sbr.rel (0) target = $region17
  $region16: #{gatgnn_forward.30} parent=0 // pred_region
    _
  $region17: #{gatgnn_forward.30} parent=0 // pred_fallthru
    _
  // Predicated region
  $region18: #{gatgnn_forward.30} parent=0 // pred_check
    _
  $region19: #{gatgnn_forward.30} parent=0 // pred_check_branch
    %135 = sbr.rel (0) target = $region21
  $region20: #{gatgnn_forward.30} parent=0 // pred_region
    _
  $region21: #{gatgnn_forward.30} parent=0 // pred_fallthru
    _

// kernel: gatgnn_forward.38
$region0: #{gatgnn_forward.38}
  #allocation0 [shape = 'u32[]', space=smem, size = 0x4, offset = 0x4, fixed_abs, tag = 'smem constant byte address 0x4 - core index']
  #allocation1 [shape = 'u32[144,128]{1,0:T(1,128)}', space=vmem, size = 0x12000, scoped, tag = 'internal scratch']
  #allocation2 [shape = 'f32[1,1]{1,0:T(1,128)S(1)}', space=vmem, size = 0x200, scoped, tag = 'scoped memory for gatgnn_forward.38']
  %s0 = inlined_call_operand.vmem [shape: f32[16,64], index: 0, kind: input, shape index: {}]
  %s1 = inlined_call_operand.vmem [shape: f32[16,64], index: 1, kind: input, shape index: {}]
  %s2 = inlined_call_operand.vmem [shape: f32[64,1], index: 2, kind: input, shape index: {}]
  %s3 = inlined_call_operand.<no memory space> [shape: f32[1,1], index: 3, kind: input, shape index: {}]
  %s4 = inlined_call_operand.vmem [shape: f32[16,1], index: 4, kind: output, shape index: {}]
  %s5 = sld [smem:[#allocation0]]
  $region26: #{gatgnn_forward.38} parent=0
    _
  %s7 = ssub.s32 1, %s5
  %s8 = scalar_select 0, %s7, %s5
  %v9 = vstv %s3
  %10 = vst [vmem:[#allocation2] sm:$0x1] %v9
  // Predicated region
  $region2: #{gatgnn_forward.38} parent=0 // pred_check
    _
  $region3: #{gatgnn_forward.38} parent=0 // pred_check_branch
    %12 = sbr.rel (0) target = $region5
  $region4: #{gatgnn_forward.38} parent=0 // pred_region
    _
  $region5: #{gatgnn_forward.38} parent=0 // pred_fallthru
    _
  // Predicated region
  $region6: #{gatgnn_forward.38} parent=0 // pred_check
    _
  $region7: #{gatgnn_forward.38} parent=0 // pred_check_branch
    %14 = sbr.rel (0) target = $region9
  $region8: #{gatgnn_forward.38} parent=0 // pred_region
    _
  $region9: #{gatgnn_forward.38} parent=0 // pred_fallthru
    _
  // Predicated region
  $region10: #{gatgnn_forward.38} parent=0 // pred_check
    _
  $region11: #{gatgnn_forward.38} parent=0 // pred_check_branch
    %16 = sbr.rel (0) target = $region13
  $region12: #{gatgnn_forward.38} parent=0 // pred_region
    _
  $region13: #{gatgnn_forward.38} parent=0 // pred_fallthru
    _
  // Predicated region
  $region14: #{gatgnn_forward.38} parent=0 // pred_check
    _
  $region15: #{gatgnn_forward.38} parent=0 // pred_check_branch
    %18 = sbr.rel (0) target = $region17
  $region16: #{gatgnn_forward.38} parent=0 // pred_region
    _
  $region17: #{gatgnn_forward.38} parent=0 // pred_fallthru
    _
  %v19 = vld [vmem:[%s0] sm:$0xff]
  %v20 = vld [vmem:[%s0 + $0x8] sm:$0xff]
  %v21 = vld [vmem:[%s1] sm:$0xff]
  %v22 = vld [vmem:[%s1 + $0x8] sm:$0xff]
  %v23 = vadd.f32 %v19, %v21
  %v24 = vadd.f32 %v20, %v22
  %v25 = vmul.f32 %v23, 0.5
  %v26 = vmul.f32 %v24, 0.5
  %v27 = vld [vmem:[%s2] sm:$0xff]
  %v28 = vld [vmem:[%s2 + $0x8] sm:$0xff]
  %v29 = vld [vmem:[%s2 + $0x10] sm:$0xff]
  %v30 = vld [vmem:[%s2 + $0x18] sm:$0xff]
  %v31 = vld [vmem:[%s2 + $0x20] sm:$0xff]
  %v32 = vld [vmem:[%s2 + $0x28] sm:$0xff]
  %v33 = vld [vmem:[%s2 + $0x30] sm:$0xff]
  %v34 = vld [vmem:[%s2 + $0x38] sm:$0xff]
  %v35 = vld [vmem:[#allocation2] sm:$0x1]
  %v37 = vlaneseq
  %v38 = vshrl.u32 %v37, 7
  %v39 = vsub.s32 0, %v38
  %v40 = vrot.slane %v35, %v39
  %vm42 = vcmask 523264
  %v44 = vsel %vm42, %v25, 0
  %v47 = vsel %vm42, %v26, 0
  %49 = vmatprep.subr.mxu0 0.0
  %50 = vmatpush1.msra.mxu0 %v27
  %51 = vmatprep.subr.mxu0 0.0
  %52 = vmatpush1.msra.mxu0 %v28
  %53 = vmatprep.subr.mxu0 0.0
  %54 = vmatpush1.msra.mxu0 %v29
  %55 = vmatprep.subr.mxu0 0.0
  %56 = vmatpush1.msra.mxu0 %v30
  %57 = vmatprep.subr.mxu0 0.0
  %58 = vmatpush1.msra.mxu0 %v31
  %59 = vmatprep.subr.mxu0 0.0
  %60 = vmatpush1.msra.mxu0 %v32
  %61 = vmatprep.subr.mxu0 0.0
  %62 = vmatpush1.msra.mxu0 %v33
  %63 = vmatprep.subr.mxu0 0.0
  %64 = vmatpush1.msra.mxu0 %v34
  %65 = vmatprep.subr.mxu0 0.0
  %66 = vmatpush1.msra.mxu0 0.0
  %67 = vmatprep.subr.mxu0 0.0
  %68 = vmatpush1.msra.mxu0 0.0
  %69 = vmatprep.subr.mxu0 0.0
  %70 = vmatpush1.msra.mxu0 0.0
  %71 = vmatprep.subr.mxu0 0.0
  %72 = vmatpush1.msra.mxu0 0.0
  %73 = vmatprep.subr.mxu0 0.0
  %74 = vmatpush1.msra.mxu0 0.0
  %75 = vmatprep.subr.mxu0 0.0
  %76 = vmatpush1.msra.mxu0 0.0
  %77 = vmatprep.subr.mxu0 0.0
  %78 = vmatpush1.msra.mxu0 0.0
  %79 = vmatprep.subr.mxu0 0.0
  %80 = vmatpush1.msra.mxu0 0.0
  %81 = vmatprep.subr.mxu0 0.0
  %82 = vmatpush1.msra.mxu0 0.0
  %83 = vmatprep.subr.mxu0 0.0
  %84 = vmatpush1.msra.mxu0 0.0
  %85 = vmatprep.subr.mxu0 0.0
  %86 = vmatpush1.msra.mxu0 0.0
  %87 = vmatprep.subr.mxu0 0.0
  %88 = vmatpush1.msra.mxu0 0.0
  %89 = vmatprep.subr.mxu0 0.0
  %90 = vmatpush1.msra.mxu0 0.0
  %91 = vmatprep.subr.mxu0 0.0
  %92 = vmatpush1.msra.mxu0 0.0
  %93 = vmatprep.subr.mxu0 0.0
  %94 = vmatpush1.msra.mxu0 0.0
  %95 = vmatprep.subr.mxu0 0.0
  %96 = vmatpush1.msra.mxu0 0.0
  %97 = vmatprep.subr.mxu0 0.0
  %98 = vmatpush1.msra.mxu0 0.0
  %99 = vmatprep.subr.mxu0 0.0
  %100 = vmatpush1.msra.mxu0 0.0
  %101 = vmatprep.subr.mxu0 0.0
  %102 = vmatpush1.msra.mxu0 0.0
  %103 = vmatprep.subr.mxu0 0.0
  %104 = vmatpush1.msra.mxu0 0.0
  %105 = vmatprep.subr.mxu0 0.0
  %106 = vmatpush1.msra.mxu0 0.0
  %107 = vmatprep.subr.mxu0 0.0
  %108 = vmatpush1.msra.mxu0 0.0
  %109 = vmatprep.subr.mxu0 0.0
  %110 = vmatpush1.msra.mxu0 0.0
  %111 = vmatprep.subr.mxu0 0.0
  %112 = vmatpush1.msra.mxu0 0.0
  %113 = vmatprep.mubr.f32.mxu0 0.0
  %114 = vmatmul.mubr.f32.gmra.mrb[0].mxu0 %v44
  %v115 = vpop.f32.mrb[0].mxu0
  %v116 = vadd.f32 %v40, %v115
  %v117 = vpop.f32.mrb[0].mxu0
  %118 = vmatprep.mubr.f32.mxu0 0.0
  %119 = vmatmul.mubr.f32.gmra.mrb[0].mxu0 %v47
  %v120 = vpop.f32.mrb[0].mxu0
  %v121 = vadd.f32 %v40, %v120
  %v122 = vpop.f32.mrb[0].mxu0
  %123 = vdwg.mxu0
  %vm124 = vcmask 7168
  %125 = vst.msk [vmem:[%s4] sm:$0xff] %vm124, %v116
  %126 = vst.msk [vmem:[%s4 + $0x8] sm:$0xff] %vm124, %v121
  // Predicated region
  $region18: #{gatgnn_forward.38} parent=0 // pred_check
    _
  $region19: #{gatgnn_forward.38} parent=0 // pred_check_branch
    %128 = sbr.rel (0) target = $region21
  $region20: #{gatgnn_forward.38} parent=0 // pred_region
    _
  $region21: #{gatgnn_forward.38} parent=0 // pred_fallthru
    _
  // Predicated region
  $region22: #{gatgnn_forward.38} parent=0 // pred_check
    _
  $region23: #{gatgnn_forward.38} parent=0 // pred_check_branch
    %130 = sbr.rel (0) target = $region25
  $region24: #{gatgnn_forward.38} parent=0 // pred_region
    _
  $region25: #{gatgnn_forward.38} parent=0 // pred_fallthru
    _

// kernel: gatgnn_forward.39
$region0: #{gatgnn_forward.39}
  #allocation0 [shape = 'u32[]', space=smem, size = 0x4, offset = 0x4, fixed_abs, tag = 'smem constant byte address 0x4 - core index']
  #allocation1 [shape = 'u32[144,128]{1,0:T(1,128)}', space=vmem, size = 0x12000, scoped, tag = 'internal scratch']
  %s0 = inlined_call_operand.vmem [shape: f32[16,64], index: 0, kind: input, shape index: {}]
  %s1 = inlined_call_operand.vmem [shape: f32[64,64], index: 1, kind: input, shape index: {}]
  %s2 = inlined_call_operand.vmem [shape: f32[1,64], index: 2, kind: input, shape index: {}]
  %s3 = inlined_call_operand.vmem [shape: f32[16,64], index: 3, kind: output, shape index: {}]
  %s4 = sld [smem:[#allocation0]]
  $region22: #{gatgnn_forward.39} parent=0
    _
  %s6 = ssub.s32 1, %s4
  %s7 = scalar_select 0, %s6, %s4
  // Predicated region
  $region2: #{gatgnn_forward.39} parent=0 // pred_check
    _
  $region3: #{gatgnn_forward.39} parent=0 // pred_check_branch
    %9 = sbr.rel (0) target = $region5
  $region4: #{gatgnn_forward.39} parent=0 // pred_region
    _
  $region5: #{gatgnn_forward.39} parent=0 // pred_fallthru
    _
  // Predicated region
  $region6: #{gatgnn_forward.39} parent=0 // pred_check
    _
  $region7: #{gatgnn_forward.39} parent=0 // pred_check_branch
    %11 = sbr.rel (0) target = $region9
  $region8: #{gatgnn_forward.39} parent=0 // pred_region
    _
  $region9: #{gatgnn_forward.39} parent=0 // pred_fallthru
    _
  // Predicated region
  $region10: #{gatgnn_forward.39} parent=0 // pred_check
    _
  $region11: #{gatgnn_forward.39} parent=0 // pred_check_branch
    %13 = sbr.rel (0) target = $region13
  $region12: #{gatgnn_forward.39} parent=0 // pred_region
    _
  $region13: #{gatgnn_forward.39} parent=0 // pred_fallthru
    _
  %v14 = vld [vmem:[%s0] sm:$0xff]
  %v15 = vld [vmem:[%s0 + $0x8] sm:$0xff]
  %v16 = vld [vmem:[%s1] sm:$0xff]
  %v17 = vld [vmem:[%s1 + $0x8] sm:$0xff]
  %v18 = vld [vmem:[%s1 + $0x10] sm:$0xff]
  %v19 = vld [vmem:[%s1 + $0x18] sm:$0xff]
  %v20 = vld [vmem:[%s1 + $0x20] sm:$0xff]
  %v21 = vld [vmem:[%s1 + $0x28] sm:$0xff]
  %v22 = vld [vmem:[%s1 + $0x30] sm:$0xff]
  %v23 = vld [vmem:[%s1 + $0x38] sm:$0xff]
  %v24 = vld [vmem:[%s2] sm:$0x1]
  %v26 = vlaneseq
  %v27 = vshrl.u32 %v26, 7
  %v28 = vsub.s32 0, %v27
  %v29 = vrot.slane %v24, %v28
  %vm31 = vcmask 523264
  %v33 = vsel %vm31, %v14, 0
  %v36 = vsel %vm31, %v15, 0
  %38 = vmatprep.subr.mxu0 0.0
  %39 = vmatpush1.msra.mxu0 %v16
  %40 = vmatprep.subr.mxu0 0.0
  %41 = vmatpush1.msra.mxu0 %v17
  %42 = vmatprep.subr.mxu0 0.0
  %43 = vmatpush1.msra.mxu0 %v18
  %44 = vmatprep.subr.mxu0 0.0
  %45 = vmatpush1.msra.mxu0 %v19
  %46 = vmatprep.subr.mxu0 0.0
  %47 = vmatpush1.msra.mxu0 %v20
  %48 = vmatprep.subr.mxu0 0.0
  %49 = vmatpush1.msra.mxu0 %v21
  %50 = vmatprep.subr.mxu0 0.0
  %51 = vmatpush1.msra.mxu0 %v22
  %52 = vmatprep.subr.mxu0 0.0
  %53 = vmatpush1.msra.mxu0 %v23
  %54 = vmatprep.subr.mxu0 0.0
  %55 = vmatpush1.msra.mxu0 0.0
  %56 = vmatprep.subr.mxu0 0.0
  %57 = vmatpush1.msra.mxu0 0.0
  %58 = vmatprep.subr.mxu0 0.0
  %59 = vmatpush1.msra.mxu0 0.0
  %60 = vmatprep.subr.mxu0 0.0
  %61 = vmatpush1.msra.mxu0 0.0
  %62 = vmatprep.subr.mxu0 0.0
  %63 = vmatpush1.msra.mxu0 0.0
  %64 = vmatprep.subr.mxu0 0.0
  %65 = vmatpush1.msra.mxu0 0.0
  %66 = vmatprep.subr.mxu0 0.0
  %67 = vmatpush1.msra.mxu0 0.0
  %68 = vmatprep.subr.mxu0 0.0
  %69 = vmatpush1.msra.mxu0 0.0
  %70 = vmatprep.subr.mxu0 0.0
  %71 = vmatpush1.msra.mxu0 0.0
  %72 = vmatprep.subr.mxu0 0.0
  %73 = vmatpush1.msra.mxu0 0.0
  %74 = vmatprep.subr.mxu0 0.0
  %75 = vmatpush1.msra.mxu0 0.0
  %76 = vmatprep.subr.mxu0 0.0
  %77 = vmatpush1.msra.mxu0 0.0
  %78 = vmatprep.subr.mxu0 0.0
  %79 = vmatpush1.msra.mxu0 0.0
  %80 = vmatprep.subr.mxu0 0.0
  %81 = vmatpush1.msra.mxu0 0.0
  %82 = vmatprep.subr.mxu0 0.0
  %83 = vmatpush1.msra.mxu0 0.0
  %84 = vmatprep.subr.mxu0 0.0
  %85 = vmatpush1.msra.mxu0 0.0
  %86 = vmatprep.subr.mxu0 0.0
  %87 = vmatpush1.msra.mxu0 0.0
  %88 = vmatprep.subr.mxu0 0.0
  %89 = vmatpush1.msra.mxu0 0.0
  %90 = vmatprep.subr.mxu0 0.0
  %91 = vmatpush1.msra.mxu0 0.0
  %92 = vmatprep.subr.mxu0 0.0
  %93 = vmatpush1.msra.mxu0 0.0
  %94 = vmatprep.subr.mxu0 0.0
  %95 = vmatpush1.msra.mxu0 0.0
  %96 = vmatprep.subr.mxu0 0.0
  %97 = vmatpush1.msra.mxu0 0.0
  %98 = vmatprep.subr.mxu0 0.0
  %99 = vmatpush1.msra.mxu0 0.0
  %100 = vmatprep.subr.mxu0 0.0
  %101 = vmatpush1.msra.mxu0 0.0
  %102 = vmatprep.mubr.f32.mxu0 0.0
  %103 = vmatmul.mubr.f32.gmra.mrb[0].mxu0 %v33
  %v104 = vpop.f32.mrb[0].mxu0
  %v105 = vadd.f32 %v29, %v104
  %v106 = vpop.f32.mrb[0].mxu0
  %107 = vmatprep.mubr.f32.mxu0 0.0
  %108 = vmatmul.mubr.f32.gmra.mrb[0].mxu0 %v36
  %v109 = vpop.f32.mrb[0].mxu0
  %v110 = vadd.f32 %v29, %v109
  %v111 = vpop.f32.mrb[0].mxu0
  %112 = vdwg.mxu0
  %v113 = vmin.f32 %v105, 20.0
  %v114 = vmin.f32 %v110, 20.0
  %v115 = vmul.f32 %v113, 1.442695
  %v116 = vpow.pop %v115
  %v117 = vmul.f32 %v114, 1.442695
  %v118 = vpow.pop %v117
  %vm119 = vcmp.gt.f32.partialorder %v105, 20.0
  %vm120 = vcmp.gt.f32.partialorder %v110, 20.0
  %vm121 = vcmp.lt.f32.partialorder %v105, -15.0
  %vm122 = vcmp.lt.f32.partialorder %v110, -15.0
  %v123 = vadd.f32 %v116, 1.0
  %v124 = vadd.f32 %v118, 1.0
  %v125 = vlog2.pop %v123
  %v126 = vmul.f32 %v125, 0.6931472
  %v127 = vlog2.pop %v124
  %v128 = vmul.f32 %v127, 0.6931472
  %v129 = vsel %vm121, %v116, %v126
  %v130 = vsel %vm122, %v118, %v128
  %v131 = vsel %vm119, %v105, %v129
  %v132 = vsel %vm120, %v110, %v130
  %133 = vst.msk [vmem:[%s3] sm:$0xff] %vm31, %v131
  %134 = vst.msk [vmem:[%s3 + $0x8] sm:$0xff] %vm31, %v132
  // Predicated region
  $region14: #{gatgnn_forward.39} parent=0 // pred_check
    _
  $region15: #{gatgnn_forward.39} parent=0 // pred_check_branch
    %136 = sbr.rel (0) target = $region17
  $region16: #{gatgnn_forward.39} parent=0 // pred_region
    _
  $region17: #{gatgnn_forward.39} parent=0 // pred_fallthru
    _
  // Predicated region
  $region18: #{gatgnn_forward.39} parent=0 // pred_check
    _
  $region19: #{gatgnn_forward.39} parent=0 // pred_check_branch
    %138 = sbr.rel (0) target = $region21
  $region20: #{gatgnn_forward.39} parent=0 // pred_region
    _
  $region21: #{gatgnn_forward.39} parent=0 // pred_fallthru
    _

// kernel: gatgnn_forward.41
$region0: #{gatgnn_forward.41}
  #allocation0 [shape = 'u32[]', space=smem, size = 0x4, offset = 0x4, fixed_abs, tag = 'smem constant byte address 0x4 - core index']
  #allocation1 [shape = 'u32[144,128]{1,0:T(1,128)}', space=vmem, size = 0x12000, scoped, tag = 'internal scratch']
  #allocation2 [shape = 'f32[1,1]{1,0:T(1,128)S(1)}', space=vmem, size = 0x200, scoped, tag = 'scoped memory for gatgnn_forward.41']
  %s0 = inlined_call_operand.vmem [shape: f32[16,64], index: 0, kind: input, shape index: {}]
  %s1 = inlined_call_operand.vmem [shape: f32[64,1], index: 1, kind: input, shape index: {}]
  %s2 = inlined_call_operand.<no memory space> [shape: f32[1,1], index: 2, kind: input, shape index: {}]
  %s3 = inlined_call_operand.vmem [shape: f32[16,1], index: 3, kind: output, shape index: {}]
  %s4 = sld [smem:[#allocation0]]
  $region22: #{gatgnn_forward.41} parent=0
    _
  %s6 = ssub.s32 1, %s4
  %s7 = scalar_select 0, %s6, %s4
  %v8 = vstv %s2
  %9 = vst [vmem:[#allocation2] sm:$0x1] %v8
  // Predicated region
  $region2: #{gatgnn_forward.41} parent=0 // pred_check
    _
  $region3: #{gatgnn_forward.41} parent=0 // pred_check_branch
    %11 = sbr.rel (0) target = $region5
  $region4: #{gatgnn_forward.41} parent=0 // pred_region
    _
  $region5: #{gatgnn_forward.41} parent=0 // pred_fallthru
    _
  // Predicated region
  $region6: #{gatgnn_forward.41} parent=0 // pred_check
    _
  $region7: #{gatgnn_forward.41} parent=0 // pred_check_branch
    %13 = sbr.rel (0) target = $region9
  $region8: #{gatgnn_forward.41} parent=0 // pred_region
    _
  $region9: #{gatgnn_forward.41} parent=0 // pred_fallthru
    _
  // Predicated region
  $region10: #{gatgnn_forward.41} parent=0 // pred_check
    _
  $region11: #{gatgnn_forward.41} parent=0 // pred_check_branch
    %15 = sbr.rel (0) target = $region13
  $region12: #{gatgnn_forward.41} parent=0 // pred_region
    _
  $region13: #{gatgnn_forward.41} parent=0 // pred_fallthru
    _
  %v16 = vld [vmem:[%s0] sm:$0xff]
  %v17 = vld [vmem:[%s0 + $0x8] sm:$0xff]
  %v18 = vld [vmem:[%s1] sm:$0xff]
  %v19 = vld [vmem:[%s1 + $0x8] sm:$0xff]
  %v20 = vld [vmem:[%s1 + $0x10] sm:$0xff]
  %v21 = vld [vmem:[%s1 + $0x18] sm:$0xff]
  %v22 = vld [vmem:[%s1 + $0x20] sm:$0xff]
  %v23 = vld [vmem:[%s1 + $0x28] sm:$0xff]
  %v24 = vld [vmem:[%s1 + $0x30] sm:$0xff]
  %v25 = vld [vmem:[%s1 + $0x38] sm:$0xff]
  %v26 = vld [vmem:[#allocation2] sm:$0x1]
  %v28 = vlaneseq
  %v29 = vshrl.u32 %v28, 7
  %v30 = vsub.s32 0, %v29
  %v31 = vrot.slane %v26, %v30
  %vm33 = vcmask 523264
  %v35 = vsel %vm33, %v16, 0
  %v38 = vsel %vm33, %v17, 0
  %40 = vmatprep.subr.mxu0 0.0
  %41 = vmatpush1.msra.mxu0 %v18
  %42 = vmatprep.subr.mxu0 0.0
  %43 = vmatpush1.msra.mxu0 %v19
  %44 = vmatprep.subr.mxu0 0.0
  %45 = vmatpush1.msra.mxu0 %v20
  %46 = vmatprep.subr.mxu0 0.0
  %47 = vmatpush1.msra.mxu0 %v21
  %48 = vmatprep.subr.mxu0 0.0
  %49 = vmatpush1.msra.mxu0 %v22
  %50 = vmatprep.subr.mxu0 0.0
  %51 = vmatpush1.msra.mxu0 %v23
  %52 = vmatprep.subr.mxu0 0.0
  %53 = vmatpush1.msra.mxu0 %v24
  %54 = vmatprep.subr.mxu0 0.0
  %55 = vmatpush1.msra.mxu0 %v25
  %56 = vmatprep.subr.mxu0 0.0
  %57 = vmatpush1.msra.mxu0 0.0
  %58 = vmatprep.subr.mxu0 0.0
  %59 = vmatpush1.msra.mxu0 0.0
  %60 = vmatprep.subr.mxu0 0.0
  %61 = vmatpush1.msra.mxu0 0.0
  %62 = vmatprep.subr.mxu0 0.0
  %63 = vmatpush1.msra.mxu0 0.0
  %64 = vmatprep.subr.mxu0 0.0
  %65 = vmatpush1.msra.mxu0 0.0
  %66 = vmatprep.subr.mxu0 0.0
  %67 = vmatpush1.msra.mxu0 0.0
  %68 = vmatprep.subr.mxu0 0.0
  %69 = vmatpush1.msra.mxu0 0.0
  %70 = vmatprep.subr.mxu0 0.0
  %71 = vmatpush1.msra.mxu0 0.0
  %72 = vmatprep.subr.mxu0 0.0
  %73 = vmatpush1.msra.mxu0 0.0
  %74 = vmatprep.subr.mxu0 0.0
  %75 = vmatpush1.msra.mxu0 0.0
  %76 = vmatprep.subr.mxu0 0.0
  %77 = vmatpush1.msra.mxu0 0.0
  %78 = vmatprep.subr.mxu0 0.0
  %79 = vmatpush1.msra.mxu0 0.0
  %80 = vmatprep.subr.mxu0 0.0
  %81 = vmatpush1.msra.mxu0 0.0
  %82 = vmatprep.subr.mxu0 0.0
  %83 = vmatpush1.msra.mxu0 0.0
  %84 = vmatprep.subr.mxu0 0.0
  %85 = vmatpush1.msra.mxu0 0.0
  %86 = vmatprep.subr.mxu0 0.0
  %87 = vmatpush1.msra.mxu0 0.0
  %88 = vmatprep.subr.mxu0 0.0
  %89 = vmatpush1.msra.mxu0 0.0
  %90 = vmatprep.subr.mxu0 0.0
  %91 = vmatpush1.msra.mxu0 0.0
  %92 = vmatprep.subr.mxu0 0.0
  %93 = vmatpush1.msra.mxu0 0.0
  %94 = vmatprep.subr.mxu0 0.0
  %95 = vmatpush1.msra.mxu0 0.0
  %96 = vmatprep.subr.mxu0 0.0
  %97 = vmatpush1.msra.mxu0 0.0
  %98 = vmatprep.subr.mxu0 0.0
  %99 = vmatpush1.msra.mxu0 0.0
  %100 = vmatprep.subr.mxu0 0.0
  %101 = vmatpush1.msra.mxu0 0.0
  %102 = vmatprep.subr.mxu0 0.0
  %103 = vmatpush1.msra.mxu0 0.0
  %104 = vmatprep.mubr.f32.mxu0 0.0
  %105 = vmatmul.mubr.f32.gmra.mrb[0].mxu0 %v35
  %v106 = vpop.f32.mrb[0].mxu0
  %v107 = vadd.f32 %v31, %v106
  %v108 = vpop.f32.mrb[0].mxu0
  %109 = vmatprep.mubr.f32.mxu0 0.0
  %110 = vmatmul.mubr.f32.gmra.mrb[0].mxu0 %v38
  %v111 = vpop.f32.mrb[0].mxu0
  %v112 = vadd.f32 %v31, %v111
  %v113 = vpop.f32.mrb[0].mxu0
  %114 = vdwg.mxu0
  %vm115 = vcmask 7168
  %116 = vst.msk [vmem:[%s3] sm:$0xff] %vm115, %v107
  %117 = vst.msk [vmem:[%s3 + $0x8] sm:$0xff] %vm115, %v112
  // Predicated region
  $region14: #{gatgnn_forward.41} parent=0 // pred_check
    _
  $region15: #{gatgnn_forward.41} parent=0 // pred_check_branch
    %119 = sbr.rel (0) target = $region17
  $region16: #{gatgnn_forward.41} parent=0 // pred_region
    _
  $region17: #{gatgnn_forward.41} parent=0 // pred_fallthru
    _
  // Predicated region
  $region18: #{gatgnn_forward.41} parent=0 // pred_check
    _
  $region19: #{gatgnn_forward.41} parent=0 // pred_check_branch
    %121 = sbr.rel (0) target = $region21
  $region20: #{gatgnn_forward.41} parent=0 // pred_region
    _
  $region21: #{gatgnn_forward.41} parent=0 // pred_fallthru
    _

// kernel: gatgnn_forward.31
$region0: #{gatgnn_forward.31}
  #allocation0 [shape = 'u32[]', space=smem, size = 0x4, offset = 0x4, fixed_abs, tag = 'smem constant byte address 0x4 - core index']
  #allocation1 [shape = 'u32[144,128]{1,0:T(1,128)}', space=vmem, size = 0x12000, scoped, tag = 'internal scratch']
  %s0 = inlined_call_operand.vmem [shape: f32[16,64], index: 0, kind: input, shape index: {}]
  %s1 = inlined_call_operand.vmem [shape: f32[16,192], index: 1, kind: input, shape index: {}, may-alias: {1,2}]
  %s2 = inlined_call_operand.vmem [shape: f32[16,192], index: 2, kind: input, shape index: {}, may-alias: {1,2}]
  %s3 = inlined_call_operand.vmem [shape: f32[64,64], index: 3, kind: input, shape index: {}]
  %s4 = inlined_call_operand.vmem [shape: f32[1,64], index: 4, kind: input, shape index: {}]
  %s5 = inlined_call_operand.vmem [shape: f32[1,64], index: 5, kind: input, shape index: {}]
  %s6 = inlined_call_operand.vmem [shape: f32[1,64], index: 6, kind: input, shape index: {}]
  %s7 = inlined_call_operand.vmem [shape: f32[64,128], index: 7, kind: input, shape index: {}]
  %s8 = inlined_call_operand.vmem [shape: f32[1,128], index: 8, kind: input, shape index: {}]
  %s9 = inlined_call_operand.vmem [shape: f32[128,64], index: 9, kind: input, shape index: {}]
  %s10 = inlined_call_operand.vmem [shape: f32[1,64], index: 10, kind: input, shape index: {}]
  %s11 = inlined_call_operand.vmem [shape: f32[1,64], index: 11, kind: input, shape index: {}]
  %s12 = inlined_call_operand.vmem [shape: f32[1,64], index: 12, kind: input, shape index: {}]
  %s13 = inlined_call_operand.vmem [shape: f32[16,64], index: 13, kind: output, shape index: {}]
  %s14 = sld [smem:[#allocation0]]
  $region62: #{gatgnn_forward.31} parent=0
    _
  %s16 = ssub.s32 1, %s14
  %s17 = scalar_select 0, %s16, %s14
  // Predicated region
  $region2: #{gatgnn_forward.31} parent=0 // pred_check
    _
  $region3: #{gatgnn_forward.31} parent=0 // pred_check_branch
    %19 = sbr.rel (0) target = $region5
  $region4: #{gatgnn_forward.31} parent=0 // pred_region
    _
  $region5: #{gatgnn_forward.31} parent=0 // pred_fallthru
    _
  // Predicated region
  $region6: #{gatgnn_forward.31} parent=0 // pred_check
    _
  $region7: #{gatgnn_forward.31} parent=0 // pred_check_branch
    %21 = sbr.rel (0) target = $region9
  $region8: #{gatgnn_forward.31} parent=0 // pred_region
    _
  $region9: #{gatgnn_forward.31} parent=0 // pred_fallthru
    _
  // Predicated region
  $region10: #{gatgnn_forward.31} parent=0 // pred_check
    _
  $region11: #{gatgnn_forward.31} parent=0 // pred_check_branch
    %23 = sbr.rel (0) target = $region13
  $region12: #{gatgnn_forward.31} parent=0 // pred_region
    _
  $region13: #{gatgnn_forward.31} parent=0 // pred_fallthru
    _
  // Predicated region
  $region14: #{gatgnn_forward.31} parent=0 // pred_check
    _
  $region15: #{gatgnn_forward.31} parent=0 // pred_check_branch
    %25 = sbr.rel (0) target = $region17
  $region16: #{gatgnn_forward.31} parent=0 // pred_region
    _
  $region17: #{gatgnn_forward.31} parent=0 // pred_fallthru
    _
  // Predicated region
  $region18: #{gatgnn_forward.31} parent=0 // pred_check
    _
  $region19: #{gatgnn_forward.31} parent=0 // pred_check_branch
    %27 = sbr.rel (0) target = $region21
  $region20: #{gatgnn_forward.31} parent=0 // pred_region
    _
  $region21: #{gatgnn_forward.31} parent=0 // pred_fallthru
    _
  // Predicated region
  $region22: #{gatgnn_forward.31} parent=0 // pred_check
    _
  $region23: #{gatgnn_forward.31} parent=0 // pred_check_branch
    %29 = sbr.rel (0) target = $region25
  $region24: #{gatgnn_forward.31} parent=0 // pred_region
    _
  $region25: #{gatgnn_forward.31} parent=0 // pred_fallthru
    _
  // Predicated region
  $region26: #{gatgnn_forward.31} parent=0 // pred_check
    _
  $region27: #{gatgnn_forward.31} parent=0 // pred_check_branch
    %31 = sbr.rel (0) target = $region29
  $region28: #{gatgnn_forward.31} parent=0 // pred_region
    _
  $region29: #{gatgnn_forward.31} parent=0 // pred_fallthru
    _
  // Predicated region
  $region30: #{gatgnn_forward.31} parent=0 // pred_check
    _
  $region31: #{gatgnn_forward.31} parent=0 // pred_check_branch
    %33 = sbr.rel (0) target = $region33
  $region32: #{gatgnn_forward.31} parent=0 // pred_region
    _
  $region33: #{gatgnn_forward.31} parent=0 // pred_fallthru
    _
  // Predicated region
  $region34: #{gatgnn_forward.31} parent=0 // pred_check
    _
  $region35: #{gatgnn_forward.31} parent=0 // pred_check_branch
    %35 = sbr.rel (0) target = $region37
  $region36: #{gatgnn_forward.31} parent=0 // pred_region
    _
  $region37: #{gatgnn_forward.31} parent=0 // pred_fallthru
    _
  // Predicated region
  $region38: #{gatgnn_forward.31} parent=0 // pred_check
    _
  $region39: #{gatgnn_forward.31} parent=0 // pred_check_branch
    %37 = sbr.rel (0) target = $region41
  $region40: #{gatgnn_forward.31} parent=0 // pred_region
    _
  $region41: #{gatgnn_forward.31} parent=0 // pred_fallthru
    _
  // Predicated region
  $region42: #{gatgnn_forward.31} parent=0 // pred_check
    _
  $region43: #{gatgnn_forward.31} parent=0 // pred_check_branch
    %39 = sbr.rel (0) target = $region45
  $region44: #{gatgnn_forward.31} parent=0 // pred_region
    _
  $region45: #{gatgnn_forward.31} parent=0 // pred_fallthru
    _
  // Predicated region
  $region46: #{gatgnn_forward.31} parent=0 // pred_check
    _
  $region47: #{gatgnn_forward.31} parent=0 // pred_check_branch
    %41 = sbr.rel (0) target = $region49
  $region48: #{gatgnn_forward.31} parent=0 // pred_region
    _
  $region49: #{gatgnn_forward.31} parent=0 // pred_fallthru
    _
  // Predicated region
  $region50: #{gatgnn_forward.31} parent=0 // pred_check
    _
  $region51: #{gatgnn_forward.31} parent=0 // pred_check_branch
    %43 = sbr.rel (0) target = $region53
  $region52: #{gatgnn_forward.31} parent=0 // pred_region
    _
  $region53: #{gatgnn_forward.31} parent=0 // pred_fallthru
    _
  %v45 = vld [vmem:[%s0] sm:$0xff]
  %v46 = vld [vmem:[%s0 + $0x8] sm:$0xff]
  %v47 = vld [vmem:[%s2] sm:$0xff]
  %v48 = vld [vmem:[%s2 + $0x8] sm:$0xff]
  %v49 = vld [vmem:[%s2 + $0x10] sm:$0xff]
  %v50 = vld [vmem:[%s2 + $0x18] sm:$0xff]
  %v51 = vld [vmem:[%s1] sm:$0xff]
  %v52 = vld [vmem:[%s1 + $0x10] sm:$0xff]
  %v53 = vmul.f32 %v51, 0.35355338
  %v54 = vmul.f32 %v52, 0.35355338
  %v55 = vpack.c.bf16 %v49, %v47
  %v56 = vlaneseq
  %v57 = vand.u32 %v56, 127
  %vm58 = vcmp.lt.s32.totalorder %v57, 16
  %vm59 = vcmp.ge.s32.totalorder %v57, 0
  %vm60 = vcmp.lt.s32.totalorder %v57, 8
  %vm61 = vmand %vm59, %vm60
  %v62 = vsel %vm61, 1, 0
  %vm63 = vcmp.eq.s32.totalorder %v62, 1
  %v64 = vsel %vm63, %v53, 0.0
  %v65 = vsel %vm63, %v54, 0.0
  %v66 = vpack.c.bf16 %v65, %v64
  %v67 = vsel %vm63, %v48, 0.0
  %v68 = vsel %vm63, %v50, 0.0
  %v69 = vpack.c.bf16 %v68, %v67
  %71 = vrot.lane.b32.xlu0 %v55, 64
  %v72 = vpop.permute.xlu0 %71
  %vm73 = vcmask 523264
  %v75 = vsel %vm73, %v66, 0
  %v78 = vsel %vm73, %v72, 0
  %80 = vmatprep.subr.bf16.mxu0 0
  %81 = vmatpush1.bf16.xpose.msra.mxu0 %v78
  %82 = vmatprep.subr.bf16.mxu0 0
  %83 = vmatpush1.bf16.xpose.msra.mxu0 0
  %84 = vmatprep.subr.bf16.mxu0 0
  %85 = vmatpush1.bf16.xpose.msra.mxu0 0
  %86 = vmatprep.subr.bf16.mxu0 0
  %87 = vmatpush1.bf16.xpose.msra.mxu0 0
  %88 = vmatprep.subr.bf16.mxu0 0
  %89 = vmatpush1.bf16.xpose.msra.mxu0 0
  %90 = vmatprep.subr.bf16.mxu0 0
  %91 = vmatpush1.bf16.xpose.msra.mxu0 0
  %92 = vmatprep.subr.bf16.mxu0 0
  %93 = vmatpush1.bf16.xpose.msra.mxu0 0
  %94 = vmatprep.subr.bf16.mxu0 0
  %95 = vmatpush1.bf16.xpose.msra.mxu0 0
  %96 = vmatprep.subr.bf16.mxu0 0
  %97 = vmatpush1.bf16.xpose.msra.mxu0 0
  %98 = vmatprep.subr.bf16.mxu0 0
  %99 = vmatpush1.bf16.xpose.msra.mxu0 0
  %100 = vmatprep.subr.bf16.mxu0 0
  %101 = vmatpush1.bf16.xpose.msra.mxu0 0
  %102 = vmatprep.subr.bf16.mxu0 0
  %103 = vmatpush1.bf16.xpose.msra.mxu0 0
  %104 = vmatprep.subr.bf16.mxu0 0
  %105 = vmatpush1.bf16.xpose.msra.mxu0 0
  %106 = vmatprep.subr.bf16.mxu0 0
  %107 = vmatpush1.bf16.xpose.msra.mxu0 0
  %108 = vmatprep.subr.bf16.mxu0 0
  %109 = vmatpush1.bf16.xpose.msra.mxu0 0
  %110 = vmatprep.subr.bf16.mxu0 0
  %111 = vmatpush1.bf16.xpose.msra.mxu0 0
  %112 = vmatprep.mubr.bf16.mxu0 0
  %113 = vmatmul.mubr.bf16.gmra.mrb[0].mxu0 %v75
  %v114 = vpop.f32.mrb[0].mxu0
  %v115 = vadd.f32 0.0, %v114
  %v116 = vpop.f32.mrb[0].mxu0
  %v117 = vpop.f32.mrb[0].mxu0
  %v118 = vadd.f32 0.0, %v117
  %v119 = vpop.f32.mrb[0].mxu0
  %120 = vdwg.mxu0
  %v121 = vsel %vm58, 1, 0
  %vm122 = vcmp.eq.s32.totalorder %v121, 1
  %v123 = vsel %vm122, %v115, -1e+30
  %v124 = vsel %vm122, %v118, -1e+30
  %vm125 = vcmask 130048
  %v126 = vsel %vm125, %v123, -inf
  %127 = vmax.xlane.f32.xlu0 %v126
  %v128 = vpop.xlane.xlu0 %127
  %v129 = vsel %vm125, %v124, -inf
  %130 = vmax.xlane.f32.xlu0 %v129
  %v131 = vpop.xlane.xlu0 %130
  %v132 = vsub.f32 %v123, %v128
  %v133 = vsub.f32 %v124, %v131
  %v134 = vmul.f32 %v132, 1.442695
  %v135 = vpow.pop %v134
  %v136 = vmul.f32 %v133, 1.442695
  %v137 = vpow.pop %v136
  %v138 = vsel %vm125, %v135, 0.0
  %139 = vadd.xlane.f32.xlu0 %v138
  %v140 = vpop.xlane.xlu0 %139
  %v141 = vsel %vm125, %v137, 0.0
  %142 = vadd.xlane.f32.xlu0 %v141
  %v143 = vpop.xlane.xlu0 %142
  %v144 = vrcp.pop %v140
  %v145 = vmul.f32 %v135, %v144
  %v146 = vrcp.pop %v143
  %v147 = vmul.f32 %v137, %v146
  %v148 = vpack.c.bf16 %v147, %v145
  %vm149 = vcmp.ge.s32.totalorder %v57, 8
  %vm150 = vmand %vm149, %vm58
  %v151 = vsel %vm150, 1, 0
  %vm152 = vcmp.eq.s32.totalorder %v151, 1
  %v153 = vsel %vm152, %v53, 0.0
  %v154 = vsel %vm152, %v54, 0.0
  %v155 = vpack.c.bf16 %v154, %v153
  %v156 = vsel %vm152, %v48, 0.0
  %v157 = vsel %vm152, %v50, 0.0
  %v158 = vpack.c.bf16 %v157, %v156
  %v160 = vsel %vm73, %v155, 0
  %162 = vmatprep.subr.bf16.mxu0 0
  %163 = vmatpush1.bf16.xpose.msra.mxu0 %v78
  %164 = vmatprep.subr.bf16.mxu0 0
  %165 = vmatpush1.bf16.xpose.msra.mxu0 0
  %166 = vmatprep.subr.bf16.mxu0 0
  %167 = vmatpush1.bf16.xpose.msra.mxu0 0
  %168 = vmatprep.subr.bf16.mxu0 0
  %169 = vmatpush1.bf16.xpose.msra.mxu0 0
  %170 = vmatprep.subr.bf16.mxu0 0
  %171 = vmatpush1.bf16.xpose.msra.mxu0 0
  %172 = vmatprep.subr.bf16.mxu0 0
  %173 = vmatpush1.bf16.xpose.msra.mxu0 0
  %174 = vmatprep.subr.bf16.mxu0 0
  %175 = vmatpush1.bf16.xpose.msra.mxu0 0
  %176 = vmatprep.subr.bf16.mxu0 0
  %177 = vmatpush1.bf16.xpose.msra.mxu0 0
  %178 = vmatprep.subr.bf16.mxu0 0
  %179 = vmatpush1.bf16.xpose.msra.mxu0 0
  %180 = vmatprep.subr.bf16.mxu0 0
  %181 = vmatpush1.bf16.xpose.msra.mxu0 0
  %182 = vmatprep.subr.bf16.mxu0 0
  %183 = vmatpush1.bf16.xpose.msra.mxu0 0
  %184 = vmatprep.subr.bf16.mxu0 0
  %185 = vmatpush1.bf16.xpose.msra.mxu0 0
  %186 = vmatprep.subr.bf16.mxu0 0
  %187 = vmatpush1.bf16.xpose.msra.mxu0 0
  %188 = vmatprep.subr.bf16.mxu0 0
  %189 = vmatpush1.bf16.xpose.msra.mxu0 0
  %190 = vmatprep.subr.bf16.mxu0 0
  %191 = vmatpush1.bf16.xpose.msra.mxu0 0
  %192 = vmatprep.subr.bf16.mxu0 0
  %193 = vmatpush1.bf16.xpose.msra.mxu0 0
  %194 = vmatprep.mubr.bf16.mxu0 0
  %195 = vmatmul.mubr.bf16.gmra.mrb[0].mxu0 %v160
  %v196 = vpop.f32.mrb[0].mxu0
  %v197 = vadd.f32 0.0, %v196
  %v198 = vpop.f32.mrb[0].mxu0
  %v199 = vpop.f32.mrb[0].mxu0
  %v200 = vadd.f32 0.0, %v199
  %v201 = vpop.f32.mrb[0].mxu0
  %202 = vdwg.mxu0
  %v203 = vsel %vm122, %v197, -1e+30
  %v204 = vsel %vm122, %v200, -1e+30
  %v205 = vsel %vm125, %v203, -inf
  %206 = vmax.xlane.f32.xlu0 %v205
  %v207 = vpop.xlane.xlu0 %206
  %v208 = vsel %vm125, %v204, -inf
  %209 = vmax.xlane.f32.xlu0 %v208
  %v210 = vpop.xlane.xlu0 %209
  %v211 = vsub.f32 %v203, %v207
  %v212 = vsub.f32 %v204, %v210
  %v213 = vmul.f32 %v211, 1.442695
  %v214 = vpow.pop %v213
  %v215 = vmul.f32 %v212, 1.442695
  %v216 = vpow.pop %v215
  %v217 = vsel %vm125, %v214, 0.0
  %218 = vadd.xlane.f32.xlu0 %v217
  %v219 = vpop.xlane.xlu0 %218
  %v220 = vsel %vm125, %v216, 0.0
  %221 = vadd.xlane.f32.xlu0 %v220
  %v222 = vpop.xlane.xlu0 %221
  %v223 = vrcp.pop %v219
  %v224 = vmul.f32 %v214, %v223
  %v225 = vrcp.pop %v222
  %v226 = vmul.f32 %v216, %v225
  %v227 = vpack.c.bf16 %v226, %v224
  %v229 = vsel %vm125, %v227, 0
  %231 = vmatprep.subr.bf16.mxu0 0
  %232 = vmatpush1.bf16.msra.mxu0 %v158
  %233 = vmatprep.subr.bf16.mxu0 0
  %234 = vmatpush1.bf16.msra.mxu0 0
  %235 = vmatprep.subr.bf16.mxu0 0
  %236 = vmatpush1.bf16.msra.mxu0 0
  %237 = vmatprep.subr.bf16.mxu0 0
  %238 = vmatpush1.bf16.msra.mxu0 0
  %239 = vmatprep.subr.bf16.mxu0 0
  %240 = vmatpush1.bf16.msra.mxu0 0
  %241 = vmatprep.subr.bf16.mxu0 0
  %242 = vmatpush1.bf16.msra.mxu0 0
  %243 = vmatprep.subr.bf16.mxu0 0
  %244 = vmatpush1.bf16.msra.mxu0 0
  %245 = vmatprep.subr.bf16.mxu0 0
  %246 = vmatpush1.bf16.msra.mxu0 0
  %247 = vmatprep.subr.bf16.mxu0 0
  %248 = vmatpush1.bf16.msra.mxu0 0
  %249 = vmatprep.subr.bf16.mxu0 0
  %250 = vmatpush1.bf16.msra.mxu0 0
  %251 = vmatprep.subr.bf16.mxu0 0
  %252 = vmatpush1.bf16.msra.mxu0 0
  %253 = vmatprep.subr.bf16.mxu0 0
  %254 = vmatpush1.bf16.msra.mxu0 0
  %255 = vmatprep.subr.bf16.mxu0 0
  %256 = vmatpush1.bf16.msra.mxu0 0
  %257 = vmatprep.subr.bf16.mxu0 0
  %258 = vmatpush1.bf16.msra.mxu0 0
  %259 = vmatprep.subr.bf16.mxu0 0
  %260 = vmatpush1.bf16.msra.mxu0 0
  %261 = vmatprep.subr.bf16.mxu0 0
  %262 = vmatpush1.bf16.msra.mxu0 0
  %263 = vmatprep.mubr.bf16.mxu0 0
  %264 = vmatmul.mubr.bf16.gmra.mrb[0].mxu0 %v229
  %v265 = vpop.f32.mrb[0].mxu0
  %v266 = vadd.f32 0.0, %v265
  %v267 = vpop.f32.mrb[0].mxu0
  %v268 = vpop.f32.mrb[0].mxu0
  %v269 = vadd.f32 0.0, %v268
  %v270 = vpop.f32.mrb[0].mxu0
  %271 = vdwg.mxu0
  %v273 = vsel %vm125, %v148, 0
  %275 = vmatprep.subr.bf16.mxu0 0
  %276 = vmatpush1.bf16.msra.mxu0 %v69
  %277 = vmatprep.subr.bf16.mxu0 0
  %278 = vmatpush1.bf16.msra.mxu0 0
  %279 = vmatprep.subr.bf16.mxu0 0
  %280 = vmatpush1.bf16.msra.mxu0 0
  %281 = vmatprep.subr.bf16.mxu0 0
  %282 = vmatpush1.bf16.msra.mxu0 0
  %283 = vmatprep.subr.bf16.mxu0 0
  %284 = vmatpush1.bf16.msra.mxu0 0
  %285 = vmatprep.subr.bf16.mxu0 0
  %286 = vmatpush1.bf16.msra.mxu0 0
  %287 = vmatprep.subr.bf16.mxu0 0
  %288 = vmatpush1.bf16.msra.mxu0 0
  %289 = vmatprep.subr.bf16.mxu0 0
  %290 = vmatpush1.bf16.msra.mxu0 0
  %291 = vmatprep.subr.bf16.mxu0 0
  %292 = vmatpush1.bf16.msra.mxu0 0
  %293 = vmatprep.subr.bf16.mxu0 0
  %294 = vmatpush1.bf16.msra.mxu0 0
  %295 = vmatprep.subr.bf16.mxu0 0
  %296 = vmatpush1.bf16.msra.mxu0 0
  %297 = vmatprep.subr.bf16.mxu0 0
  %298 = vmatpush1.bf16.msra.mxu0 0
  %299 = vmatprep.subr.bf16.mxu0 0
  %300 = vmatpush1.bf16.msra.mxu0 0
  %301 = vmatprep.subr.bf16.mxu0 0
  %302 = vmatpush1.bf16.msra.mxu0 0
  %303 = vmatprep.subr.bf16.mxu0 0
  %304 = vmatpush1.bf16.msra.mxu0 0
  %305 = vmatprep.subr.bf16.mxu0 0
  %306 = vmatpush1.bf16.msra.mxu0 0
  %307 = vmatprep.mubr.bf16.mxu0 0
  %308 = vmatmul.mubr.bf16.gmra.mrb[0].mxu0 %v273
  %v309 = vpop.f32.mrb[0].mxu0
  %v310 = vadd.f32 %v266, %v309
  %v311 = vpop.f32.mrb[0].mxu0
  %v312 = vpop.f32.mrb[0].mxu0
  %v313 = vadd.f32 %v269, %v312
  %v314 = vpop.f32.mrb[0].mxu0
  %315 = vdwg.mxu0
  %vm316 = vcmp.ge.s32.totalorder %v57, 16
  %vm317 = vcmp.lt.s32.totalorder %v57, 24
  %vm318 = vmand %vm316, %vm317
  %v319 = vsel %vm318, 1, 0
  %vm320 = vcmp.eq.s32.totalorder %v319, 1
  %v321 = vsel %vm320, %v53, 0.0
  %v322 = vsel %vm320, %v54, 0.0
  %v323 = vpack.c.bf16 %v322, %v321
  %v324 = vsel %vm320, %v48, 0.0
  %v325 = vsel %vm320, %v50, 0.0
  %v326 = vpack.c.bf16 %v325, %v324
  %v328 = vsel %vm73, %v323, 0
  %330 = vmatprep.subr.bf16.mxu0 0
  %331 = vmatpush1.bf16.xpose.msra.mxu0 %v78
  %332 = vmatprep.subr.bf16.mxu0 0
  %333 = vmatpush1.bf16.xpose.msra.mxu0 0
  %334 = vmatprep.subr.bf16.mxu0 0
  %335 = vmatpush1.bf16.xpose.msra.mxu0 0
  %336 = vmatprep.subr.bf16.mxu0 0
  %337 = vmatpush1.bf16.xpose.msra.mxu0 0
  %338 = vmatprep.subr.bf16.mxu0 0
  %339 = vmatpush1.bf16.xpose.msra.mxu0 0
  %340 = vmatprep.subr.bf16.mxu0 0
  %341 = vmatpush1.bf16.xpose.msra.mxu0 0
  %342 = vmatprep.subr.bf16.mxu0 0
  %343 = vmatpush1.bf16.xpose.msra.mxu0 0
  %344 = vmatprep.subr.bf16.mxu0 0
  %345 = vmatpush1.bf16.xpose.msra.mxu0 0
  %346 = vmatprep.subr.bf16.mxu0 0
  %347 = vmatpush1.bf16.xpose.msra.mxu0 0
  %348 = vmatprep.subr.bf16.mxu0 0
  %349 = vmatpush1.bf16.xpose.msra.mxu0 0
  %350 = vmatprep.subr.bf16.mxu0 0
  %351 = vmatpush1.bf16.xpose.msra.mxu0 0
  %352 = vmatprep.subr.bf16.mxu0 0
  %353 = vmatpush1.bf16.xpose.msra.mxu0 0
  %354 = vmatprep.subr.bf16.mxu0 0
  %355 = vmatpush1.bf16.xpose.msra.mxu0 0
  %356 = vmatprep.subr.bf16.mxu0 0
  %357 = vmatpush1.bf16.xpose.msra.mxu0 0
  %358 = vmatprep.subr.bf16.mxu0 0
  %359 = vmatpush1.bf16.xpose.msra.mxu0 0
  %360 = vmatprep.subr.bf16.mxu0 0
  %361 = vmatpush1.bf16.xpose.msra.mxu0 0
  %362 = vmatprep.mubr.bf16.mxu0 0
  %363 = vmatmul.mubr.bf16.gmra.mrb[0].mxu0 %v328
  %v364 = vpop.f32.mrb[0].mxu0
  %v365 = vadd.f32 0.0, %v364
  %v366 = vpop.f32.mrb[0].mxu0
  %v367 = vpop.f32.mrb[0].mxu0
  %v368 = vadd.f32 0.0, %v367
  %v369 = vpop.f32.mrb[0].mxu0
  %370 = vdwg.mxu0
  %v371 = vsel %vm122, %v365, -1e+30
  %v372 = vsel %vm122, %v368, -1e+30
  %v373 = vsel %vm125, %v371, -inf
  %374 = vmax.xlane.f32.xlu0 %v373
  %v375 = vpop.xlane.xlu0 %374
  %v376 = vsel %vm125, %v372, -inf
  %377 = vmax.xlane.f32.xlu0 %v376
  %v378 = vpop.xlane.xlu0 %377
  %v379 = vsub.f32 %v371, %v375
  %v380 = vsub.f32 %v372, %v378
  %v381 = vmul.f32 %v379, 1.442695
  %v382 = vpow.pop %v381
  %v383 = vmul.f32 %v380, 1.442695
  %v384 = vpow.pop %v383
  %v385 = vsel %vm125, %v382, 0.0
  %386 = vadd.xlane.f32.xlu0 %v385
  %v387 = vpop.xlane.xlu0 %386
  %v388 = vsel %vm125, %v384, 0.0
  %389 = vadd.xlane.f32.xlu0 %v388
  %v390 = vpop.xlane.xlu0 %389
  %v391 = vrcp.pop %v387
  %v392 = vmul.f32 %v382, %v391
  %v393 = vrcp.pop %v390
  %v394 = vmul.f32 %v384, %v393
  %v395 = vpack.c.bf16 %v394, %v392
  %v397 = vsel %vm125, %v395, 0
  %399 = vmatprep.subr.bf16.mxu0 0
  %400 = vmatpush1.bf16.msra.mxu0 %v326
  %401 = vmatprep.subr.bf16.mxu0 0
  %402 = vmatpush1.bf16.msra.mxu0 0
  %403 = vmatprep.subr.bf16.mxu0 0
  %404 = vmatpush1.bf16.msra.mxu0 0
  %405 = vmatprep.subr.bf16.mxu0 0
  %406 = vmatpush1.bf16.msra.mxu0 0
  %407 = vmatprep.subr.bf16.mxu0 0
  %408 = vmatpush1.bf16.msra.mxu0 0
  %409 = vmatprep.subr.bf16.mxu0 0
  %410 = vmatpush1.bf16.msra.mxu0 0
  %411 = vmatprep.subr.bf16.mxu0 0
  %412 = vmatpush1.bf16.msra.mxu0 0
  %413 = vmatprep.subr.bf16.mxu0 0
  %414 = vmatpush1.bf16.msra.mxu0 0
  %415 = vmatprep.subr.bf16.mxu0 0
  %416 = vmatpush1.bf16.msra.mxu0 0
  %417 = vmatprep.subr.bf16.mxu0 0
  %418 = vmatpush1.bf16.msra.mxu0 0
  %419 = vmatprep.subr.bf16.mxu0 0
  %420 = vmatpush1.bf16.msra.mxu0 0
  %421 = vmatprep.subr.bf16.mxu0 0
  %422 = vmatpush1.bf16.msra.mxu0 0
  %423 = vmatprep.subr.bf16.mxu0 0
  %424 = vmatpush1.bf16.msra.mxu0 0
  %425 = vmatprep.subr.bf16.mxu0 0
  %426 = vmatpush1.bf16.msra.mxu0 0
  %427 = vmatprep.subr.bf16.mxu0 0
  %428 = vmatpush1.bf16.msra.mxu0 0
  %429 = vmatprep.subr.bf16.mxu0 0
  %430 = vmatpush1.bf16.msra.mxu0 0
  %431 = vmatprep.mubr.bf16.mxu0 0
  %432 = vmatmul.mubr.bf16.gmra.mrb[0].mxu0 %v397
  %v433 = vpop.f32.mrb[0].mxu0
  %v434 = vadd.f32 0.0, %v433
  %v435 = vpop.f32.mrb[0].mxu0
  %v436 = vpop.f32.mrb[0].mxu0
  %v437 = vadd.f32 0.0, %v436
  %v438 = vpop.f32.mrb[0].mxu0
  %439 = vdwg.mxu0
  %v440 = vadd.f32 %v310, %v434
  %v441 = vadd.f32 %v313, %v437
  %vm442 = vcmp.ge.s32.totalorder %v57, 24
  %vm443 = vcmp.lt.s32.totalorder %v57, 32
  %vm444 = vmand %vm442, %vm443
  %v445 = vsel %vm444, 1, 0
  %vm446 = vcmp.eq.s32.totalorder %v445, 1
  %v447 = vsel %vm446, %v53, 0.0
  %v448 = vsel %vm446, %v54, 0.0
  %v449 = vpack.c.bf16 %v448, %v447
  %v450 = vsel %vm446, %v48, 0.0
  %v451 = vsel %vm446, %v50, 0.0
  %v452 = vpack.c.bf16 %v451, %v450
  %v454 = vsel %vm73, %v449, 0
  %456 = vmatprep.subr.bf16.mxu0 0
  %457 = vmatpush1.bf16.xpose.msra.mxu0 %v78
  %458 = vmatprep.subr.bf16.mxu0 0
  %459 = vmatpush1.bf16.xpose.msra.mxu0 0
  %460 = vmatprep.subr.bf16.mxu0 0
  %461 = vmatpush1.bf16.xpose.msra.mxu0 0
  %462 = vmatprep.subr.bf16.mxu0 0
  %463 = vmatpush1.bf16.xpose.msra.mxu0 0
  %464 = vmatprep.subr.bf16.mxu0 0
  %465 = vmatpush1.bf16.xpose.msra.mxu0 0
  %466 = vmatprep.subr.bf16.mxu0 0
  %467 = vmatpush1.bf16.xpose.msra.mxu0 0
  %468 = vmatprep.subr.bf16.mxu0 0
  %469 = vmatpush1.bf16.xpose.msra.mxu0 0
  %470 = vmatprep.subr.bf16.mxu0 0
  %471 = vmatpush1.bf16.xpose.msra.mxu0 0
  %472 = vmatprep.subr.bf16.mxu0 0
  %473 = vmatpush1.bf16.xpose.msra.mxu0 0
  %474 = vmatprep.subr.bf16.mxu0 0
  %475 = vmatpush1.bf16.xpose.msra.mxu0 0
  %476 = vmatprep.subr.bf16.mxu0 0
  %477 = vmatpush1.bf16.xpose.msra.mxu0 0
  %478 = vmatprep.subr.bf16.mxu0 0
  %479 = vmatpush1.bf16.xpose.msra.mxu0 0
  %480 = vmatprep.subr.bf16.mxu0 0
  %481 = vmatpush1.bf16.xpose.msra.mxu0 0
  %482 = vmatprep.subr.bf16.mxu0 0
  %483 = vmatpush1.bf16.xpose.msra.mxu0 0
  %484 = vmatprep.subr.bf16.mxu0 0
  %485 = vmatpush1.bf16.xpose.msra.mxu0 0
  %486 = vmatprep.subr.bf16.mxu0 0
  %487 = vmatpush1.bf16.xpose.msra.mxu0 0
  %488 = vmatprep.mubr.bf16.mxu0 0
  %489 = vmatmul.mubr.bf16.gmra.mrb[0].mxu0 %v454
  %v490 = vpop.f32.mrb[0].mxu0
  %v491 = vadd.f32 0.0, %v490
  %v492 = vpop.f32.mrb[0].mxu0
  %v493 = vpop.f32.mrb[0].mxu0
  %v494 = vadd.f32 0.0, %v493
  %v495 = vpop.f32.mrb[0].mxu0
  %496 = vdwg.mxu0
  %v497 = vsel %vm122, %v491, -1e+30
  %v498 = vsel %vm122, %v494, -1e+30
  %v499 = vsel %vm125, %v497, -inf
  %500 = vmax.xlane.f32.xlu0 %v499
  %v501 = vpop.xlane.xlu0 %500
  %v502 = vsel %vm125, %v498, -inf
  %503 = vmax.xlane.f32.xlu0 %v502
  %v504 = vpop.xlane.xlu0 %503
  %v505 = vsub.f32 %v497, %v501
  %v506 = vsub.f32 %v498, %v504
  %v507 = vmul.f32 %v505, 1.442695
  %v508 = vpow.pop %v507
  %v509 = vmul.f32 %v506, 1.442695
  %v510 = vpow.pop %v509
  %v511 = vsel %vm125, %v508, 0.0
  %512 = vadd.xlane.f32.xlu0 %v511
  %v513 = vpop.xlane.xlu0 %512
  %v514 = vsel %vm125, %v510, 0.0
  %515 = vadd.xlane.f32.xlu0 %v514
  %v516 = vpop.xlane.xlu0 %515
  %v517 = vrcp.pop %v513
  %v518 = vmul.f32 %v508, %v517
  %v519 = vrcp.pop %v516
  %v520 = vmul.f32 %v510, %v519
  %v521 = vpack.c.bf16 %v520, %v518
  %v523 = vsel %vm125, %v521, 0
  %525 = vmatprep.subr.bf16.mxu0 0
  %526 = vmatpush1.bf16.msra.mxu0 %v452
  %527 = vmatprep.subr.bf16.mxu0 0
  %528 = vmatpush1.bf16.msra.mxu0 0
  %529 = vmatprep.subr.bf16.mxu0 0
  %530 = vmatpush1.bf16.msra.mxu0 0
  %531 = vmatprep.subr.bf16.mxu0 0
  %532 = vmatpush1.bf16.msra.mxu0 0
  %533 = vmatprep.subr.bf16.mxu0 0
  %534 = vmatpush1.bf16.msra.mxu0 0
  %535 = vmatprep.subr.bf16.mxu0 0
  %536 = vmatpush1.bf16.msra.mxu0 0
  %537 = vmatprep.subr.bf16.mxu0 0
  %538 = vmatpush1.bf16.msra.mxu0 0
  %539 = vmatprep.subr.bf16.mxu0 0
  %540 = vmatpush1.bf16.msra.mxu0 0
  %541 = vmatprep.subr.bf16.mxu0 0
  %542 = vmatpush1.bf16.msra.mxu0 0
  %543 = vmatprep.subr.bf16.mxu0 0
  %544 = vmatpush1.bf16.msra.mxu0 0
  %545 = vmatprep.subr.bf16.mxu0 0
  %546 = vmatpush1.bf16.msra.mxu0 0
  %547 = vmatprep.subr.bf16.mxu0 0
  %548 = vmatpush1.bf16.msra.mxu0 0
  %549 = vmatprep.subr.bf16.mxu0 0
  %550 = vmatpush1.bf16.msra.mxu0 0
  %551 = vmatprep.subr.bf16.mxu0 0
  %552 = vmatpush1.bf16.msra.mxu0 0
  %553 = vmatprep.subr.bf16.mxu0 0
  %554 = vmatpush1.bf16.msra.mxu0 0
  %555 = vmatprep.subr.bf16.mxu0 0
  %556 = vmatpush1.bf16.msra.mxu0 0
  %557 = vmatprep.mubr.bf16.mxu0 0
  %558 = vmatmul.mubr.bf16.gmra.mrb[0].mxu0 %v523
  %v559 = vpop.f32.mrb[0].mxu0
  %v560 = vadd.f32 0.0, %v559
  %v561 = vpop.f32.mrb[0].mxu0
  %v562 = vpop.f32.mrb[0].mxu0
  %v563 = vadd.f32 0.0, %v562
  %v564 = vpop.f32.mrb[0].mxu0
  %565 = vdwg.mxu0
  %v566 = vadd.f32 %v440, %v560
  %v567 = vadd.f32 %v441, %v563
  %vm568 = vcmp.ge.s32.totalorder %v57, 32
  %vm569 = vcmp.lt.s32.totalorder %v57, 40
  %vm570 = vmand %vm568, %vm569
  %v571 = vsel %vm570, 1, 0
  %vm572 = vcmp.eq.s32.totalorder %v571, 1
  %v573 = vsel %vm572, %v53, 0.0
  %v574 = vsel %vm572, %v54, 0.0
  %v575 = vpack.c.bf16 %v574, %v573
  %v576 = vsel %vm572, %v48, 0.0
  %v577 = vsel %vm572, %v50, 0.0
  %v578 = vpack.c.bf16 %v577, %v576
  %v580 = vsel %vm73, %v575, 0
  %582 = vmatprep.subr.bf16.mxu0 0
  %583 = vmatpush1.bf16.xpose.msra.mxu0 %v78
  %584 = vmatprep.subr.bf16.mxu0 0
  %585 = vmatpush1.bf16.xpose.msra.mxu0 0
  %586 = vmatprep.subr.bf16.mxu0 0
  %587 = vmatpush1.bf16.xpose.msra.mxu0 0
  %588 = vmatprep.subr.bf16.mxu0 0
  %589 = vmatpush1.bf16.xpose.msra.mxu0 0
  %590 = vmatprep.subr.bf16.mxu0 0
  %591 = vmatpush1.bf16.xpose.msra.mxu0 0
  %592 = vmatprep.subr.bf16.mxu0 0
  %593 = vmatpush1.bf16.xpose.msra.mxu0 0
  %594 = vmatprep.subr.bf16.mxu0 0
  %595 = vmatpush1.bf16.xpose.msra.mxu0 0
  %596 = vmatprep.subr.bf16.mxu0 0
  %597 = vmatpush1.bf16.xpose.msra.mxu0 0
  %598 = vmatprep.subr.bf16.mxu0 0
  %599 = vmatpush1.bf16.xpose.msra.mxu0 0
  %600 = vmatprep.subr.bf16.mxu0 0
  %601 = vmatpush1.bf16.xpose.msra.mxu0 0
  %602 = vmatprep.subr.bf16.mxu0 0
  %603 = vmatpush1.bf16.xpose.msra.mxu0 0
  %604 = vmatprep.subr.bf16.mxu0 0
  %605 = vmatpush1.bf16.xpose.msra.mxu0 0
  %606 = vmatprep.subr.bf16.mxu0 0
  %607 = vmatpush1.bf16.xpose.msra.mxu0 0
  %608 = vmatprep.subr.bf16.mxu0 0
  %609 = vmatpush1.bf16.xpose.msra.mxu0 0
  %610 = vmatprep.subr.bf16.mxu0 0
  %611 = vmatpush1.bf16.xpose.msra.mxu0 0
  %612 = vmatprep.subr.bf16.mxu0 0
  %613 = vmatpush1.bf16.xpose.msra.mxu0 0
  %614 = vmatprep.mubr.bf16.mxu0 0
  %615 = vmatmul.mubr.bf16.gmra.mrb[0].mxu0 %v580
  %v616 = vpop.f32.mrb[0].mxu0
  %v617 = vadd.f32 0.0, %v616
  %v618 = vpop.f32.mrb[0].mxu0
  %v619 = vpop.f32.mrb[0].mxu0
  %v620 = vadd.f32 0.0, %v619
  %v621 = vpop.f32.mrb[0].mxu0
  %622 = vdwg.mxu0
  %v623 = vsel %vm122, %v617, -1e+30
  %v624 = vsel %vm122, %v620, -1e+30
  %v625 = vsel %vm125, %v623, -inf
  %626 = vmax.xlane.f32.xlu0 %v625
  %v627 = vpop.xlane.xlu0 %626
  %v628 = vsel %vm125, %v624, -inf
  %629 = vmax.xlane.f32.xlu0 %v628
  %v630 = vpop.xlane.xlu0 %629
  %v631 = vsub.f32 %v623, %v627
  %v632 = vsub.f32 %v624, %v630
  %v633 = vmul.f32 %v631, 1.442695
  %v634 = vpow.pop %v633
  %v635 = vmul.f32 %v632, 1.442695
  %v636 = vpow.pop %v635
  %v637 = vsel %vm125, %v634, 0.0
  %638 = vadd.xlane.f32.xlu0 %v637
  %v639 = vpop.xlane.xlu0 %638
  %v640 = vsel %vm125, %v636, 0.0
  %641 = vadd.xlane.f32.xlu0 %v640
  %v642 = vpop.xlane.xlu0 %641
  %v643 = vrcp.pop %v639
  %v644 = vmul.f32 %v634, %v643
  %v645 = vrcp.pop %v642
  %v646 = vmul.f32 %v636, %v645
  %v647 = vpack.c.bf16 %v646, %v644
  %v649 = vsel %vm125, %v647, 0
  %651 = vmatprep.subr.bf16.mxu0 0
  %652 = vmatpush1.bf16.msra.mxu0 %v578
  %653 = vmatprep.subr.bf16.mxu0 0
  %654 = vmatpush1.bf16.msra.mxu0 0
  %655 = vmatprep.subr.bf16.mxu0 0
  %656 = vmatpush1.bf16.msra.mxu0 0
  %657 = vmatprep.subr.bf16.mxu0 0
  %658 = vmatpush1.bf16.msra.mxu0 0
  %659 = vmatprep.subr.bf16.mxu0 0
  %660 = vmatpush1.bf16.msra.mxu0 0
  %661 = vmatprep.subr.bf16.mxu0 0
  %662 = vmatpush1.bf16.msra.mxu0 0
  %663 = vmatprep.subr.bf16.mxu0 0
  %664 = vmatpush1.bf16.msra.mxu0 0
  %665 = vmatprep.subr.bf16.mxu0 0
  %666 = vmatpush1.bf16.msra.mxu0 0
  %667 = vmatprep.subr.bf16.mxu0 0
  %668 = vmatpush1.bf16.msra.mxu0 0
  %669 = vmatprep.subr.bf16.mxu0 0
  %670 = vmatpush1.bf16.msra.mxu0 0
  %671 = vmatprep.subr.bf16.mxu0 0
  %672 = vmatpush1.bf16.msra.mxu0 0
  %673 = vmatprep.subr.bf16.mxu0 0
  %674 = vmatpush1.bf16.msra.mxu0 0
  %675 = vmatprep.subr.bf16.mxu0 0
  %676 = vmatpush1.bf16.msra.mxu0 0
  %677 = vmatprep.subr.bf16.mxu0 0
  %678 = vmatpush1.bf16.msra.mxu0 0
  %679 = vmatprep.subr.bf16.mxu0 0
  %680 = vmatpush1.bf16.msra.mxu0 0
  %681 = vmatprep.subr.bf16.mxu0 0
  %682 = vmatpush1.bf16.msra.mxu0 0
  %683 = vmatprep.mubr.bf16.mxu0 0
  %684 = vmatmul.mubr.bf16.gmra.mrb[0].mxu0 %v649
  %v685 = vpop.f32.mrb[0].mxu0
  %v686 = vadd.f32 0.0, %v685
  %v687 = vpop.f32.mrb[0].mxu0
  %v688 = vpop.f32.mrb[0].mxu0
  %v689 = vadd.f32 0.0, %v688
  %v690 = vpop.f32.mrb[0].mxu0
  %691 = vdwg.mxu0
  %v692 = vadd.f32 %v566, %v686
  %v693 = vadd.f32 %v567, %v689
  %vm694 = vcmp.ge.s32.totalorder %v57, 40
  %vm695 = vcmp.lt.s32.totalorder %v57, 48
  %vm696 = vmand %vm694, %vm695
  %v697 = vsel %vm696, 1, 0
  %vm698 = vcmp.eq.s32.totalorder %v697, 1
  %v699 = vsel %vm698, %v53, 0.0
  %v700 = vsel %vm698, %v54, 0.0
  %v701 = vpack.c.bf16 %v700, %v699
  %v702 = vsel %vm698, %v48, 0.0
  %v703 = vsel %vm698, %v50, 0.0
  %v704 = vpack.c.bf16 %v703, %v702
  %v706 = vsel %vm73, %v701, 0
  %708 = vmatprep.subr.bf16.mxu0 0
  %709 = vmatpush1.bf16.xpose.msra.mxu0 %v78
  %710 = vmatprep.subr.bf16.mxu0 0
  %711 = vmatpush1.bf16.xpose.msra.mxu0 0
  %712 = vmatprep.subr.bf16.mxu0 0
  %713 = vmatpush1.bf16.xpose.msra.mxu0 0
  %714 = vmatprep.subr.bf16.mxu0 0
  %715 = vmatpush1.bf16.xpose.msra.mxu0 0
  %716 = vmatprep.subr.bf16.mxu0 0
  %717 = vmatpush1.bf16.xpose.msra.mxu0 0
  %718 = vmatprep.subr.bf16.mxu0 0
  %719 = vmatpush1.bf16.xpose.msra.mxu0 0
  %720 = vmatprep.subr.bf16.mxu0 0
  %721 = vmatpush1.bf16.xpose.msra.mxu0 0
  %722 = vmatprep.subr.bf16.mxu0 0
  %723 = vmatpush1.bf16.xpose.msra.mxu0 0
  %724 = vmatprep.subr.bf16.mxu0 0
  %725 = vmatpush1.bf16.xpose.msra.mxu0 0
  %726 = vmatprep.subr.bf16.mxu0 0
  %727 = vmatpush1.bf16.xpose.msra.mxu0 0
  %728 = vmatprep.subr.bf16.mxu0 0
  %729 = vmatpush1.bf16.xpose.msra.mxu0 0
  %730 = vmatprep.subr.bf16.mxu0 0
  %731 = vmatpush1.bf16.xpose.msra.mxu0 0
  %732 = vmatprep.subr.bf16.mxu0 0
  %733 = vmatpush1.bf16.xpose.msra.mxu0 0
  %734 = vmatprep.subr.bf16.mxu0 0
  %735 = vmatpush1.bf16.xpose.msra.mxu0 0
  %736 = vmatprep.subr.bf16.mxu0 0
  %737 = vmatpush1.bf16.xpose.msra.mxu0 0
  %738 = vmatprep.subr.bf16.mxu0 0
  %739 = vmatpush1.bf16.xpose.msra.mxu0 0
  %740 = vmatprep.mubr.bf16.mxu0 0
  %741 = vmatmul.mubr.bf16.gmra.mrb[0].mxu0 %v706
  %v742 = vpop.f32.mrb[0].mxu0
  %v743 = vadd.f32 0.0, %v742
  %v744 = vpop.f32.mrb[0].mxu0
  %v745 = vpop.f32.mrb[0].mxu0
  %v746 = vadd.f32 0.0, %v745
  %v747 = vpop.f32.mrb[0].mxu0
  %748 = vdwg.mxu0
  %v749 = vsel %vm122, %v743, -1e+30
  %v750 = vsel %vm122, %v746, -1e+30
  %v751 = vsel %vm125, %v749, -inf
  %752 = vmax.xlane.f32.xlu0 %v751
  %v753 = vpop.xlane.xlu0 %752
  %v754 = vsel %vm125, %v750, -inf
  %755 = vmax.xlane.f32.xlu0 %v754
  %v756 = vpop.xlane.xlu0 %755
  %v757 = vsub.f32 %v749, %v753
  %v758 = vsub.f32 %v750, %v756
  %v759 = vmul.f32 %v757, 1.442695
  %v760 = vpow.pop %v759
  %v761 = vmul.f32 %v758, 1.442695
  %v762 = vpow.pop %v761
  %v763 = vsel %vm125, %v760, 0.0
  %764 = vadd.xlane.f32.xlu0 %v763
  %v765 = vpop.xlane.xlu0 %764
  %v766 = vsel %vm125, %v762, 0.0
  %767 = vadd.xlane.f32.xlu0 %v766
  %v768 = vpop.xlane.xlu0 %767
  %v769 = vrcp.pop %v765
  %v770 = vmul.f32 %v760, %v769
  %v771 = vrcp.pop %v768
  %v772 = vmul.f32 %v762, %v771
  %v773 = vpack.c.bf16 %v772, %v770
  %v775 = vsel %vm125, %v773, 0
  %777 = vmatprep.subr.bf16.mxu0 0
  %778 = vmatpush1.bf16.msra.mxu0 %v704
  %779 = vmatprep.subr.bf16.mxu0 0
  %780 = vmatpush1.bf16.msra.mxu0 0
  %781 = vmatprep.subr.bf16.mxu0 0
  %782 = vmatpush1.bf16.msra.mxu0 0
  %783 = vmatprep.subr.bf16.mxu0 0
  %784 = vmatpush1.bf16.msra.mxu0 0
  %785 = vmatprep.subr.bf16.mxu0 0
  %786 = vmatpush1.bf16.msra.mxu0 0
  %787 = vmatprep.subr.bf16.mxu0 0
  %788 = vmatpush1.bf16.msra.mxu0 0
  %789 = vmatprep.subr.bf16.mxu0 0
  %790 = vmatpush1.bf16.msra.mxu0 0
  %791 = vmatprep.subr.bf16.mxu0 0
  %792 = vmatpush1.bf16.msra.mxu0 0
  %793 = vmatprep.subr.bf16.mxu0 0
  %794 = vmatpush1.bf16.msra.mxu0 0
  %795 = vmatprep.subr.bf16.mxu0 0
  %796 = vmatpush1.bf16.msra.mxu0 0
  %797 = vmatprep.subr.bf16.mxu0 0
  %798 = vmatpush1.bf16.msra.mxu0 0
  %799 = vmatprep.subr.bf16.mxu0 0
  %800 = vmatpush1.bf16.msra.mxu0 0
  %801 = vmatprep.subr.bf16.mxu0 0
  %802 = vmatpush1.bf16.msra.mxu0 0
  %803 = vmatprep.subr.bf16.mxu0 0
  %804 = vmatpush1.bf16.msra.mxu0 0
  %805 = vmatprep.subr.bf16.mxu0 0
  %806 = vmatpush1.bf16.msra.mxu0 0
  %807 = vmatprep.subr.bf16.mxu0 0
  %808 = vmatpush1.bf16.msra.mxu0 0
  %809 = vmatprep.mubr.bf16.mxu0 0
  %810 = vmatmul.mubr.bf16.gmra.mrb[0].mxu0 %v775
  %v811 = vpop.f32.mrb[0].mxu0
  %v812 = vadd.f32 0.0, %v811
  %v813 = vpop.f32.mrb[0].mxu0
  %v814 = vpop.f32.mrb[0].mxu0
  %v815 = vadd.f32 0.0, %v814
  %v816 = vpop.f32.mrb[0].mxu0
  %817 = vdwg.mxu0
  %v818 = vadd.f32 %v692, %v812
  %v819 = vadd.f32 %v693, %v815
  %vm820 = vcmp.ge.s32.totalorder %v57, 48
  %vm821 = vcmp.lt.s32.totalorder %v57, 56
  %vm822 = vmand %vm820, %vm821
  %v823 = vsel %vm822, 1, 0
  %vm824 = vcmp.eq.s32.totalorder %v823, 1
  %v825 = vsel %vm824, %v53, 0.0
  %v826 = vsel %vm824, %v54, 0.0
  %v827 = vpack.c.bf16 %v826, %v825
  %v828 = vsel %vm824, %v48, 0.0
  %v829 = vsel %vm824, %v50, 0.0
  %v830 = vpack.c.bf16 %v829, %v828
  %v832 = vsel %vm73, %v827, 0
  %834 = vmatprep.subr.bf16.mxu0 0
  %835 = vmatpush1.bf16.xpose.msra.mxu0 %v78
  %836 = vmatprep.subr.bf16.mxu0 0
  %837 = vmatpush1.bf16.xpose.msra.mxu0 0
  %838 = vmatprep.subr.bf16.mxu0 0
  %839 = vmatpush1.bf16.xpose.msra.mxu0 0
  %840 = vmatprep.subr.bf16.mxu0 0
  %841 = vmatpush1.bf16.xpose.msra.mxu0 0
  %842 = vmatprep.subr.bf16.mxu0 0
  %843 = vmatpush1.bf16.xpose.msra.mxu0 0
  %844 = vmatprep.subr.bf16.mxu0 0
  %845 = vmatpush1.bf16.xpose.msra.mxu0 0
  %846 = vmatprep.subr.bf16.mxu0 0
  %847 = vmatpush1.bf16.xpose.msra.mxu0 0
  %848 = vmatprep.subr.bf16.mxu0 0
  %849 = vmatpush1.bf16.xpose.msra.mxu0 0
  %850 = vmatprep.subr.bf16.mxu0 0
  %851 = vmatpush1.bf16.xpose.msra.mxu0 0
  %852 = vmatprep.subr.bf16.mxu0 0
  %853 = vmatpush1.bf16.xpose.msra.mxu0 0
  %854 = vmatprep.subr.bf16.mxu0 0
  %855 = vmatpush1.bf16.xpose.msra.mxu0 0
  %856 = vmatprep.subr.bf16.mxu0 0
  %857 = vmatpush1.bf16.xpose.msra.mxu0 0
  %858 = vmatprep.subr.bf16.mxu0 0
  %859 = vmatpush1.bf16.xpose.msra.mxu0 0
  %860 = vmatprep.subr.bf16.mxu0 0
  %861 = vmatpush1.bf16.xpose.msra.mxu0 0
  %862 = vmatprep.subr.bf16.mxu0 0
  %863 = vmatpush1.bf16.xpose.msra.mxu0 0
  %864 = vmatprep.subr.bf16.mxu0 0
  %865 = vmatpush1.bf16.xpose.msra.mxu0 0
  %866 = vmatprep.mubr.bf16.mxu0 0
  %867 = vmatmul.mubr.bf16.gmra.mrb[0].mxu0 %v832
  %v868 = vpop.f32.mrb[0].mxu0
  %v869 = vadd.f32 0.0, %v868
  %v870 = vpop.f32.mrb[0].mxu0
  %v871 = vpop.f32.mrb[0].mxu0
  %v872 = vadd.f32 0.0, %v871
  %v873 = vpop.f32.mrb[0].mxu0
  %874 = vdwg.mxu0
  %v875 = vsel %vm122, %v869, -1e+30
  %v876 = vsel %vm122, %v872, -1e+30
  %v877 = vsel %vm125, %v875, -inf
  %878 = vmax.xlane.f32.xlu0 %v877
  %v879 = vpop.xlane.xlu0 %878
  %v880 = vsel %vm125, %v876, -inf
  %881 = vmax.xlane.f32.xlu0 %v880
  %v882 = vpop.xlane.xlu0 %881
  %v883 = vsub.f32 %v875, %v879
  %v884 = vsub.f32 %v876, %v882
  %v885 = vmul.f32 %v883, 1.442695
  %v886 = vpow.pop %v885
  %v887 = vmul.f32 %v884, 1.442695
  %v888 = vpow.pop %v887
  %v889 = vsel %vm125, %v886, 0.0
  %890 = vadd.xlane.f32.xlu0 %v889
  %v891 = vpop.xlane.xlu0 %890
  %v892 = vsel %vm125, %v888, 0.0
  %893 = vadd.xlane.f32.xlu0 %v892
  %v894 = vpop.xlane.xlu0 %893
  %v895 = vrcp.pop %v891
  %v896 = vmul.f32 %v886, %v895
  %v897 = vrcp.pop %v894
  %v898 = vmul.f32 %v888, %v897
  %v899 = vpack.c.bf16 %v898, %v896
  %v901 = vsel %vm125, %v899, 0
  %903 = vmatprep.subr.bf16.mxu0 0
  %904 = vmatpush1.bf16.msra.mxu0 %v830
  %905 = vmatprep.subr.bf16.mxu0 0
  %906 = vmatpush1.bf16.msra.mxu0 0
  %907 = vmatprep.subr.bf16.mxu0 0
  %908 = vmatpush1.bf16.msra.mxu0 0
  %909 = vmatprep.subr.bf16.mxu0 0
  %910 = vmatpush1.bf16.msra.mxu0 0
  %911 = vmatprep.subr.bf16.mxu0 0
  %912 = vmatpush1.bf16.msra.mxu0 0
  %913 = vmatprep.subr.bf16.mxu0 0
  %914 = vmatpush1.bf16.msra.mxu0 0
  %915 = vmatprep.subr.bf16.mxu0 0
  %916 = vmatpush1.bf16.msra.mxu0 0
  %917 = vmatprep.subr.bf16.mxu0 0
  %918 = vmatpush1.bf16.msra.mxu0 0
  %919 = vmatprep.subr.bf16.mxu0 0
  %920 = vmatpush1.bf16.msra.mxu0 0
  %921 = vmatprep.subr.bf16.mxu0 0
  %922 = vmatpush1.bf16.msra.mxu0 0
  %923 = vmatprep.subr.bf16.mxu0 0
  %924 = vmatpush1.bf16.msra.mxu0 0
  %925 = vmatprep.subr.bf16.mxu0 0
  %926 = vmatpush1.bf16.msra.mxu0 0
  %927 = vmatprep.subr.bf16.mxu0 0
  %928 = vmatpush1.bf16.msra.mxu0 0
  %929 = vmatprep.subr.bf16.mxu0 0
  %930 = vmatpush1.bf16.msra.mxu0 0
  %931 = vmatprep.subr.bf16.mxu0 0
  %932 = vmatpush1.bf16.msra.mxu0 0
  %933 = vmatprep.subr.bf16.mxu0 0
  %934 = vmatpush1.bf16.msra.mxu0 0
  %935 = vmatprep.mubr.bf16.mxu0 0
  %936 = vmatmul.mubr.bf16.gmra.mrb[0].mxu0 %v901
  %v937 = vpop.f32.mrb[0].mxu0
  %v938 = vadd.f32 0.0, %v937
  %v939 = vpop.f32.mrb[0].mxu0
  %v940 = vpop.f32.mrb[0].mxu0
  %v941 = vadd.f32 0.0, %v940
  %v942 = vpop.f32.mrb[0].mxu0
  %943 = vdwg.mxu0
  %v944 = vadd.f32 %v818, %v938
  %v945 = vadd.f32 %v819, %v941
  %vm946 = vcmp.ge.s32.totalorder %v57, 56
  %vm947 = vcmp.lt.s32.totalorder %v57, 64
  %vm948 = vmand %vm946, %vm947
  %v949 = vsel %vm948, 1, 0
  %vm950 = vcmp.eq.s32.totalorder %v949, 1
  %v951 = vsel %vm950, %v53, 0.0
  %v952 = vsel %vm950, %v54, 0.0
  %v953 = vpack.c.bf16 %v952, %v951
  %v954 = vsel %vm950, %v48, 0.0
  %v955 = vsel %vm950, %v50, 0.0
  %v956 = vpack.c.bf16 %v955, %v954
  %v958 = vsel %vm73, %v953, 0
  %960 = vmatprep.subr.bf16.mxu0 0
  %961 = vmatpush1.bf16.xpose.msra.mxu0 %v78
  %962 = vmatprep.subr.bf16.mxu0 0
  %963 = vmatpush1.bf16.xpose.msra.mxu0 0
  %964 = vmatprep.subr.bf16.mxu0 0
  %965 = vmatpush1.bf16.xpose.msra.mxu0 0
  %966 = vmatprep.subr.bf16.mxu0 0
  %967 = vmatpush1.bf16.xpose.msra.mxu0 0
  %968 = vmatprep.subr.bf16.mxu0 0
  %969 = vmatpush1.bf16.xpose.msra.mxu0 0
  %970 = vmatprep.subr.bf16.mxu0 0
  %971 = vmatpush1.bf16.xpose.msra.mxu0 0
  %972 = vmatprep.subr.bf16.mxu0 0
  %973 = vmatpush1.bf16.xpose.msra.mxu0 0
  %974 = vmatprep.subr.bf16.mxu0 0
  %975 = vmatpush1.bf16.xpose.msra.mxu0 0
  %976 = vmatprep.subr.bf16.mxu0 0
  %977 = vmatpush1.bf16.xpose.msra.mxu0 0
  %978 = vmatprep.subr.bf16.mxu0 0
  %979 = vmatpush1.bf16.xpose.msra.mxu0 0
  %980 = vmatprep.subr.bf16.mxu0 0
  %981 = vmatpush1.bf16.xpose.msra.mxu0 0
  %982 = vmatprep.subr.bf16.mxu0 0
  %983 = vmatpush1.bf16.xpose.msra.mxu0 0
  %984 = vmatprep.subr.bf16.mxu0 0
  %985 = vmatpush1.bf16.xpose.msra.mxu0 0
  %986 = vmatprep.subr.bf16.mxu0 0
  %987 = vmatpush1.bf16.xpose.msra.mxu0 0
  %988 = vmatprep.subr.bf16.mxu0 0
  %989 = vmatpush1.bf16.xpose.msra.mxu0 0
  %990 = vmatprep.subr.bf16.mxu0 0
  %991 = vmatpush1.bf16.xpose.msra.mxu0 0
  %992 = vmatprep.mubr.bf16.mxu0 0
  %993 = vmatmul.mubr.bf16.gmra.mrb[0].mxu0 %v958
  %v994 = vpop.f32.mrb[0].mxu0
  %v995 = vadd.f32 0.0, %v994
  %v996 = vpop.f32.mrb[0].mxu0
  %v997 = vpop.f32.mrb[0].mxu0
  %v998 = vadd.f32 0.0, %v997
  %v999 = vpop.f32.mrb[0].mxu0
  %1000 = vdwg.mxu0
  %v1001 = vsel %vm122, %v995, -1e+30
  %v1002 = vsel %vm122, %v998, -1e+30
  %v1003 = vsel %vm125, %v1001, -inf
  %1004 = vmax.xlane.f32.xlu0 %v1003
  %v1005 = vpop.xlane.xlu0 %1004
  %v1006 = vsel %vm125, %v1002, -inf
  %1007 = vmax.xlane.f32.xlu0 %v1006
  %v1008 = vpop.xlane.xlu0 %1007
  %v1009 = vsub.f32 %v1001, %v1005
  %v1010 = vsub.f32 %v1002, %v1008
  %v1011 = vmul.f32 %v1009, 1.442695
  %v1012 = vpow.pop %v1011
  %v1013 = vmul.f32 %v1010, 1.442695
  %v1014 = vpow.pop %v1013
  %v1015 = vsel %vm125, %v1012, 0.0
  %1016 = vadd.xlane.f32.xlu0 %v1015
  %v1017 = vpop.xlane.xlu0 %1016
  %v1018 = vsel %vm125, %v1014, 0.0
  %1019 = vadd.xlane.f32.xlu0 %v1018
  %v1020 = vpop.xlane.xlu0 %1019
  %v1021 = vrcp.pop %v1017
  %v1022 = vmul.f32 %v1012, %v1021
  %v1023 = vrcp.pop %v1020
  %v1024 = vmul.f32 %v1014, %v1023
  %v1025 = vpack.c.bf16 %v1024, %v1022
  %v1027 = vsel %vm125, %v1025, 0
  %1029 = vmatprep.subr.bf16.mxu0 0
  %1030 = vmatpush1.bf16.msra.mxu0 %v956
  %1031 = vmatprep.subr.bf16.mxu0 0
  %1032 = vmatpush1.bf16.msra.mxu0 0
  %1033 = vmatprep.subr.bf16.mxu0 0
  %1034 = vmatpush1.bf16.msra.mxu0 0
  %1035 = vmatprep.subr.bf16.mxu0 0
  %1036 = vmatpush1.bf16.msra.mxu0 0
  %1037 = vmatprep.subr.bf16.mxu0 0
  %1038 = vmatpush1.bf16.msra.mxu0 0
  %1039 = vmatprep.subr.bf16.mxu0 0
  %1040 = vmatpush1.bf16.msra.mxu0 0
  %1041 = vmatprep.subr.bf16.mxu0 0
  %1042 = vmatpush1.bf16.msra.mxu0 0
  %1043 = vmatprep.subr.bf16.mxu0 0
  %1044 = vmatpush1.bf16.msra.mxu0 0
  %1045 = vmatprep.subr.bf16.mxu0 0
  %1046 = vmatpush1.bf16.msra.mxu0 0
  %1047 = vmatprep.subr.bf16.mxu0 0
  %1048 = vmatpush1.bf16.msra.mxu0 0
  %1049 = vmatprep.subr.bf16.mxu0 0
  %1050 = vmatpush1.bf16.msra.mxu0 0
  %1051 = vmatprep.subr.bf16.mxu0 0
  %1052 = vmatpush1.bf16.msra.mxu0 0
  %1053 = vmatprep.subr.bf16.mxu0 0
  %1054 = vmatpush1.bf16.msra.mxu0 0
  %1055 = vmatprep.subr.bf16.mxu0 0
  %1056 = vmatpush1.bf16.msra.mxu0 0
  %1057 = vmatprep.subr.bf16.mxu0 0
  %1058 = vmatpush1.bf16.msra.mxu0 0
  %1059 = vmatprep.subr.bf16.mxu0 0
  %1060 = vmatpush1.bf16.msra.mxu0 0
  %1061 = vmatprep.mubr.bf16.mxu0 0
  %1062 = vmatmul.mubr.bf16.gmra.mrb[0].mxu0 %v1027
  %v1063 = vpop.f32.mrb[0].mxu0
  %v1064 = vadd.f32 0.0, %v1063
  %v1065 = vpop.f32.mrb[0].mxu0
  %v1066 = vpop.f32.mrb[0].mxu0
  %v1067 = vadd.f32 0.0, %v1066
  %v1068 = vpop.f32.mrb[0].mxu0
  %1069 = vdwg.mxu0
  %v1070 = vadd.f32 %v944, %v1064
  %v1071 = vadd.f32 %v945, %v1067
  %v1072 = vld [vmem:[%s3] sm:$0xff]
  %v1073 = vld [vmem:[%s3 + $0x8] sm:$0xff]
  %v1074 = vld [vmem:[%s3 + $0x10] sm:$0xff]
  %v1075 = vld [vmem:[%s3 + $0x18] sm:$0xff]
  %v1076 = vld [vmem:[%s3 + $0x20] sm:$0xff]
  %v1077 = vld [vmem:[%s3 + $0x28] sm:$0xff]
  %v1078 = vld [vmem:[%s3 + $0x30] sm:$0xff]
  %v1079 = vld [vmem:[%s3 + $0x38] sm:$0xff]
  %v1080 = vpack.c.bf16 %v1071, %v1070
  %v1081 = vpack.c.bf16 %v1073, %v1072
  %v1082 = vpack.c.bf16 %v1075, %v1074
  %v1083 = vpack.c.bf16 %v1077, %v1076
  %v1084 = vpack.c.bf16 %v1079, %v1078
  %v1086 = vsel %vm73, %v1080, 0
  %1088 = vmatprep.subr.bf16.mxu0 0
  %1089 = vmatpush1.bf16.msra.mxu0 %v1081
  %1090 = vmatprep.subr.bf16.mxu0 0
  %1091 = vmatpush1.bf16.msra.mxu0 %v1082
  %1092 = vmatprep.subr.bf16.mxu0 0
  %1093 = vmatpush1.bf16.msra.mxu0 %v1083
  %1094 = vmatprep.subr.bf16.mxu0 0
  %1095 = vmatpush1.bf16.msra.mxu0 %v1084
  %1096 = vmatprep.subr.bf16.mxu0 0
  %1097 = vmatpush1.bf16.msra.mxu0 0
  %1098 = vmatprep.subr.bf16.mxu0 0
  %1099 = vmatpush1.bf16.msra.mxu0 0
  %1100 = vmatprep.subr.bf16.mxu0 0
  %1101 = vmatpush1.bf16.msra.mxu0 0
  %1102 = vmatprep.subr.bf16.mxu0 0
  %1103 = vmatpush1.bf16.msra.mxu0 0
  %1104 = vmatprep.subr.bf16.mxu0 0
  %1105 = vmatpush1.bf16.msra.mxu0 0
  %1106 = vmatprep.subr.bf16.mxu0 0
  %1107 = vmatpush1.bf16.msra.mxu0 0
  %1108 = vmatprep.subr.bf16.mxu0 0
  %1109 = vmatpush1.bf16.msra.mxu0 0
  %1110 = vmatprep.subr.bf16.mxu0 0
  %1111 = vmatpush1.bf16.msra.mxu0 0
  %1112 = vmatprep.subr.bf16.mxu0 0
  %1113 = vmatpush1.bf16.msra.mxu0 0
  %1114 = vmatprep.subr.bf16.mxu0 0
  %1115 = vmatpush1.bf16.msra.mxu0 0
  %1116 = vmatprep.subr.bf16.mxu0 0
  %1117 = vmatpush1.bf16.msra.mxu0 0
  %1118 = vmatprep.subr.bf16.mxu0 0
  %1119 = vmatpush1.bf16.msra.mxu0 0
  %1120 = vmatprep.mubr.bf16.mxu0 0
  %1121 = vmatmul.mubr.bf16.gmra.mrb[0].mxu0 %v1086
  %v1122 = vpop.f32.mrb[0].mxu0
  %v1123 = vadd.f32 0.0, %v1122
  %v1124 = vpop.f32.mrb[0].mxu0
  %v1125 = vpop.f32.mrb[0].mxu0
  %v1126 = vadd.f32 0.0, %v1125
  %v1127 = vpop.f32.mrb[0].mxu0
  %1128 = vdwg.mxu0
  %v1129 = vadd.f32 %v45, %v1123
  %v1130 = vadd.f32 %v46, %v1126
  %v1131 = vld [vmem:[%s4] sm:$0x1]
  %v1133 = vlaneseq
  %v1134 = vshrl.u32 %v1133, 7
  %v1135 = vsub.s32 0, %v1134
  %v1136 = vrot.slane %v1131, %v1135
  %v1138 = vadd.f32 %v1129, %v1136
  %v1139 = vadd.f32 %v1130, %v1136
  %v1140 = vld [vmem:[%s5] sm:$0x1]
  %v1141 = vld [vmem:[%s6] sm:$0x1]
  %v1142 = vsel %vm73, %v1138, 0.0
  %1143 = vadd.xlane.f32.xlu0 %v1142
  %v1144 = vpop.xlane.xlu0 %1143
  %v1145 = vsel %vm73, %v1139, 0.0
  %1146 = vadd.xlane.f32.xlu0 %v1145
  %v1147 = vpop.xlane.xlu0 %1146
  %v1148 = vrcp.pop 64.0
  %v1149 = vmul.f32 %v1144, %v1148
  %v1150 = vmul.f32 %v1147, %v1148
  %v1151 = vsub.f32 %v1138, %v1149
  %v1152 = vsub.f32 %v1139, %v1150
  %v1153 = vmul.f32 %v1151, %v1151
  %v1154 = vmul.f32 %v1152, %v1152
  %v1155 = vsel %vm73, %v1153, 0.0
  %1156 = vadd.xlane.f32.xlu0 %v1155
  %v1157 = vpop.xlane.xlu0 %1156
  %v1158 = vsel %vm73, %v1154, 0.0
  %1159 = vadd.xlane.f32.xlu0 %v1158
  %v1160 = vpop.xlane.xlu0 %1159
  %v1161 = vmul.f32 %v1157, %v1148
  %v1162 = vmul.f32 %v1160, %v1148
  %v1163 = vadd.f32 %v1161, 1e-05
  %v1164 = vadd.f32 %v1162, 1e-05
  %v1165 = vrsqrt.pop %v1163
  %v1166 = vrsqrt.pop %v1164
  %v1167 = vmul.f32 %v1151, %v1165
  %v1168 = vmul.f32 %v1152, %v1166
  %v1170 = vlaneseq
  %v1171 = vshrl.u32 %v1170, 7
  %v1172 = vsub.s32 0, %v1171
  %v1173 = vrot.slane %v1140, %v1172
  %v1175 = vmul.f32 %v1167, %v1173
  %v1176 = vmul.f32 %v1168, %v1173
  %v1178 = vlaneseq
  %v1179 = vshrl.u32 %v1178, 7
  %v1180 = vsub.s32 0, %v1179
  %v1181 = vrot.slane %v1141, %v1180
  %v1183 = vadd.f32 %v1175, %v1181
  %v1184 = vadd.f32 %v1176, %v1181
  %v1185 = vld [vmem:[%s7] sm:$0xff]
  %v1186 = vld [vmem:[%s7 + $0x8] sm:$0xff]
  %v1187 = vld [vmem:[%s7 + $0x10] sm:$0xff]
  %v1188 = vld [vmem:[%s7 + $0x18] sm:$0xff]
  %v1189 = vld [vmem:[%s7 + $0x20] sm:$0xff]
  %v1190 = vld [vmem:[%s7 + $0x28] sm:$0xff]
  %v1191 = vld [vmem:[%s7 + $0x30] sm:$0xff]
  %v1192 = vld [vmem:[%s7 + $0x38] sm:$0xff]
  %v1193 = vpack.c.bf16 %v1184, %v1183
  %v1194 = vpack.c.bf16 %v1186, %v1185
  %v1195 = vpack.c.bf16 %v1188, %v1187
  %v1196 = vpack.c.bf16 %v1190, %v1189
  %v1197 = vpack.c.bf16 %v1192, %v1191
  %v1198 = vld [vmem:[%s8] sm:$0x1]
  %v1200 = vlaneseq
  %v1201 = vshrl.u32 %v1200, 7
  %v1202 = vsub.s32 0, %v1201
  %v1203 = vrot.slane %v1198, %v1202
  %v1206 = vsel %vm73, %v1193, 0
  %1208 = vmatprep.subr.bf16.mxu0 0
  %1209 = vmatpush1.bf16.msra.mxu0 %v1194
  %1210 = vmatprep.subr.bf16.mxu0 0
  %1211 = vmatpush1.bf16.msra.mxu0 %v1195
  %1212 = vmatprep.subr.bf16.mxu0 0
  %1213 = vmatpush1.bf16.msra.mxu0 %v1196
  %1214 = vmatprep.subr.bf16.mxu0 0
  %1215 = vmatpush1.bf16.msra.mxu0 %v1197
  %1216 = vmatprep.subr.bf16.mxu0 0
  %1217 = vmatpush1.bf16.msra.mxu0 0
  %1218 = vmatprep.subr.bf16.mxu0 0
  %1219 = vmatpush1.bf16.msra.mxu0 0
  %1220 = vmatprep.subr.bf16.mxu0 0
  %1221 = vmatpush1.bf16.msra.mxu0 0
  %1222 = vmatprep.subr.bf16.mxu0 0
  %1223 = vmatpush1.bf16.msra.mxu0 0
  %1224 = vmatprep.subr.bf16.mxu0 0
  %1225 = vmatpush1.bf16.msra.mxu0 0
  %1226 = vmatprep.subr.bf16.mxu0 0
  %1227 = vmatpush1.bf16.msra.mxu0 0
  %1228 = vmatprep.subr.bf16.mxu0 0
  %1229 = vmatpush1.bf16.msra.mxu0 0
  %1230 = vmatprep.subr.bf16.mxu0 0
  %1231 = vmatpush1.bf16.msra.mxu0 0
  %1232 = vmatprep.subr.bf16.mxu0 0
  %1233 = vmatpush1.bf16.msra.mxu0 0
  %1234 = vmatprep.subr.bf16.mxu0 0
  %1235 = vmatpush1.bf16.msra.mxu0 0
  %1236 = vmatprep.subr.bf16.mxu0 0
  %1237 = vmatpush1.bf16.msra.mxu0 0
  %1238 = vmatprep.subr.bf16.mxu0 0
  %1239 = vmatpush1.bf16.msra.mxu0 0
  %1240 = vmatprep.mubr.bf16.mxu0 0
  %1241 = vmatmul.mubr.bf16.gmra.mrb[0].mxu0 %v1206
  %v1242 = vpop.f32.mrb[0].mxu0
  %v1243 = vadd.f32 %v1203, %v1242
  %v1244 = vpop.f32.mrb[0].mxu0
  %v1245 = vpop.f32.mrb[0].mxu0
  %v1246 = vadd.f32 %v1203, %v1245
  %v1247 = vpop.f32.mrb[0].mxu0
  %1248 = vdwg.mxu0
  %v1249 = vmax.f32 %v1243, 0.0
  %v1250 = vmax.f32 %v1246, 0.0
  %v1251 = vld [vmem:[%s9] sm:$0xff]
  %v1252 = vld [vmem:[%s9 + $0x8] sm:$0xff]
  %v1253 = vld [vmem:[%s9 + $0x10] sm:$0xff]
  %v1254 = vld [vmem:[%s9 + $0x18] sm:$0xff]
  %v1255 = vld [vmem:[%s9 + $0x20] sm:$0xff]
  %v1256 = vld [vmem:[%s9 + $0x28] sm:$0xff]
  %v1257 = vld [vmem:[%s9 + $0x30] sm:$0xff]
  %v1258 = vld [vmem:[%s9 + $0x38] sm:$0xff]
  %v1259 = vld [vmem:[%s9 + $0x40] sm:$0xff]
  %v1260 = vld [vmem:[%s9 + $0x48] sm:$0xff]
  %v1261 = vld [vmem:[%s9 + $0x50] sm:$0xff]
  %v1262 = vld [vmem:[%s9 + $0x58] sm:$0xff]
  %v1263 = vld [vmem:[%s9 + $0x60] sm:$0xff]
  %v1264 = vld [vmem:[%s9 + $0x68] sm:$0xff]
  %v1265 = vld [vmem:[%s9 + $0x70] sm:$0xff]
  %v1266 = vld [vmem:[%s9 + $0x78] sm:$0xff]
  %v1267 = vpack.c.bf16 %v1250, %v1249
  %v1268 = vpack.c.bf16 %v1252, %v1251
  %v1269 = vpack.c.bf16 %v1254, %v1253
  %v1270 = vpack.c.bf16 %v1256, %v1255
  %v1271 = vpack.c.bf16 %v1258, %v1257
  %v1272 = vpack.c.bf16 %v1260, %v1259
  %v1273 = vpack.c.bf16 %v1262, %v1261
  %v1274 = vpack.c.bf16 %v1264, %v1263
  %v1275 = vpack.c.bf16 %v1266, %v1265
  %1276 = vmatprep.subr.bf16.mxu0 0
  %1277 = vmatpush1.bf16.msra.mxu0 %v1268
  %1278 = vmatprep.subr.bf16.mxu0 0
  %1279 = vmatpush1.bf16.msra.mxu0 %v1269
  %1280 = vmatprep.subr.bf16.mxu0 0
  %1281 = vmatpush1.bf16.msra.mxu0 %v1270
  %1282 = vmatprep.subr.bf16.mxu0 0
  %1283 = vmatpush1.bf16.msra.mxu0 %v1271
  %1284 = vmatprep.subr.bf16.mxu0 0
  %1285 = vmatpush1.bf16.msra.mxu0 %v1272
  %1286 = vmatprep.subr.bf16.mxu0 0
  %1287 = vmatpush1.bf16.msra.mxu0 %v1273
  %1288 = vmatprep.subr.bf16.mxu0 0
  %1289 = vmatpush1.bf16.msra.mxu0 %v1274
  %1290 = vmatprep.subr.bf16.mxu0 0
  %1291 = vmatpush1.bf16.msra.mxu0 %v1275
  %1292 = vmatprep.subr.bf16.mxu0 0
  %1293 = vmatpush1.bf16.msra.mxu0 0
  %1294 = vmatprep.subr.bf16.mxu0 0
  %1295 = vmatpush1.bf16.msra.mxu0 0
  %1296 = vmatprep.subr.bf16.mxu0 0
  %1297 = vmatpush1.bf16.msra.mxu0 0
  %1298 = vmatprep.subr.bf16.mxu0 0
  %1299 = vmatpush1.bf16.msra.mxu0 0
  %1300 = vmatprep.subr.bf16.mxu0 0
  %1301 = vmatpush1.bf16.msra.mxu0 0
  %1302 = vmatprep.subr.bf16.mxu0 0
  %1303 = vmatpush1.bf16.msra.mxu0 0
  %1304 = vmatprep.subr.bf16.mxu0 0
  %1305 = vmatpush1.bf16.msra.mxu0 0
  %1306 = vmatprep.subr.bf16.mxu0 0
  %1307 = vmatpush1.bf16.msra.mxu0 0
  %1308 = vmatprep.mubr.bf16.mxu0 0
  %1309 = vmatmul.mubr.bf16.gmra.mrb[0].mxu0 %v1267
  %v1310 = vpop.f32.mrb[0].mxu0
  %v1311 = vadd.f32 0.0, %v1310
  %v1312 = vpop.f32.mrb[0].mxu0
  %v1313 = vpop.f32.mrb[0].mxu0
  %v1314 = vadd.f32 0.0, %v1313
  %v1315 = vpop.f32.mrb[0].mxu0
  %1316 = vdwg.mxu0
  %v1317 = vadd.f32 %v1183, %v1311
  %v1318 = vadd.f32 %v1184, %v1314
  %v1319 = vld [vmem:[%s10] sm:$0x1]
  %v1321 = vlaneseq
  %v1322 = vshrl.u32 %v1321, 7
  %v1323 = vsub.s32 0, %v1322
  %v1324 = vrot.slane %v1319, %v1323
  %v1326 = vadd.f32 %v1317, %v1324
  %v1327 = vadd.f32 %v1318, %v1324
  %v1328 = vld [vmem:[%s11] sm:$0x1]
  %v1329 = vld [vmem:[%s12] sm:$0x1]
  %v1330 = vsel %vm73, %v1326, 0.0
  %1331 = vadd.xlane.f32.xlu0 %v1330
  %v1332 = vpop.xlane.xlu0 %1331
  %v1333 = vsel %vm73, %v1327, 0.0
  %1334 = vadd.xlane.f32.xlu0 %v1333
  %v1335 = vpop.xlane.xlu0 %1334
  %v1336 = vmul.f32 %v1332, %v1148
  %v1337 = vmul.f32 %v1335, %v1148
  %v1338 = vsub.f32 %v1326, %v1336
  %v1339 = vsub.f32 %v1327, %v1337
  %v1340 = vmul.f32 %v1338, %v1338
  %v1341 = vmul.f32 %v1339, %v1339
  %v1342 = vsel %vm73, %v1340, 0.0
  %1343 = vadd.xlane.f32.xlu0 %v1342
  %v1344 = vpop.xlane.xlu0 %1343
  %v1345 = vsel %vm73, %v1341, 0.0
  %1346 = vadd.xlane.f32.xlu0 %v1345
  %v1347 = vpop.xlane.xlu0 %1346
  %v1348 = vmul.f32 %v1344, %v1148
  %v1349 = vmul.f32 %v1347, %v1148
  %v1350 = vadd.f32 %v1348, 1e-05
  %v1351 = vadd.f32 %v1349, 1e-05
  %v1352 = vrsqrt.pop %v1350
  %v1353 = vrsqrt.pop %v1351
  %v1354 = vmul.f32 %v1338, %v1352
  %v1355 = vmul.f32 %v1339, %v1353
  %v1357 = vlaneseq
  %v1358 = vshrl.u32 %v1357, 7
  %v1359 = vsub.s32 0, %v1358
  %v1360 = vrot.slane %v1328, %v1359
  %v1362 = vmul.f32 %v1354, %v1360
  %v1363 = vmul.f32 %v1355, %v1360
  %v1365 = vlaneseq
  %v1366 = vshrl.u32 %v1365, 7
  %v1367 = vsub.s32 0, %v1366
  %v1368 = vrot.slane %v1329, %v1367
  %v1370 = vadd.f32 %v1362, %v1368
  %v1371 = vadd.f32 %v1363, %v1368
  %1372 = vst.msk [vmem:[%s13] sm:$0xff] %vm73, %v1370
  %1373 = vst.msk [vmem:[%s13 + $0x8] sm:$0xff] %vm73, %v1371
  // Predicated region
  $region54: #{gatgnn_forward.31} parent=0 // pred_check
    _
  $region55: #{gatgnn_forward.31} parent=0 // pred_check_branch
    %1375 = sbr.rel (0) target = $region57
  $region56: #{gatgnn_forward.31} parent=0 // pred_region
    _
  $region57: #{gatgnn_forward.31} parent=0 // pred_fallthru
    _
  // Predicated region
  $region58: #{gatgnn_forward.31} parent=0 // pred_check
    _
  $region59: #{gatgnn_forward.31} parent=0 // pred_check_branch
    %1377 = sbr.rel (0) target = $region61
  $region60: #{gatgnn_forward.31} parent=0 // pred_region
    _
  $region61: #{gatgnn_forward.31} parent=0 // pred_fallthru
    _

</llo_original>
